<compile_context>
chip_gen: v5e
topology: v5e:2x2
jax: 0.10.0
libtpu: 0.0.40
codegen_flags: <defaults>
</compile_context>

<pallas_src>
import numpy as np

import jax
import jax.numpy as jnp
from jax.experimental import pallas as pl
from jax.experimental.pallas import tpu as pltpu


# ---------------------------------------------------------------------------
# Host-side (one-time) folding of Conv2d(k=4, stride=1, padding=1) + bias into
# a dense matmul:  y_flat = x_flat @ M + bias_row
#   x_flat : channel-major (C_in, H, W) flatten     (PyTorch .view(B, -1))
#   y_flat : channel-major (C_out, Ho, Wo) flatten
#   M[(ci, ih, iw), (co, oh, ow)] = w[co, ci, ih-oh+pad, iw-ow+pad]  (0 outside)
# Zero padding is implicit (out-of-range input taps simply have no entry).
# ---------------------------------------------------------------------------
def _conv_to_dense(w, b, H, W, pad=1):
    w = np.asarray(w, dtype=np.float32)
    b = np.asarray(b, dtype=np.float32)
    C_out, C_in, K, _ = w.shape
    Ho = H + 2 * pad - K + 1
    Wo = W + 2 * pad - K + 1
    m = np.zeros((C_in, H, W, C_out, Ho, Wo), dtype=np.float32)
    for oh in range(Ho):
        for kh in range(K):
            ih = oh + kh - pad
            if ih < 0 or ih >= H:
                continue
            for ow in range(Wo):
                for kw in range(K):
                    iw = ow + kw - pad
                    if iw < 0 or iw >= W:
                        continue
                    m[:, ih, iw, :, oh, ow] = w[:, :, kh, kw].T  # (C_in, C_out)
    mat = jnp.asarray(m.reshape(C_in * H * W, C_out * Ho * Wo))
    bias = jnp.asarray(np.repeat(b, Ho * Wo).reshape(1, C_out * Ho * Wo))
    return mat, bias, (C_out, Ho, Wo)


# ---------------------------------------------------------------------------
# The single fused FusionModel kernel.  Everything stays in VMEM.
# ---------------------------------------------------------------------------
def _make_fusion_kernel(inv_n):
    def kernel(emb_ref, seg_ref, segT_ref, cut_ref, cell_ref,
               attw_ref, pwcut_ref, pwcell_ref, preb_ref,
               cw1_ref, cb1_ref, cw2_ref, cb2_ref, cw3_ref, cb3_ref,
               pw1a_ref, pw1c_ref, pb1_ref, pw2_ref, pb2_ref,
               out_ref):
        f32 = jnp.float32
        emb = emb_ref[...]            # (B*N, D)   batch folded into M
        seg = seg_ref[...]            # (B, B*N)   1.0 where row belongs to batch b
        segT = segT_ref[...]          # (B*N, B)

        # ---- AttentionModule ------------------------------------------------
        # ctx = emb @ W ; g_b = mean_n ctx ; t = tanh(g)
        ctx = jnp.dot(emb, attw_ref[...], preferred_element_type=f32)          # (B*N, D)
        g = jnp.dot(seg, ctx, preferred_element_type=f32) * inv_n              # (B, D)
        t = jnp.tanh(g)                                                        # (B, D)
        # scores_r = sigmoid(emb_r . t_{batch(r)})
        s_all = jax.lax.dot_general(emb, t, (((1,), (1,)), ((), ())),
                                    preferred_element_type=f32)                # (B*N, B)
        scores = jax.nn.sigmoid(
            jnp.sum(s_all * segT, axis=1, keepdims=True))                      # (B*N, 1)
        # rep_b = sum_n emb_{b,n} * scores_{b,n}
        rep = jnp.dot(seg, emb * scores, preferred_element_type=f32)           # (B, D)

        # ---- premlp (torch.cat folded into split weights) -------------------
        pre = (jnp.dot(cut_ref[...], pwcut_ref[...], preferred_element_type=f32)
               + jnp.dot(cell_ref[...], pwcell_ref[...], preferred_element_type=f32)
               + preb_ref[...])                                                # (B, F*F)

        # ---- CNN: each padded conv+bias+ReLU is ONE MXU matmul --------------
        # (Dropout = identity, inference mode.)
        h = jnp.maximum(
            jnp.dot(pre, cw1_ref[...], preferred_element_type=f32) + cb1_ref[...], 0.0)
        h = jnp.maximum(
            jnp.dot(h, cw2_ref[...], preferred_element_type=f32) + cb2_ref[...], 0.0)
        h = jnp.maximum(
            jnp.dot(h, cw3_ref[...], preferred_element_type=f32) + cb3_ref[...], 0.0)

        # ---- postmlp (concat [rep, cnn_flat] folded into split weights) -----
        hid = jnp.maximum(
            jnp.dot(rep, pw1a_ref[...], preferred_element_type=f32)
            + jnp.dot(h, pw1c_ref[...], preferred_element_type=f32)
            + pb1_ref[...], 0.0)                                               # (B, 2P)
        out_ref[...] = (jnp.dot(hid, pw2_ref[...], preferred_element_type=f32)
                        + pb2_ref[...])                                        # (B, 1)
    return kernel


def fusion_forward(params, node_features, cut_features, cell_features):
    B, N, D = node_features.shape
    emb = node_features.reshape(B * N, D)
    cut = cut_features.reshape(B, -1)
    cell = cell_features.reshape(B, -1)

    # Batch-block indicator matrices (host-side constants).
    seg_np = np.kron(np.eye(B, dtype=np.float32), np.ones((1, N), np.float32))
    seg = jnp.asarray(seg_np)          # (B, B*N)
    segT = jnp.asarray(seg_np.T)       # (B*N, B)

    inputs = (emb, seg, segT, cut, cell,
              params["att_w"], params["pre_w_cut"], params["pre_w_cell"], params["pre_b"],
              params["cw1"], params["cb1"], params["cw2"], params["cb2"],
              params["cw3"], params["cb3"],
              params["post_w1_att"], params["post_w1_cnn"], params["post_b1"],
              params["post_w2"], params["post_b2"])

    vmem = pl.BlockSpec(memory_space=pltpu.MemorySpace.VMEM)
    return pl.pallas_call(
        _make_fusion_kernel(1.0 / N),
        out_shape=jax.ShapeDtypeStruct((B, 1), jnp.float32),
        in_specs=[vmem] * len(inputs),
        out_specs=vmem,
    )(*inputs)


def hierarchical_attention_network_forward(params, node_emb, cut_emb, cell_emb):
    # TODO(synk): the original HAN.forward uses undefined attention models and a
    # mismatched FusionModel constructor; only the FusionModel path is realizable.
    return fusion_forward(params, node_emb, cut_emb, cell_emb)


# ---------------------------------------------------------------------------
# Parameter construction (raw weights + host-side folded conv matrices).
# ---------------------------------------------------------------------------
def init_params(key, D, Ccut, Ccell, F, P):
    ks = jax.random.split(key, 13)
    s = 0.1
    att_w = s * jax.random.normal(ks[0], (D, D), jnp.float32)
    pre_w = s * jax.random.normal(ks[1], (Ccut + Ccell, F * F), jnp.float32)
    pre_b = s * jax.random.normal(ks[2], (F * F,), jnp.float32)
    c1_w = s * jax.random.normal(ks[3], (3, 1, 4, 4), jnp.float32)
    c1_b = s * jax.random.normal(ks[4], (3,), jnp.float32)
    c2_w = s * jax.random.normal(ks[5], (4, 3, 4, 4), jnp.float32)
    c2_b = s * jax.random.normal(ks[6], (2 * 2,), jnp.float32)[:4] * 0 + \
        s * jax.random.normal(ks[6], (4,), jnp.float32)
    c3_w = s * jax.random.normal(ks[7], (2, 4, 4, 4), jnp.float32)
    c3_b = s * jax.random.normal(ks[8], (2,), jnp.float32)
    cnn_flat = 2 * (F - 3) * (F - 3)
    post_w1 = s * jax.random.normal(ks[9], (D + cnn_flat, 2 * P), jnp.float32)
    post_b1 = s * jax.random.normal(ks[10], (2 * P,), jnp.float32)
    post_w2 = s * jax.random.normal(ks[11], (2 * P, 1), jnp.float32)
    post_b2 = s * jax.random.normal(ks[12], (1,), jnp.float32)

    # Fold the three padded convolutions into dense matmul matrices (once).
    cw1, cb1, (_, H1, W1) = _conv_to_dense(c1_w, c1_b, F, F)
    cw2, cb2, (_, H2, W2) = _conv_to_dense(c2_w, c2_b, H1, W1)
    cw3, cb3, (C3, H3, W3) = _conv_to_dense(c3_w, c3_b, H2, W2)
    assert C3 * H3 * W3 == cnn_flat

    return {
        "fusion_dim": F,
        "att_w": att_w,
        "pre_w_cut": pre_w[:Ccut],
        "pre_w_cell": pre_w[Ccut:],
        "pre_b": pre_b.reshape(1, -1),
        "cw1": cw1, "cb1": cb1,
        "cw2": cw2, "cb2": cb2,
        "cw3": cw3, "cb3": cb3,
        "post_w1_att": post_w1[:D],
        "post_w1_cnn": post_w1[D:],
        "post_b1": post_b1.reshape(1, -1),
        "post_w2": post_w2,
        "post_b2": post_b2.reshape(1, 1),
        # raw conv weights kept only for the pure-JAX reference check
        "_raw": {"c1_w": c1_w, "c1_b": c1_b, "c2_w": c2_w, "c2_b": c2_b,
                 "c3_w": c3_w, "c3_b": c3_b},
    }


# ---------------------------------------------------------------------------
# Pure-JAX reference (mirrors the PyTorch FusionModel) for a parity check.
# ---------------------------------------------------------------------------
def _reference_forward(params, node_features, cut_features, cell_features):
    hp = jax.lax.Precision.HIGHEST
    raw = params["_raw"]
    F = params["fusion_dim"]
    B = node_features.shape[0]

    ctx = jnp.einsum("bnd,de->bne", node_features, params["att_w"], precision=hp)
    g = jnp.tanh(jnp.mean(ctx, axis=1, keepdims=True))                         # (B,1,D)
    scores = jax.nn.sigmoid(
        jnp.einsum("bnd,bkd->bnk", node_features, g, precision=hp))            # (B,N,1)
    rep = jnp.einsum("bnd,bnk->bdk", node_features, scores, precision=hp)[..., 0]

    fused = jnp.concatenate([cut_features, cell_features], axis=2)[:, 0, :]
    pre_w = jnp.concatenate([params["pre_w_cut"], params["pre_w_cell"]], axis=0)
    pre = jnp.dot(fused, pre_w, precision=hp) + params["pre_b"]
    x = pre.reshape(B, 1, F, F)

    def conv_relu(x, w, b):
        y = jax.lax.conv_general_dilated(
            x, w, window_strides=(1, 1), padding=((1, 1), (1, 1)),
            dimension_numbers=("NCHW", "OIHW", "NCHW"), precision=hp)
        return jax.nn.relu(y + b.reshape(1, -1, 1, 1))

    h = conv_relu(x, raw["c1_w"], raw["c1_b"])
    h = conv_relu(h, raw["c2_w"], raw["c2_b"])
    h = conv_relu(h, raw["c3_w"], raw["c3_b"])
    h = h.reshape(B, -1)

    emb_cat = jnp.concatenate([rep, h], axis=-1)
    w1 = jnp.concatenate([params["post_w1_att"], params["post_w1_cnn"]], axis=0)
    hid = jax.nn.relu(jnp.dot(emb_cat, w1, precision=hp) + params["post_b1"])
    return jnp.dot(hid, params["post_w2"], precision=hp) + params["post_b2"]


if __name__ == "__main__":
    key = jax.random.PRNGKey(0)
    B, N, D = 2, 8, 32          # batch, nodes, node_feature_dim
    Ccut, Ccell = 16, 16        # cut / cell feature dims
    F, P = 16, 32               # fusion_dim, postmlp_dim

    kx = jax.random.split(key, 4)
    node_emb = jax.random.normal(kx[0], (B, N, D), jnp.float32)
    cut_emb = jax.random.normal(kx[1], (B, 1, Ccut), jnp.float32)
    cell_emb = jax.random.normal(kx[2], (B, 1, Ccell), jnp.float32)

    params = init_params(kx[3], D, Ccut, Ccell, F, P)

    out = hierarchical_attention_network_forward(params, node_emb, cut_emb, cell_emb)
    out = jax.block_until_ready(out)
    assert out.shape == (B, 1), out.shape

    ref = jax.block_until_ready(
        _reference_forward(params, node_emb, cut_emb, cell_emb))
    max_err = float(np.max(np.abs(np.asarray(out) - np.asarray(ref))))
    assert np.allclose(np.asarray(out), np.asarray(ref), rtol=1e-2, atol=1e-2), max_err

    print("KERNEL_OK")
</pallas_src>

<mosaic_0001>
module attributes {stable_mosaic.version = 11 : i64} {
  func.func @kernel(%arg0: memref<16x32xf32, #tpu.memory_space<vmem>>, %arg1: memref<2x16xf32, #tpu.memory_space<vmem>>, %arg2: memref<16x2xf32, #tpu.memory_space<vmem>>, %arg3: memref<2x16xf32, #tpu.memory_space<vmem>>, %arg4: memref<2x16xf32, #tpu.memory_space<vmem>>, %arg5: memref<32x32xf32, #tpu.memory_space<vmem>>, %arg6: memref<16x256xf32, #tpu.memory_space<vmem>>, %arg7: memref<16x256xf32, #tpu.memory_space<vmem>>, %arg8: memref<1x256xf32, #tpu.memory_space<vmem>>, %arg9: memref<256x675xf32, #tpu.memory_space<vmem>>, %arg10: memref<1x675xf32, #tpu.memory_space<vmem>>, %arg11: memref<675x784xf32, #tpu.memory_space<vmem>>, %arg12: memref<1x784xf32, #tpu.memory_space<vmem>>, %arg13: memref<784x338xf32, #tpu.memory_space<vmem>>, %arg14: memref<1x338xf32, #tpu.memory_space<vmem>>, %arg15: memref<32x64xf32, #tpu.memory_space<vmem>>, %arg16: memref<338x64xf32, #tpu.memory_space<vmem>>, %arg17: memref<1x64xf32, #tpu.memory_space<vmem>>, %arg18: memref<64x1xf32, #tpu.memory_space<vmem>>, %arg19: memref<1x1xf32, #tpu.memory_space<vmem>>, %arg20: memref<2x1xf32, #tpu.memory_space<vmem>>) attributes {dimension_semantics = [], scalar_prefetch = 0 : i64, scratch_operands = 0 : i64, tpu.core_type = #tpu.core_type<tc>} {
    %c0 = arith.constant 0 : index
    %c0_0 = arith.constant 0 : index
    %0 = vector.load %arg0[%c0, %c0_0] : memref<16x32xf32, #tpu.memory_space<vmem>>, vector<16x32xf32>
    %c0_1 = arith.constant 0 : index
    %c0_2 = arith.constant 0 : index
    %1 = vector.load %arg1[%c0_1, %c0_2] : memref<2x16xf32, #tpu.memory_space<vmem>>, vector<2x16xf32>
    %c0_3 = arith.constant 0 : index
    %c0_4 = arith.constant 0 : index
    %2 = vector.load %arg2[%c0_3, %c0_4] : memref<16x2xf32, #tpu.memory_space<vmem>>, vector<16x2xf32>
    %c0_5 = arith.constant 0 : index
    %c0_6 = arith.constant 0 : index
    %3 = vector.load %arg5[%c0_5, %c0_6] : memref<32x32xf32, #tpu.memory_space<vmem>>, vector<32x32xf32>
    %cst = arith.constant dense<0.000000e+00> : vector<16x32xf32>
    %4 = tpu.matmul %0, %3, %cst {dimension_numbers = #tpu.dot_dimension_numbers<[1], [0], [0], [1], [0, 0, 1, 1], [], []>} : vector<16x32xf32>, vector<32x32xf32>, vector<16x32xf32> -> vector<16x32xf32>
    %cst_7 = arith.constant dense<0.000000e+00> : vector<2x32xf32>
    %5 = tpu.matmul %1, %4, %cst_7 {dimension_numbers = #tpu.dot_dimension_numbers<[1], [0], [0], [1], [0, 0, 1, 1], [], []>} : vector<2x16xf32>, vector<16x32xf32>, vector<2x32xf32> -> vector<2x32xf32>
    %cst_8 = arith.constant 1.250000e-01 : f32
    %6 = vector.broadcast %cst_8 : f32 to vector<2x32xf32>
    %7 = arith.mulf %5, %6 : vector<2x32xf32>
    %8 = math.tanh %7 : vector<2x32xf32>
    %cst_9 = arith.constant dense<0.000000e+00> : vector<16x2xf32>
    %9 = tpu.matmul %0, %8, %cst_9 {dimension_numbers = #tpu.dot_dimension_numbers<[1], [1], [0], [0], [0, 0, 1, 0], [], []>} : vector<16x32xf32>, vector<2x32xf32>, vector<16x2xf32> -> vector<16x2xf32>
    %10 = arith.mulf %9, %2 : vector<16x2xf32>
    %cst_10 = arith.constant dense<0.000000e+00> : vector<16xf32>
    %11 = vector.multi_reduction <add>, %10, %cst_10 [1] : vector<16x2xf32> to vector<16xf32>
    %12 = vector.shape_cast %11 : vector<16xf32> to vector<16x1xf32>
    %13 = arith.negf %12 : vector<16x1xf32>
    %14 = math.exp %13 : vector<16x1xf32>
    %cst_11 = arith.constant 1.000000e+00 : f32
    %15 = vector.broadcast %cst_11 : f32 to vector<16x1xf32>
    %16 = arith.addf %15, %14 : vector<16x1xf32>
    %17 = arith.divf %15, %16 : vector<16x1xf32>
    %18 = vector.broadcast %17 : vector<16x1xf32> to vector<16x32xf32>
    %19 = arith.mulf %0, %18 : vector<16x32xf32>
    %cst_12 = arith.constant dense<0.000000e+00> : vector<2x32xf32>
    %20 = tpu.matmul %1, %19, %cst_12 {dimension_numbers = #tpu.dot_dimension_numbers<[1], [0], [0], [1], [0, 0, 1, 1], [], []>} : vector<2x16xf32>, vector<16x32xf32>, vector<2x32xf32> -> vector<2x32xf32>
    %c0_13 = arith.constant 0 : index
    %c0_14 = arith.constant 0 : index
    %21 = vector.load %arg3[%c0_13, %c0_14] : memref<2x16xf32, #tpu.memory_space<vmem>>, vector<2x16xf32>
    %c0_15 = arith.constant 0 : index
    %c0_16 = arith.constant 0 : index
    %22 = vector.load %arg6[%c0_15, %c0_16] : memref<16x256xf32, #tpu.memory_space<vmem>>, vector<16x256xf32>
    %cst_17 = arith.constant dense<0.000000e+00> : vector<2x256xf32>
    %23 = tpu.matmul %21, %22, %cst_17 {dimension_numbers = #tpu.dot_dimension_numbers<[1], [0], [0], [1], [0, 0, 1, 1], [], []>} : vector<2x16xf32>, vector<16x256xf32>, vector<2x256xf32> -> vector<2x256xf32>
    %c0_18 = arith.constant 0 : index
    %c0_19 = arith.constant 0 : index
    %24 = vector.load %arg4[%c0_18, %c0_19] : memref<2x16xf32, #tpu.memory_space<vmem>>, vector<2x16xf32>
    %c0_20 = arith.constant 0 : index
    %c0_21 = arith.constant 0 : index
    %25 = vector.load %arg7[%c0_20, %c0_21] : memref<16x256xf32, #tpu.memory_space<vmem>>, vector<16x256xf32>
    %cst_22 = arith.constant dense<0.000000e+00> : vector<2x256xf32>
    %26 = tpu.matmul %24, %25, %cst_22 {dimension_numbers = #tpu.dot_dimension_numbers<[1], [0], [0], [1], [0, 0, 1, 1], [], []>} : vector<2x16xf32>, vector<16x256xf32>, vector<2x256xf32> -> vector<2x256xf32>
    %27 = arith.addf %23, %26 : vector<2x256xf32>
    %c0_23 = arith.constant 0 : index
    %c0_24 = arith.constant 0 : index
    %28 = vector.load %arg8[%c0_23, %c0_24] : memref<1x256xf32, #tpu.memory_space<vmem>>, vector<1x256xf32>
    %29 = vector.broadcast %28 : vector<1x256xf32> to vector<2x256xf32>
    %30 = arith.addf %27, %29 : vector<2x256xf32>
    %c0_25 = arith.constant 0 : index
    %c0_26 = arith.constant 0 : index
    %31 = vector.load %arg9[%c0_25, %c0_26] : memref<256x675xf32, #tpu.memory_space<vmem>>, vector<256x675xf32>
    %cst_27 = arith.constant dense<0.000000e+00> : vector<2x675xf32>
    %32 = tpu.matmul %30, %31, %cst_27 {dimension_numbers = #tpu.dot_dimension_numbers<[1], [0], [0], [1], [0, 0, 1, 1], [], []>} : vector<2x256xf32>, vector<256x675xf32>, vector<2x675xf32> -> vector<2x675xf32>
    %c0_28 = arith.constant 0 : index
    %c0_29 = arith.constant 0 : index
    %33 = vector.load %arg10[%c0_28, %c0_29] : memref<1x675xf32, #tpu.memory_space<vmem>>, vector<1x675xf32>
    %34 = vector.broadcast %33 : vector<1x675xf32> to vector<2x675xf32>
    %35 = arith.addf %32, %34 : vector<2x675xf32>
    %cst_30 = arith.constant 0.000000e+00 : f32
    %36 = vector.broadcast %cst_30 : f32 to vector<2x675xf32>
    %37 = arith.maximumf %35, %36 : vector<2x675xf32>
    %c0_31 = arith.constant 0 : index
    %c0_32 = arith.constant 0 : index
    %38 = vector.load %arg11[%c0_31, %c0_32] : memref<675x784xf32, #tpu.memory_space<vmem>>, vector<675x784xf32>
    %cst_33 = arith.constant dense<0.000000e+00> : vector<2x784xf32>
    %39 = tpu.matmul %37, %38, %cst_33 {dimension_numbers = #tpu.dot_dimension_numbers<[1], [0], [0], [1], [0, 0, 1, 1], [], []>} : vector<2x675xf32>, vector<675x784xf32>, vector<2x784xf32> -> vector<2x784xf32>
    %c0_34 = arith.constant 0 : index
    %c0_35 = arith.constant 0 : index
    %40 = vector.load %arg12[%c0_34, %c0_35] : memref<1x784xf32, #tpu.memory_space<vmem>>, vector<1x784xf32>
    %41 = vector.broadcast %40 : vector<1x784xf32> to vector<2x784xf32>
    %42 = arith.addf %39, %41 : vector<2x784xf32>
    %cst_36 = arith.constant 0.000000e+00 : f32
    %43 = vector.broadcast %cst_36 : f32 to vector<2x784xf32>
    %44 = arith.maximumf %42, %43 : vector<2x784xf32>
    %c0_37 = arith.constant 0 : index
    %c0_38 = arith.constant 0 : index
    %45 = vector.load %arg13[%c0_37, %c0_38] : memref<784x338xf32, #tpu.memory_space<vmem>>, vector<784x338xf32>
    %cst_39 = arith.constant dense<0.000000e+00> : vector<2x338xf32>
    %46 = tpu.matmul %44, %45, %cst_39 {dimension_numbers = #tpu.dot_dimension_numbers<[1], [0], [0], [1], [0, 0, 1, 1], [], []>} : vector<2x784xf32>, vector<784x338xf32>, vector<2x338xf32> -> vector<2x338xf32>
    %c0_40 = arith.constant 0 : index
    %c0_41 = arith.constant 0 : index
    %47 = vector.load %arg14[%c0_40, %c0_41] : memref<1x338xf32, #tpu.memory_space<vmem>>, vector<1x338xf32>
    %48 = vector.broadcast %47 : vector<1x338xf32> to vector<2x338xf32>
    %49 = arith.addf %46, %48 : vector<2x338xf32>
    %cst_42 = arith.constant 0.000000e+00 : f32
    %50 = vector.broadcast %cst_42 : f32 to vector<2x338xf32>
    %51 = arith.maximumf %49, %50 : vector<2x338xf32>
    %c0_43 = arith.constant 0 : index
    %c0_44 = arith.constant 0 : index
    %52 = vector.load %arg15[%c0_43, %c0_44] : memref<32x64xf32, #tpu.memory_space<vmem>>, vector<32x64xf32>
    %cst_45 = arith.constant dense<0.000000e+00> : vector<2x64xf32>
    %53 = tpu.matmul %20, %52, %cst_45 {dimension_numbers = #tpu.dot_dimension_numbers<[1], [0], [0], [1], [0, 0, 1, 1], [], []>} : vector<2x32xf32>, vector<32x64xf32>, vector<2x64xf32> -> vector<2x64xf32>
    %c0_46 = arith.constant 0 : index
    %c0_47 = arith.constant 0 : index
    %54 = vector.load %arg16[%c0_46, %c0_47] : memref<338x64xf32, #tpu.memory_space<vmem>>, vector<338x64xf32>
    %cst_48 = arith.constant dense<0.000000e+00> : vector<2x64xf32>
    %55 = tpu.matmul %51, %54, %cst_48 {dimension_numbers = #tpu.dot_dimension_numbers<[1], [0], [0], [1], [0, 0, 1, 1], [], []>} : vector<2x338xf32>, vector<338x64xf32>, vector<2x64xf32> -> vector<2x64xf32>
    %56 = arith.addf %53, %55 : vector<2x64xf32>
    %c0_49 = arith.constant 0 : index
    %c0_50 = arith.constant 0 : index
    %57 = vector.load %arg17[%c0_49, %c0_50] : memref<1x64xf32, #tpu.memory_space<vmem>>, vector<1x64xf32>
    %58 = vector.broadcast %57 : vector<1x64xf32> to vector<2x64xf32>
    %59 = arith.addf %56, %58 : vector<2x64xf32>
    %cst_51 = arith.constant 0.000000e+00 : f32
    %60 = vector.broadcast %cst_51 : f32 to vector<2x64xf32>
    %61 = arith.maximumf %59, %60 : vector<2x64xf32>
    %c0_52 = arith.constant 0 : index
    %c0_53 = arith.constant 0 : index
    %62 = vector.load %arg18[%c0_52, %c0_53] : memref<64x1xf32, #tpu.memory_space<vmem>>, vector<64x1xf32>
    %cst_54 = arith.constant dense<0.000000e+00> : vector<2x1xf32>
    %63 = tpu.matmul %61, %62, %cst_54 {dimension_numbers = #tpu.dot_dimension_numbers<[1], [0], [0], [1], [0, 0, 1, 1], [], []>} : vector<2x64xf32>, vector<64x1xf32>, vector<2x1xf32> -> vector<2x1xf32>
    %c0_55 = arith.constant 0 : index
    %c0_56 = arith.constant 0 : index
    %64 = vector.load %arg19[%c0_55, %c0_56] : memref<1x1xf32, #tpu.memory_space<vmem>>, vector<1x1xf32>
    %65 = vector.broadcast %64 : vector<1x1xf32> to vector<2x1xf32>
    %66 = arith.addf %63, %65 : vector<2x1xf32>
    %c0_57 = arith.constant 0 : index
    %c0_58 = arith.constant 0 : index
    %67 = vector.load %arg20[%c0_57, %c0_58] : memref<2x1xf32, #tpu.memory_space<vmem>>, vector<2x1xf32>
    tpu.vector_store %arg20[%c0_57, %c0_58], %66 {strides = array<i32>} : memref<2x1xf32, #tpu.memory_space<vmem>>, vector<2x1xf32>,
    return
  }
}

</mosaic_0001>

<llo_original>
// kernel: tpu_custom_call.1
$region0: #{tpu_custom_call.1}
  #allocation0 [shape = 'u32[]', space=smem, size = 0x4, offset = 0x4, fixed_abs, tag = 'smem constant byte address 0x4 - core index']
  #allocation1 [shape = 'u32[72,128]{1,0:T(1,128)}', space=vmem, size = 0x9000, scoped, tag = 'internal scratch']
  #allocation2 [shape = 'f32[1,1]{1,0:T(1,128)S(1)}', space=vmem, size = 0x200, scoped, tag = 'scoped memory for tpu_custom_call.1']
  %s0 = inlined_call_operand.vmem [shape: f32[16,32], index: 0, kind: input, shape index: {}]
  %s1 = inlined_call_operand.vmem [shape: f32[2,16], index: 1, kind: input, shape index: {}]
  %s2 = inlined_call_operand.vmem [shape: f32[16,2], index: 2, kind: input, shape index: {}]
  %s3 = inlined_call_operand.vmem [shape: f32[2,16], index: 3, kind: input, shape index: {}]
  %s4 = inlined_call_operand.vmem [shape: f32[2,16], index: 4, kind: input, shape index: {}]
  %s5 = inlined_call_operand.vmem [shape: f32[32,32], index: 5, kind: input, shape index: {}]
  %s6 = inlined_call_operand.vmem [shape: f32[16,256], index: 6, kind: input, shape index: {}]
  %s7 = inlined_call_operand.vmem [shape: f32[16,256], index: 7, kind: input, shape index: {}]
  %s8 = inlined_call_operand.vmem [shape: f32[1,256], index: 8, kind: input, shape index: {}]
  %s9 = inlined_call_operand.vmem [shape: f32[256,675], index: 9, kind: input, shape index: {}]
  %s10 = inlined_call_operand.vmem [shape: f32[1,675], index: 10, kind: input, shape index: {}]
  %s11 = inlined_call_operand.vmem [shape: f32[675,784], index: 11, kind: input, shape index: {}]
  %s12 = inlined_call_operand.vmem [shape: f32[1,784], index: 12, kind: input, shape index: {}]
  %s13 = inlined_call_operand.vmem [shape: f32[784,338], index: 13, kind: input, shape index: {}]
  %s14 = inlined_call_operand.vmem [shape: f32[1,338], index: 14, kind: input, shape index: {}]
  %s15 = inlined_call_operand.vmem [shape: f32[32,64], index: 15, kind: input, shape index: {}]
  %s16 = inlined_call_operand.vmem [shape: f32[338,64], index: 16, kind: input, shape index: {}]
  %s17 = inlined_call_operand.vmem [shape: f32[1,64], index: 17, kind: input, shape index: {}]
  %s18 = inlined_call_operand.vmem [shape: f32[64,1], index: 18, kind: input, shape index: {}]
  %s19 = inlined_call_operand.<no memory space> [shape: f32[1,1], index: 19, kind: input, shape index: {}]
  %s20 = inlined_call_operand.vmem [shape: f32[2,1], index: 20, kind: output, shape index: {}]
  %s21 = sld [smem:[#allocation0]]
  $region90: #{tpu_custom_call.1} parent=0
    _
  %s23 = ssub.s32 1, %s21
  %s24 = scalar_select 0, %s23, %s21
  %v25 = vstv %s19
  %26 = vst [vmem:[#allocation2] sm:$0x1] %v25
  // Predicated region
  $region2: #{tpu_custom_call.1} parent=0 // pred_check
    _
  $region3: #{tpu_custom_call.1} parent=0 // pred_check_branch
    %28 = sbr.rel (0) target = $region5
  $region4: #{tpu_custom_call.1} parent=0 // pred_region
    _
  $region5: #{tpu_custom_call.1} parent=0 // pred_fallthru
    _
  // Predicated region
  $region6: #{tpu_custom_call.1} parent=0 // pred_check
    _
  $region7: #{tpu_custom_call.1} parent=0 // pred_check_branch
    %30 = sbr.rel (0) target = $region9
  $region8: #{tpu_custom_call.1} parent=0 // pred_region
    _
  $region9: #{tpu_custom_call.1} parent=0 // pred_fallthru
    _
  // Predicated region
  $region10: #{tpu_custom_call.1} parent=0 // pred_check
    _
  $region11: #{tpu_custom_call.1} parent=0 // pred_check_branch
    %32 = sbr.rel (0) target = $region13
  $region12: #{tpu_custom_call.1} parent=0 // pred_region
    _
  $region13: #{tpu_custom_call.1} parent=0 // pred_fallthru
    _
  // Predicated region
  $region14: #{tpu_custom_call.1} parent=0 // pred_check
    _
  $region15: #{tpu_custom_call.1} parent=0 // pred_check_branch
    %34 = sbr.rel (0) target = $region17
  $region16: #{tpu_custom_call.1} parent=0 // pred_region
    _
  $region17: #{tpu_custom_call.1} parent=0 // pred_fallthru
    _
  // Predicated region
  $region18: #{tpu_custom_call.1} parent=0 // pred_check
    _
  $region19: #{tpu_custom_call.1} parent=0 // pred_check_branch
    %36 = sbr.rel (0) target = $region21
  $region20: #{tpu_custom_call.1} parent=0 // pred_region
    _
  $region21: #{tpu_custom_call.1} parent=0 // pred_fallthru
    _
  // Predicated region
  $region22: #{tpu_custom_call.1} parent=0 // pred_check
    _
  $region23: #{tpu_custom_call.1} parent=0 // pred_check_branch
    %38 = sbr.rel (0) target = $region25
  $region24: #{tpu_custom_call.1} parent=0 // pred_region
    _
  $region25: #{tpu_custom_call.1} parent=0 // pred_fallthru
    _
  // Predicated region
  $region26: #{tpu_custom_call.1} parent=0 // pred_check
    _
  $region27: #{tpu_custom_call.1} parent=0 // pred_check_branch
    %40 = sbr.rel (0) target = $region29
  $region28: #{tpu_custom_call.1} parent=0 // pred_region
    _
  $region29: #{tpu_custom_call.1} parent=0 // pred_fallthru
    _
  // Predicated region
  $region30: #{tpu_custom_call.1} parent=0 // pred_check
    _
  $region31: #{tpu_custom_call.1} parent=0 // pred_check_branch
    %42 = sbr.rel (0) target = $region33
  $region32: #{tpu_custom_call.1} parent=0 // pred_region
    _
  $region33: #{tpu_custom_call.1} parent=0 // pred_fallthru
    _
  // Predicated region
  $region34: #{tpu_custom_call.1} parent=0 // pred_check
    _
  $region35: #{tpu_custom_call.1} parent=0 // pred_check_branch
    %44 = sbr.rel (0) target = $region37
  $region36: #{tpu_custom_call.1} parent=0 // pred_region
    _
  $region37: #{tpu_custom_call.1} parent=0 // pred_fallthru
    _
  // Predicated region
  $region38: #{tpu_custom_call.1} parent=0 // pred_check
    _
  $region39: #{tpu_custom_call.1} parent=0 // pred_check_branch
    %46 = sbr.rel (0) target = $region41
  $region40: #{tpu_custom_call.1} parent=0 // pred_region
    _
  $region41: #{tpu_custom_call.1} parent=0 // pred_fallthru
    _
  // Predicated region
  $region42: #{tpu_custom_call.1} parent=0 // pred_check
    _
  $region43: #{tpu_custom_call.1} parent=0 // pred_check_branch
    %48 = sbr.rel (0) target = $region45
  $region44: #{tpu_custom_call.1} parent=0 // pred_region
    _
  $region45: #{tpu_custom_call.1} parent=0 // pred_fallthru
    _
  // Predicated region
  $region46: #{tpu_custom_call.1} parent=0 // pred_check
    _
  $region47: #{tpu_custom_call.1} parent=0 // pred_check_branch
    %50 = sbr.rel (0) target = $region49
  $region48: #{tpu_custom_call.1} parent=0 // pred_region
    _
  $region49: #{tpu_custom_call.1} parent=0 // pred_fallthru
    _
  // Predicated region
  $region50: #{tpu_custom_call.1} parent=0 // pred_check
    _
  $region51: #{tpu_custom_call.1} parent=0 // pred_check_branch
    %52 = sbr.rel (0) target = $region53
  $region52: #{tpu_custom_call.1} parent=0 // pred_region
    _
  $region53: #{tpu_custom_call.1} parent=0 // pred_fallthru
    _
  // Predicated region
  $region54: #{tpu_custom_call.1} parent=0 // pred_check
    _
  $region55: #{tpu_custom_call.1} parent=0 // pred_check_branch
    %54 = sbr.rel (0) target = $region57
  $region56: #{tpu_custom_call.1} parent=0 // pred_region
    _
  $region57: #{tpu_custom_call.1} parent=0 // pred_fallthru
    _
  // Predicated region
  $region58: #{tpu_custom_call.1} parent=0 // pred_check
    _
  $region59: #{tpu_custom_call.1} parent=0 // pred_check_branch
    %56 = sbr.rel (0) target = $region61
  $region60: #{tpu_custom_call.1} parent=0 // pred_region
    _
  $region61: #{tpu_custom_call.1} parent=0 // pred_fallthru
    _
  // Predicated region
  $region62: #{tpu_custom_call.1} parent=0 // pred_check
    _
  $region63: #{tpu_custom_call.1} parent=0 // pred_check_branch
    %58 = sbr.rel (0) target = $region65
  $region64: #{tpu_custom_call.1} parent=0 // pred_region
    _
  $region65: #{tpu_custom_call.1} parent=0 // pred_fallthru
    _
  // Predicated region
  $region66: #{tpu_custom_call.1} parent=0 // pred_check
    _
  $region67: #{tpu_custom_call.1} parent=0 // pred_check_branch
    %60 = sbr.rel (0) target = $region69
  $region68: #{tpu_custom_call.1} parent=0 // pred_region
    _
  $region69: #{tpu_custom_call.1} parent=0 // pred_fallthru
    _
  // Predicated region
  $region70: #{tpu_custom_call.1} parent=0 // pred_check
    _
  $region71: #{tpu_custom_call.1} parent=0 // pred_check_branch
    %62 = sbr.rel (0) target = $region73
  $region72: #{tpu_custom_call.1} parent=0 // pred_region
    _
  $region73: #{tpu_custom_call.1} parent=0 // pred_fallthru
    _
  // Predicated region
  $region74: #{tpu_custom_call.1} parent=0 // pred_check
    _
  $region75: #{tpu_custom_call.1} parent=0 // pred_check_branch
    %64 = sbr.rel (0) target = $region77
  $region76: #{tpu_custom_call.1} parent=0 // pred_region
    _
  $region77: #{tpu_custom_call.1} parent=0 // pred_fallthru
    _
  // Predicated region
  $region78: #{tpu_custom_call.1} parent=0 // pred_check
    _
  $region79: #{tpu_custom_call.1} parent=0 // pred_check_branch
    %66 = sbr.rel (0) target = $region81
  $region80: #{tpu_custom_call.1} parent=0 // pred_region
    _
  $region81: #{tpu_custom_call.1} parent=0 // pred_fallthru
    _
  %v67 = vld [vmem:[%s0] sm:$0xff]
  %v68 = vld [vmem:[%s0 + $0x8] sm:$0xff]
  %v69 = vld [vmem:[%s1] sm:$0x3]
  %v70 = vld [vmem:[%s2] sm:$0xff]
  %v71 = vld [vmem:[%s2 + $0x8] sm:$0xff]
  %v72 = vld [vmem:[%s5] sm:$0xff]
  %v73 = vld [vmem:[%s5 + $0x8] sm:$0xff]
  %v74 = vld [vmem:[%s5 + $0x10] sm:$0xff]
  %v75 = vld [vmem:[%s5 + $0x18] sm:$0xff]
  %vm76 = vcmask 261120
  %v78 = vsel %vm76, %v67, 0
  %v81 = vsel %vm76, %v68, 0
  %83 = vmatpush.msra.mxu0 0.0
  %84 = vmatpush.msra.mxu0 0.0
  %85 = vmatpush.msra.mxu0 0.0
  %86 = vmatpush.msra.mxu0 0.0
  %87 = vmatpush.msra.mxu0 0.0
  %88 = vmatpush.msra.mxu0 0.0
  %89 = vmatpush.msra.mxu0 0.0
  %90 = vmatpush.msra.mxu0 0.0
  %91 = vmatpush.msra.mxu0 0.0
  %92 = vmatpush.msra.mxu0 0.0
  %93 = vmatpush.msra.mxu0 0.0
  %94 = vmatpush.msra.mxu0 0.0
  %95 = vmatpush.msra.mxu0 %v75
  %96 = vmatpush.msra.mxu0 %v74
  %97 = vmatpush.msra.mxu0 %v73
  %98 = vmatpush.msra.mxu0 %v72
  %99 = vmatmul.f32.gmra.mxu0 %v78
  %v100 = vpop.f32.mrf.mxu0
  %v101 = vadd.f32 0.0, %v100
  %102 = vmatmul.f32.gmra.mxu0 %v81
  %v103 = vpop.f32.mrf.mxu0
  %v104 = vadd.f32 0.0, %v103
  %105 = vdwg.mxu0
  %vm106 = vcmask 130048
  %v108 = vsel %vm106, %v69, 0
  %110 = vmatpush.msra.mxu0 0.0
  %111 = vmatpush.msra.mxu0 0.0
  %112 = vmatpush.msra.mxu0 0.0
  %113 = vmatpush.msra.mxu0 0.0
  %114 = vmatpush.msra.mxu0 0.0
  %115 = vmatpush.msra.mxu0 0.0
  %116 = vmatpush.msra.mxu0 0.0
  %117 = vmatpush.msra.mxu0 0.0
  %118 = vmatpush.msra.mxu0 0.0
  %119 = vmatpush.msra.mxu0 0.0
  %120 = vmatpush.msra.mxu0 0.0
  %121 = vmatpush.msra.mxu0 0.0
  %122 = vmatpush.msra.mxu0 0.0
  %123 = vmatpush.msra.mxu0 0.0
  %124 = vmatpush.msra.mxu0 %v104
  %125 = vmatpush.msra.mxu0 %v101
  %126 = vmatmul.f32.gmra.mxu0 %v108
  %v127 = vpop.f32.mrf.mxu0
  %v128 = vadd.f32 0.0, %v127
  %129 = vdwg.mxu0
  %v130 = vmul.f32 %v128, 0.125
  %v131 = vtanh.pop %v130
  %v133 = vsel %vm76, %v131, 0
  %135 = vmatpush.xpose.msra.mxu0 0.0
  %136 = vmatpush.xpose.msra.mxu0 0.0
  %137 = vmatpush.xpose.msra.mxu0 0.0
  %138 = vmatpush.xpose.msra.mxu0 0.0
  %139 = vmatpush.xpose.msra.mxu0 0.0
  %140 = vmatpush.xpose.msra.mxu0 0.0
  %141 = vmatpush.xpose.msra.mxu0 0.0
  %142 = vmatpush.xpose.msra.mxu0 0.0
  %143 = vmatpush.xpose.msra.mxu0 0.0
  %144 = vmatpush.xpose.msra.mxu0 0.0
  %145 = vmatpush.xpose.msra.mxu0 0.0
  %146 = vmatpush.xpose.msra.mxu0 0.0
  %147 = vmatpush.xpose.msra.mxu0 0.0
  %148 = vmatpush.xpose.msra.mxu0 0.0
  %149 = vmatpush.xpose.msra.mxu0 0.0
  %150 = vmatpush.xpose.msra.mxu0 %v133
  %151 = vmatmul.f32.gmra.mxu0 %v78
  %v152 = vpop.f32.mrf.mxu0
  %v153 = vadd.f32 0.0, %v152
  %154 = vmatmul.f32.gmra.mxu0 %v81
  %v155 = vpop.f32.mrf.mxu0
  %v156 = vadd.f32 0.0, %v155
  %157 = vdwg.mxu0
  %v158 = vmul.f32 %v153, %v70
  %v159 = vmul.f32 %v156, %v71
  %vm160 = vcmask 15360
  %v161 = vsel %vm160, %v158, 0.0
  %162 = vadd.xlane.f32.xlu0 %v161
  %v163 = vpop.xlane.xlu0 %162
  %v164 = vsel %vm160, %v159, 0.0
  %165 = vadd.xlane.f32.xlu0 %v164
  %v166 = vpop.xlane.xlu0 %165
  %v167 = vxor.u32 %v163, 2147483648
  %v168 = vxor.u32 %v166, 2147483648
  %v169 = vmul.f32 %v167, 1.442695
  %v170 = vpow.pop %v169
  %v171 = vmul.f32 %v168, 1.442695
  %v172 = vpow.pop %v171
  %v173 = vadd.f32 %v170, 1.0
  %v174 = vadd.f32 %v172, 1.0
  %v175 = vrcp.pop %v173
  %v176 = vmul.f32 %v173, %v175
  %v177 = vsub.f32 1.0, %v176
  %v178 = vmul.f32 %v175, %v177
  %v179 = vadd.f32 %v175, %v178
  %vm180 = vweird.f32 %v173
  %vm181 = vweird.f32 %v175
  %vm182 = vmor %vm180, %vm181
  %v183 = vsel %vm182, %v175, %v179
  %v184 = vand.u32 2147483647, %v173
  %vm185 = vcmp.eq.f32.partialorder %v184, 8.507059e+37
  %v186 = vand.u32 %v173, 2147483648
  %v187 = vor.u32 1.1754944e-38, %v186
  %v188 = vsel %vm185, %v187, %v183
  %v189 = vmul.f32 1.0, %v188
  %v190 = vrcp.pop %v174
  %v191 = vmul.f32 %v174, %v190
  %v192 = vsub.f32 1.0, %v191
  %v193 = vmul.f32 %v190, %v192
  %v194 = vadd.f32 %v190, %v193
  %vm195 = vweird.f32 %v174
  %vm196 = vweird.f32 %v190
  %vm197 = vmor %vm195, %vm196
  %v198 = vsel %vm197, %v190, %v194
  %v199 = vand.u32 2147483647, %v174
  %vm200 = vcmp.eq.f32.partialorder %v199, 8.507059e+37
  %v201 = vand.u32 %v174, 2147483648
  %v202 = vor.u32 1.1754944e-38, %v201
  %v203 = vsel %vm200, %v202, %v198
  %v204 = vmul.f32 1.0, %v203
  %v205 = vmul.f32 %v67, %v189
  %v206 = vmul.f32 %v68, %v204
  %207 = vmatpush.msra.mxu0 0.0
  %208 = vmatpush.msra.mxu0 0.0
  %209 = vmatpush.msra.mxu0 0.0
  %210 = vmatpush.msra.mxu0 0.0
  %211 = vmatpush.msra.mxu0 0.0
  %212 = vmatpush.msra.mxu0 0.0
  %213 = vmatpush.msra.mxu0 0.0
  %214 = vmatpush.msra.mxu0 0.0
  %215 = vmatpush.msra.mxu0 0.0
  %216 = vmatpush.msra.mxu0 0.0
  %217 = vmatpush.msra.mxu0 0.0
  %218 = vmatpush.msra.mxu0 0.0
  %219 = vmatpush.msra.mxu0 0.0
  %220 = vmatpush.msra.mxu0 0.0
  %221 = vmatpush.msra.mxu0 %v206
  %222 = vmatpush.msra.mxu0 %v205
  %223 = vmatmul.f32.gmra.mxu0 %v108
  %v224 = vpop.f32.mrf.mxu0
  %v225 = vadd.f32 0.0, %v224
  %226 = vdwg.mxu0
  %v227 = vld [vmem:[%s3] sm:$0x3]
  %v228 = vld [vmem:[%s6] sm:$0xff]
  %v229 = vld [vmem:[%s6 + $0x8] sm:$0xff]
  %v230 = vld [vmem:[%s6 + $0x10] sm:$0xff]
  %v231 = vld [vmem:[%s6 + $0x18] sm:$0xff]
  %v232 = vld [vmem:[%s4] sm:$0x3]
  %v233 = vld [vmem:[%s7] sm:$0xff]
  %v234 = vld [vmem:[%s7 + $0x8] sm:$0xff]
  %v235 = vld [vmem:[%s7 + $0x10] sm:$0xff]
  %v236 = vld [vmem:[%s7 + $0x18] sm:$0xff]
  %v238 = vsel %vm106, %v232, 0
  %240 = vmatpush.msra.mxu0 0.0
  %241 = vmatpush.msra.mxu0 0.0
  %242 = vmatpush.msra.mxu0 0.0
  %243 = vmatpush.msra.mxu0 0.0
  %244 = vmatpush.msra.mxu0 0.0
  %245 = vmatpush.msra.mxu0 0.0
  %246 = vmatpush.msra.mxu0 0.0
  %247 = vmatpush.msra.mxu0 0.0
  %248 = vmatpush.msra.mxu0 0.0
  %249 = vmatpush.msra.mxu0 0.0
  %250 = vmatpush.msra.mxu0 0.0
  %251 = vmatpush.msra.mxu0 0.0
  %252 = vmatpush.msra.mxu0 0.0
  %253 = vmatpush.msra.mxu0 0.0
  %254 = vmatpush.msra.mxu0 %v235
  %255 = vmatpush.msra.mxu0 %v233
  %256 = vmatmul.f32.gmra.mxu0 %v238
  %v257 = vpop.f32.mrf.mxu0
  %v258 = vadd.f32 0.0, %v257
  %259 = vdwg.mxu0
  %260 = vmatpush.msra.mxu0 0.0
  %261 = vmatpush.msra.mxu0 0.0
  %262 = vmatpush.msra.mxu0 0.0
  %263 = vmatpush.msra.mxu0 0.0
  %264 = vmatpush.msra.mxu0 0.0
  %265 = vmatpush.msra.mxu0 0.0
  %266 = vmatpush.msra.mxu0 0.0
  %267 = vmatpush.msra.mxu0 0.0
  %268 = vmatpush.msra.mxu0 0.0
  %269 = vmatpush.msra.mxu0 0.0
  %270 = vmatpush.msra.mxu0 0.0
  %271 = vmatpush.msra.mxu0 0.0
  %272 = vmatpush.msra.mxu0 0.0
  %273 = vmatpush.msra.mxu0 0.0
  %274 = vmatpush.msra.mxu0 %v236
  %275 = vmatpush.msra.mxu0 %v234
  %276 = vmatmul.f32.gmra.mxu0 %v238
  %v277 = vpop.f32.mrf.mxu0
  %v278 = vadd.f32 0.0, %v277
  %279 = vdwg.mxu0
  %v281 = vsel %vm106, %v227, 0
  %283 = vmatpush.msra.mxu0 0.0
  %284 = vmatpush.msra.mxu0 0.0
  %285 = vmatpush.msra.mxu0 0.0
  %286 = vmatpush.msra.mxu0 0.0
  %287 = vmatpush.msra.mxu0 0.0
  %288 = vmatpush.msra.mxu0 0.0
  %289 = vmatpush.msra.mxu0 0.0
  %290 = vmatpush.msra.mxu0 0.0
  %291 = vmatpush.msra.mxu0 0.0
  %292 = vmatpush.msra.mxu0 0.0
  %293 = vmatpush.msra.mxu0 0.0
  %294 = vmatpush.msra.mxu0 0.0
  %295 = vmatpush.msra.mxu0 0.0
  %296 = vmatpush.msra.mxu0 0.0
  %297 = vmatpush.msra.mxu0 %v230
  %298 = vmatpush.msra.mxu0 %v228
  %299 = vmatmul.f32.gmra.mxu0 %v281
  %v300 = vpop.f32.mrf.mxu0
  %v301 = vadd.f32 %v258, %v300
  %302 = vdwg.mxu0
  %303 = vmatpush.msra.mxu0 0.0
  %304 = vmatpush.msra.mxu0 0.0
  %305 = vmatpush.msra.mxu0 0.0
  %306 = vmatpush.msra.mxu0 0.0
  %307 = vmatpush.msra.mxu0 0.0
  %308 = vmatpush.msra.mxu0 0.0
  %309 = vmatpush.msra.mxu0 0.0
  %310 = vmatpush.msra.mxu0 0.0
  %311 = vmatpush.msra.mxu0 0.0
  %312 = vmatpush.msra.mxu0 0.0
  %313 = vmatpush.msra.mxu0 0.0
  %314 = vmatpush.msra.mxu0 0.0
  %315 = vmatpush.msra.mxu0 0.0
  %316 = vmatpush.msra.mxu0 0.0
  %317 = vmatpush.msra.mxu0 %v231
  %318 = vmatpush.msra.mxu0 %v229
  %319 = vmatmul.f32.gmra.mxu0 %v281
  %v320 = vpop.f32.mrf.mxu0
  %v321 = vadd.f32 %v278, %v320
  %322 = vdwg.mxu0
  %v323 = vld [vmem:[%s8] sm:$0x3]
  %v325 = vperm.slane %v323, 0
  %v326 = vperm.slane %v323, 1
  %v329 = vadd.f32 %v301, %v325
  %v330 = vadd.f32 %v321, %v326
  %v331 = vld [vmem:[%s9] sm:$0xff]
  %v332 = vld [vmem:[%s9 + $0x8] sm:$0xff]
  %v333 = vld [vmem:[%s9 + $0x10] sm:$0xff]
  %v334 = vld [vmem:[%s9 + $0x18] sm:$0xff]
  %v335 = vld [vmem:[%s9 + $0x20] sm:$0xff]
  %v336 = vld [vmem:[%s9 + $0x28] sm:$0xff]
  %v337 = vld [vmem:[%s9 + $0x30] sm:$0xff]
  %v338 = vld [vmem:[%s9 + $0x38] sm:$0xff]
  %v339 = vld [vmem:[%s9 + $0x40] sm:$0xff]
  %v340 = vld [vmem:[%s9 + $0x48] sm:$0xff]
  %v341 = vld [vmem:[%s9 + $0x50] sm:$0xff]
  %v342 = vld [vmem:[%s9 + $0x58] sm:$0xff]
  %v343 = vld [vmem:[%s9 + $0x60] sm:$0xff]
  %v344 = vld [vmem:[%s9 + $0x68] sm:$0xff]
  %v345 = vld [vmem:[%s9 + $0x70] sm:$0xff]
  %v346 = vld [vmem:[%s9 + $0x78] sm:$0xff]
  %v347 = vld [vmem:[%s9 + $0x80] sm:$0xff]
  %v348 = vld [vmem:[%s9 + $0x88] sm:$0xff]
  %v349 = vld [vmem:[%s9 + $0x90] sm:$0xff]
  %v350 = vld [vmem:[%s9 + $0x98] sm:$0xff]
  %v351 = vld [vmem:[%s9 + $0xa0] sm:$0xff]
  %v352 = vld [vmem:[%s9 + $0xa8] sm:$0xff]
  %v353 = vld [vmem:[%s9 + $0xb0] sm:$0xff]
  %v354 = vld [vmem:[%s9 + $0xb8] sm:$0xff]
  %v355 = vld [vmem:[%s9 + $0xc0] sm:$0xff]
  %v356 = vld [vmem:[%s9 + $0xc8] sm:$0xff]
  %v357 = vld [vmem:[%s9 + $0xd0] sm:$0xff]
  %v358 = vld [vmem:[%s9 + $0xd8] sm:$0xff]
  %v359 = vld [vmem:[%s9 + $0xe0] sm:$0xff]
  %v360 = vld [vmem:[%s9 + $0xe8] sm:$0xff]
  %v361 = vld [vmem:[%s9 + $0xf0] sm:$0xff]
  %v362 = vld [vmem:[%s9 + $0xf8] sm:$0xff]
  %v363 = vld [vmem:[%s9 + $0x100] sm:$0xff]
  %v364 = vld [vmem:[%s9 + $0x108] sm:$0xff]
  %v365 = vld [vmem:[%s9 + $0x110] sm:$0xff]
  %v366 = vld [vmem:[%s9 + $0x118] sm:$0xff]
  %v367 = vld [vmem:[%s9 + $0x120] sm:$0xff]
  %v368 = vld [vmem:[%s9 + $0x128] sm:$0xff]
  %v369 = vld [vmem:[%s9 + $0x130] sm:$0xff]
  %v370 = vld [vmem:[%s9 + $0x138] sm:$0xff]
  %v371 = vld [vmem:[%s9 + $0x140] sm:$0xff]
  %v372 = vld [vmem:[%s9 + $0x148] sm:$0xff]
  %v373 = vld [vmem:[%s9 + $0x150] sm:$0xff]
  %v374 = vld [vmem:[%s9 + $0x158] sm:$0xff]
  %v375 = vld [vmem:[%s9 + $0x160] sm:$0xff]
  %v376 = vld [vmem:[%s9 + $0x168] sm:$0xff]
  %v377 = vld [vmem:[%s9 + $0x170] sm:$0xff]
  %v378 = vld [vmem:[%s9 + $0x178] sm:$0xff]
  %v379 = vld [vmem:[%s9 + $0x180] sm:$0xff]
  %v380 = vld [vmem:[%s9 + $0x188] sm:$0xff]
  %v381 = vld [vmem:[%s9 + $0x190] sm:$0xff]
  %v382 = vld [vmem:[%s9 + $0x198] sm:$0xff]
  %v383 = vld [vmem:[%s9 + $0x1a0] sm:$0xff]
  %v384 = vld [vmem:[%s9 + $0x1a8] sm:$0xff]
  %v385 = vld [vmem:[%s9 + $0x1b0] sm:$0xff]
  %v386 = vld [vmem:[%s9 + $0x1b8] sm:$0xff]
  %v387 = vld [vmem:[%s9 + $0x1c0] sm:$0xff]
  %v388 = vld [vmem:[%s9 + $0x1c8] sm:$0xff]
  %v389 = vld [vmem:[%s9 + $0x1d0] sm:$0xff]
  %v390 = vld [vmem:[%s9 + $0x1d8] sm:$0xff]
  %v391 = vld [vmem:[%s9 + $0x1e0] sm:$0xff]
  %v392 = vld [vmem:[%s9 + $0x1e8] sm:$0xff]
  %v393 = vld [vmem:[%s9 + $0x1f0] sm:$0xff]
  %v394 = vld [vmem:[%s9 + $0x1f8] sm:$0xff]
  %v395 = vld [vmem:[%s9 + $0x200] sm:$0xff]
  %v396 = vld [vmem:[%s9 + $0x208] sm:$0xff]
  %v397 = vld [vmem:[%s9 + $0x210] sm:$0xff]
  %v398 = vld [vmem:[%s9 + $0x218] sm:$0xff]
  %v399 = vld [vmem:[%s9 + $0x220] sm:$0xff]
  %v400 = vld [vmem:[%s9 + $0x228] sm:$0xff]
  %v401 = vld [vmem:[%s9 + $0x230] sm:$0xff]
  %v402 = vld [vmem:[%s9 + $0x238] sm:$0xff]
  %v403 = vld [vmem:[%s9 + $0x240] sm:$0xff]
  %v404 = vld [vmem:[%s9 + $0x248] sm:$0xff]
  %v405 = vld [vmem:[%s9 + $0x250] sm:$0xff]
  %v406 = vld [vmem:[%s9 + $0x258] sm:$0xff]
  %v407 = vld [vmem:[%s9 + $0x260] sm:$0xff]
  %v408 = vld [vmem:[%s9 + $0x268] sm:$0xff]
  %v409 = vld [vmem:[%s9 + $0x270] sm:$0xff]
  %v410 = vld [vmem:[%s9 + $0x278] sm:$0xff]
  %v411 = vld [vmem:[%s9 + $0x280] sm:$0xff]
  %v412 = vld [vmem:[%s9 + $0x288] sm:$0xff]
  %v413 = vld [vmem:[%s9 + $0x290] sm:$0xff]
  %v414 = vld [vmem:[%s9 + $0x298] sm:$0xff]
  %v415 = vld [vmem:[%s9 + $0x2a0] sm:$0xff]
  %v416 = vld [vmem:[%s9 + $0x2a8] sm:$0xff]
  %v417 = vld [vmem:[%s9 + $0x2b0] sm:$0xff]
  %v418 = vld [vmem:[%s9 + $0x2b8] sm:$0xff]
  %v419 = vld [vmem:[%s9 + $0x2c0] sm:$0xff]
  %v420 = vld [vmem:[%s9 + $0x2c8] sm:$0xff]
  %v421 = vld [vmem:[%s9 + $0x2d0] sm:$0xff]
  %v422 = vld [vmem:[%s9 + $0x2d8] sm:$0xff]
  %v423 = vld [vmem:[%s9 + $0x2e0] sm:$0xff]
  %v424 = vld [vmem:[%s9 + $0x2e8] sm:$0xff]
  %v425 = vld [vmem:[%s9 + $0x2f0] sm:$0xff]
  %v426 = vld [vmem:[%s9 + $0x2f8] sm:$0xff]
  %v427 = vld [vmem:[%s9 + $0x300] sm:$0xff]
  %v428 = vld [vmem:[%s9 + $0x308] sm:$0xff]
  %v429 = vld [vmem:[%s9 + $0x310] sm:$0xff]
  %v430 = vld [vmem:[%s9 + $0x318] sm:$0xff]
  %v431 = vld [vmem:[%s9 + $0x320] sm:$0xff]
  %v432 = vld [vmem:[%s9 + $0x328] sm:$0xff]
  %v433 = vld [vmem:[%s9 + $0x330] sm:$0xff]
  %v434 = vld [vmem:[%s9 + $0x338] sm:$0xff]
  %v435 = vld [vmem:[%s9 + $0x340] sm:$0xff]
  %v436 = vld [vmem:[%s9 + $0x348] sm:$0xff]
  %v437 = vld [vmem:[%s9 + $0x350] sm:$0xff]
  %v438 = vld [vmem:[%s9 + $0x358] sm:$0xff]
  %v439 = vld [vmem:[%s9 + $0x360] sm:$0xff]
  %v440 = vld [vmem:[%s9 + $0x368] sm:$0xff]
  %v441 = vld [vmem:[%s9 + $0x370] sm:$0xff]
  %v442 = vld [vmem:[%s9 + $0x378] sm:$0xff]
  %v443 = vld [vmem:[%s9 + $0x380] sm:$0xff]
  %v444 = vld [vmem:[%s9 + $0x388] sm:$0xff]
  %v445 = vld [vmem:[%s9 + $0x390] sm:$0xff]
  %v446 = vld [vmem:[%s9 + $0x398] sm:$0xff]
  %v447 = vld [vmem:[%s9 + $0x3a0] sm:$0xff]
  %v448 = vld [vmem:[%s9 + $0x3a8] sm:$0xff]
  %v449 = vld [vmem:[%s9 + $0x3b0] sm:$0xff]
  %v450 = vld [vmem:[%s9 + $0x3b8] sm:$0xff]
  %v451 = vld [vmem:[%s9 + $0x3c0] sm:$0xff]
  %v452 = vld [vmem:[%s9 + $0x3c8] sm:$0xff]
  %v453 = vld [vmem:[%s9 + $0x3d0] sm:$0xff]
  %v454 = vld [vmem:[%s9 + $0x3d8] sm:$0xff]
  %v455 = vld [vmem:[%s9 + $0x3e0] sm:$0xff]
  %v456 = vld [vmem:[%s9 + $0x3e8] sm:$0xff]
  %v457 = vld [vmem:[%s9 + $0x3f0] sm:$0xff]
  %v458 = vld [vmem:[%s9 + $0x3f8] sm:$0xff]
  %v459 = vld [vmem:[%s9 + $0x400] sm:$0xff]
  %v460 = vld [vmem:[%s9 + $0x408] sm:$0xff]
  %v461 = vld [vmem:[%s9 + $0x410] sm:$0xff]
  %v462 = vld [vmem:[%s9 + $0x418] sm:$0xff]
  %v463 = vld [vmem:[%s9 + $0x420] sm:$0xff]
  %v464 = vld [vmem:[%s9 + $0x428] sm:$0xff]
  %v465 = vld [vmem:[%s9 + $0x430] sm:$0xff]
  %v466 = vld [vmem:[%s9 + $0x438] sm:$0xff]
  %v467 = vld [vmem:[%s9 + $0x440] sm:$0xff]
  %v468 = vld [vmem:[%s9 + $0x448] sm:$0xff]
  %v469 = vld [vmem:[%s9 + $0x450] sm:$0xff]
  %v470 = vld [vmem:[%s9 + $0x458] sm:$0xff]
  %v471 = vld [vmem:[%s9 + $0x460] sm:$0xff]
  %v472 = vld [vmem:[%s9 + $0x468] sm:$0xff]
  %v473 = vld [vmem:[%s9 + $0x470] sm:$0xff]
  %v474 = vld [vmem:[%s9 + $0x478] sm:$0xff]
  %v475 = vld [vmem:[%s9 + $0x480] sm:$0xff]
  %v476 = vld [vmem:[%s9 + $0x488] sm:$0xff]
  %v477 = vld [vmem:[%s9 + $0x490] sm:$0xff]
  %v478 = vld [vmem:[%s9 + $0x498] sm:$0xff]
  %v479 = vld [vmem:[%s9 + $0x4a0] sm:$0xff]
  %v480 = vld [vmem:[%s9 + $0x4a8] sm:$0xff]
  %v481 = vld [vmem:[%s9 + $0x4b0] sm:$0xff]
  %v482 = vld [vmem:[%s9 + $0x4b8] sm:$0xff]
  %v483 = vld [vmem:[%s9 + $0x4c0] sm:$0xff]
  %v484 = vld [vmem:[%s9 + $0x4c8] sm:$0xff]
  %v485 = vld [vmem:[%s9 + $0x4d0] sm:$0xff]
  %v486 = vld [vmem:[%s9 + $0x4d8] sm:$0xff]
  %v487 = vld [vmem:[%s9 + $0x4e0] sm:$0xff]
  %v488 = vld [vmem:[%s9 + $0x4e8] sm:$0xff]
  %v489 = vld [vmem:[%s9 + $0x4f0] sm:$0xff]
  %v490 = vld [vmem:[%s9 + $0x4f8] sm:$0xff]
  %v491 = vld [vmem:[%s9 + $0x500] sm:$0xff]
  %v492 = vld [vmem:[%s9 + $0x508] sm:$0xff]
  %v493 = vld [vmem:[%s9 + $0x510] sm:$0xff]
  %v494 = vld [vmem:[%s9 + $0x518] sm:$0xff]
  %v495 = vld [vmem:[%s9 + $0x520] sm:$0xff]
  %v496 = vld [vmem:[%s9 + $0x528] sm:$0xff]
  %v497 = vld [vmem:[%s9 + $0x530] sm:$0xff]
  %v498 = vld [vmem:[%s9 + $0x538] sm:$0xff]
  %v499 = vld [vmem:[%s9 + $0x540] sm:$0xff]
  %v500 = vld [vmem:[%s9 + $0x548] sm:$0xff]
  %v501 = vld [vmem:[%s9 + $0x550] sm:$0xff]
  %v502 = vld [vmem:[%s9 + $0x558] sm:$0xff]
  %v503 = vld [vmem:[%s9 + $0x560] sm:$0xff]
  %v504 = vld [vmem:[%s9 + $0x568] sm:$0xff]
  %v505 = vld [vmem:[%s9 + $0x570] sm:$0xff]
  %v506 = vld [vmem:[%s9 + $0x578] sm:$0xff]
  %v507 = vld [vmem:[%s9 + $0x580] sm:$0xff]
  %v508 = vld [vmem:[%s9 + $0x588] sm:$0xff]
  %v509 = vld [vmem:[%s9 + $0x590] sm:$0xff]
  %v510 = vld [vmem:[%s9 + $0x598] sm:$0xff]
  %v511 = vld [vmem:[%s9 + $0x5a0] sm:$0xff]
  %v512 = vld [vmem:[%s9 + $0x5a8] sm:$0xff]
  %v513 = vld [vmem:[%s9 + $0x5b0] sm:$0xff]
  %v514 = vld [vmem:[%s9 + $0x5b8] sm:$0xff]
  %v515 = vld [vmem:[%s9 + $0x5c0] sm:$0xff]
  %v516 = vld [vmem:[%s9 + $0x5c8] sm:$0xff]
  %v517 = vld [vmem:[%s9 + $0x5d0] sm:$0xff]
  %v518 = vld [vmem:[%s9 + $0x5d8] sm:$0xff]
  %v519 = vld [vmem:[%s9 + $0x5e0] sm:$0xff]
  %v520 = vld [vmem:[%s9 + $0x5e8] sm:$0xff]
  %v521 = vld [vmem:[%s9 + $0x5f0] sm:$0xff]
  %v522 = vld [vmem:[%s9 + $0x5f8] sm:$0xff]
  %v523 = vld [vmem:[%s10] sm:$0x3f]
  %v525 = vperm.slane %v523, 0
  %v526 = vperm.slane %v523, 1
  %v527 = vperm.slane %v523, 2
  %v528 = vperm.slane %v523, 3
  %v529 = vperm.slane %v523, 4
  %v530 = vperm.slane %v523, 5
  %537 = vmatpush.msra.mxu0 %v421
  %538 = vmatpush.msra.mxu0 %v415
  %539 = vmatpush.msra.mxu0 %v409
  %540 = vmatpush.msra.mxu0 %v403
  %541 = vmatpush.msra.mxu0 %v397
  %542 = vmatpush.msra.mxu0 %v391
  %543 = vmatpush.msra.mxu0 %v385
  %544 = vmatpush.msra.mxu0 %v379
  %545 = vmatpush.msra.mxu0 %v373
  %546 = vmatpush.msra.mxu0 %v367
  %547 = vmatpush.msra.mxu0 %v361
  %548 = vmatpush.msra.mxu0 %v355
  %549 = vmatpush.msra.mxu0 %v349
  %550 = vmatpush.msra.mxu0 %v343
  %551 = vmatpush.msra.mxu0 %v337
  %552 = vmatpush.msra.mxu0 %v331
  %553 = vmatmul.f32.gmra.mxu0 %v329
  %v554 = vpop.f32.mrf.mxu0
  %v555 = vadd.f32 %v525, %v554
  %556 = vdwg.mxu0
  %557 = vmatpush.msra.mxu0 %v517
  %558 = vmatpush.msra.mxu0 %v511
  %559 = vmatpush.msra.mxu0 %v505
  %560 = vmatpush.msra.mxu0 %v499
  %561 = vmatpush.msra.mxu0 %v493
  %562 = vmatpush.msra.mxu0 %v487
  %563 = vmatpush.msra.mxu0 %v481
  %564 = vmatpush.msra.mxu0 %v475
  %565 = vmatpush.msra.mxu0 %v469
  %566 = vmatpush.msra.mxu0 %v463
  %567 = vmatpush.msra.mxu0 %v457
  %568 = vmatpush.msra.mxu0 %v451
  %569 = vmatpush.msra.mxu0 %v445
  %570 = vmatpush.msra.mxu0 %v439
  %571 = vmatpush.msra.mxu0 %v433
  %572 = vmatpush.msra.mxu0 %v427
  %573 = vmatmul.f32.gmra.mxu0 %v330
  %v574 = vpop.f32.mrf.mxu0
  %v575 = vadd.f32 %v555, %v574
  %576 = vdwg.mxu0
  %577 = vmatpush.msra.mxu0 %v422
  %578 = vmatpush.msra.mxu0 %v416
  %579 = vmatpush.msra.mxu0 %v410
  %580 = vmatpush.msra.mxu0 %v404
  %581 = vmatpush.msra.mxu0 %v398
  %582 = vmatpush.msra.mxu0 %v392
  %583 = vmatpush.msra.mxu0 %v386
  %584 = vmatpush.msra.mxu0 %v380
  %585 = vmatpush.msra.mxu0 %v374
  %586 = vmatpush.msra.mxu0 %v368
  %587 = vmatpush.msra.mxu0 %v362
  %588 = vmatpush.msra.mxu0 %v356
  %589 = vmatpush.msra.mxu0 %v350
  %590 = vmatpush.msra.mxu0 %v344
  %591 = vmatpush.msra.mxu0 %v338
  %592 = vmatpush.msra.mxu0 %v332
  %593 = vmatmul.f32.gmra.mxu0 %v329
  %v594 = vpop.f32.mrf.mxu0
  %v595 = vadd.f32 %v526, %v594
  %596 = vdwg.mxu0
  %597 = vmatpush.msra.mxu0 %v518
  %598 = vmatpush.msra.mxu0 %v512
  %599 = vmatpush.msra.mxu0 %v506
  %600 = vmatpush.msra.mxu0 %v500
  %601 = vmatpush.msra.mxu0 %v494
  %602 = vmatpush.msra.mxu0 %v488
  %603 = vmatpush.msra.mxu0 %v482
  %604 = vmatpush.msra.mxu0 %v476
  %605 = vmatpush.msra.mxu0 %v470
  %606 = vmatpush.msra.mxu0 %v464
  %607 = vmatpush.msra.mxu0 %v458
  %608 = vmatpush.msra.mxu0 %v452
  %609 = vmatpush.msra.mxu0 %v446
  %610 = vmatpush.msra.mxu0 %v440
  %611 = vmatpush.msra.mxu0 %v434
  %612 = vmatpush.msra.mxu0 %v428
  %613 = vmatmul.f32.gmra.mxu0 %v330
  %v614 = vpop.f32.mrf.mxu0
  %v615 = vadd.f32 %v595, %v614
  %616 = vdwg.mxu0
  %617 = vmatpush.msra.mxu0 %v423
  %618 = vmatpush.msra.mxu0 %v417
  %619 = vmatpush.msra.mxu0 %v411
  %620 = vmatpush.msra.mxu0 %v405
  %621 = vmatpush.msra.mxu0 %v399
  %622 = vmatpush.msra.mxu0 %v393
  %623 = vmatpush.msra.mxu0 %v387
  %624 = vmatpush.msra.mxu0 %v381
  %625 = vmatpush.msra.mxu0 %v375
  %626 = vmatpush.msra.mxu0 %v369
  %627 = vmatpush.msra.mxu0 %v363
  %628 = vmatpush.msra.mxu0 %v357
  %629 = vmatpush.msra.mxu0 %v351
  %630 = vmatpush.msra.mxu0 %v345
  %631 = vmatpush.msra.mxu0 %v339
  %632 = vmatpush.msra.mxu0 %v333
  %633 = vmatmul.f32.gmra.mxu0 %v329
  %v634 = vpop.f32.mrf.mxu0
  %v635 = vadd.f32 %v527, %v634
  %636 = vdwg.mxu0
  %637 = vmatpush.msra.mxu0 %v519
  %638 = vmatpush.msra.mxu0 %v513
  %639 = vmatpush.msra.mxu0 %v507
  %640 = vmatpush.msra.mxu0 %v501
  %641 = vmatpush.msra.mxu0 %v495
  %642 = vmatpush.msra.mxu0 %v489
  %643 = vmatpush.msra.mxu0 %v483
  %644 = vmatpush.msra.mxu0 %v477
  %645 = vmatpush.msra.mxu0 %v471
  %646 = vmatpush.msra.mxu0 %v465
  %647 = vmatpush.msra.mxu0 %v459
  %648 = vmatpush.msra.mxu0 %v453
  %649 = vmatpush.msra.mxu0 %v447
  %650 = vmatpush.msra.mxu0 %v441
  %651 = vmatpush.msra.mxu0 %v435
  %652 = vmatpush.msra.mxu0 %v429
  %653 = vmatmul.f32.gmra.mxu0 %v330
  %v654 = vpop.f32.mrf.mxu0
  %v655 = vadd.f32 %v635, %v654
  %656 = vdwg.mxu0
  %657 = vmatpush.msra.mxu0 %v424
  %658 = vmatpush.msra.mxu0 %v418
  %659 = vmatpush.msra.mxu0 %v412
  %660 = vmatpush.msra.mxu0 %v406
  %661 = vmatpush.msra.mxu0 %v400
  %662 = vmatpush.msra.mxu0 %v394
  %663 = vmatpush.msra.mxu0 %v388
  %664 = vmatpush.msra.mxu0 %v382
  %665 = vmatpush.msra.mxu0 %v376
  %666 = vmatpush.msra.mxu0 %v370
  %667 = vmatpush.msra.mxu0 %v364
  %668 = vmatpush.msra.mxu0 %v358
  %669 = vmatpush.msra.mxu0 %v352
  %670 = vmatpush.msra.mxu0 %v346
  %671 = vmatpush.msra.mxu0 %v340
  %672 = vmatpush.msra.mxu0 %v334
  %673 = vmatmul.f32.gmra.mxu0 %v329
  %v674 = vpop.f32.mrf.mxu0
  %v675 = vadd.f32 %v528, %v674
  %676 = vdwg.mxu0
  %677 = vmatpush.msra.mxu0 %v520
  %678 = vmatpush.msra.mxu0 %v514
  %679 = vmatpush.msra.mxu0 %v508
  %680 = vmatpush.msra.mxu0 %v502
  %681 = vmatpush.msra.mxu0 %v496
  %682 = vmatpush.msra.mxu0 %v490
  %683 = vmatpush.msra.mxu0 %v484
  %684 = vmatpush.msra.mxu0 %v478
  %685 = vmatpush.msra.mxu0 %v472
  %686 = vmatpush.msra.mxu0 %v466
  %687 = vmatpush.msra.mxu0 %v460
  %688 = vmatpush.msra.mxu0 %v454
  %689 = vmatpush.msra.mxu0 %v448
  %690 = vmatpush.msra.mxu0 %v442
  %691 = vmatpush.msra.mxu0 %v436
  %692 = vmatpush.msra.mxu0 %v430
  %693 = vmatmul.f32.gmra.mxu0 %v330
  %v694 = vpop.f32.mrf.mxu0
  %v695 = vadd.f32 %v675, %v694
  %696 = vdwg.mxu0
  %697 = vmatpush.msra.mxu0 %v425
  %698 = vmatpush.msra.mxu0 %v419
  %699 = vmatpush.msra.mxu0 %v413
  %700 = vmatpush.msra.mxu0 %v407
  %701 = vmatpush.msra.mxu0 %v401
  %702 = vmatpush.msra.mxu0 %v395
  %703 = vmatpush.msra.mxu0 %v389
  %704 = vmatpush.msra.mxu0 %v383
  %705 = vmatpush.msra.mxu0 %v377
  %706 = vmatpush.msra.mxu0 %v371
  %707 = vmatpush.msra.mxu0 %v365
  %708 = vmatpush.msra.mxu0 %v359
  %709 = vmatpush.msra.mxu0 %v353
  %710 = vmatpush.msra.mxu0 %v347
  %711 = vmatpush.msra.mxu0 %v341
  %712 = vmatpush.msra.mxu0 %v335
  %713 = vmatmul.f32.gmra.mxu0 %v329
  %v714 = vpop.f32.mrf.mxu0
  %v715 = vadd.f32 %v529, %v714
  %716 = vdwg.mxu0
  %717 = vmatpush.msra.mxu0 %v521
  %718 = vmatpush.msra.mxu0 %v515
  %719 = vmatpush.msra.mxu0 %v509
  %720 = vmatpush.msra.mxu0 %v503
  %721 = vmatpush.msra.mxu0 %v497
  %722 = vmatpush.msra.mxu0 %v491
  %723 = vmatpush.msra.mxu0 %v485
  %724 = vmatpush.msra.mxu0 %v479
  %725 = vmatpush.msra.mxu0 %v473
  %726 = vmatpush.msra.mxu0 %v467
  %727 = vmatpush.msra.mxu0 %v461
  %728 = vmatpush.msra.mxu0 %v455
  %729 = vmatpush.msra.mxu0 %v449
  %730 = vmatpush.msra.mxu0 %v443
  %731 = vmatpush.msra.mxu0 %v437
  %732 = vmatpush.msra.mxu0 %v431
  %733 = vmatmul.f32.gmra.mxu0 %v330
  %v734 = vpop.f32.mrf.mxu0
  %v735 = vadd.f32 %v715, %v734
  %736 = vdwg.mxu0
  %737 = vmatpush.msra.mxu0 %v426
  %738 = vmatpush.msra.mxu0 %v420
  %739 = vmatpush.msra.mxu0 %v414
  %740 = vmatpush.msra.mxu0 %v408
  %741 = vmatpush.msra.mxu0 %v402
  %742 = vmatpush.msra.mxu0 %v396
  %743 = vmatpush.msra.mxu0 %v390
  %744 = vmatpush.msra.mxu0 %v384
  %745 = vmatpush.msra.mxu0 %v378
  %746 = vmatpush.msra.mxu0 %v372
  %747 = vmatpush.msra.mxu0 %v366
  %748 = vmatpush.msra.mxu0 %v360
  %749 = vmatpush.msra.mxu0 %v354
  %750 = vmatpush.msra.mxu0 %v348
  %751 = vmatpush.msra.mxu0 %v342
  %752 = vmatpush.msra.mxu0 %v336
  %753 = vmatmul.f32.gmra.mxu0 %v329
  %v754 = vpop.f32.mrf.mxu0
  %v755 = vadd.f32 %v530, %v754
  %756 = vdwg.mxu0
  %757 = vmatpush.msra.mxu0 %v522
  %758 = vmatpush.msra.mxu0 %v516
  %759 = vmatpush.msra.mxu0 %v510
  %760 = vmatpush.msra.mxu0 %v504
  %761 = vmatpush.msra.mxu0 %v498
  %762 = vmatpush.msra.mxu0 %v492
  %763 = vmatpush.msra.mxu0 %v486
  %764 = vmatpush.msra.mxu0 %v480
  %765 = vmatpush.msra.mxu0 %v474
  %766 = vmatpush.msra.mxu0 %v468
  %767 = vmatpush.msra.mxu0 %v462
  %768 = vmatpush.msra.mxu0 %v456
  %769 = vmatpush.msra.mxu0 %v450
  %770 = vmatpush.msra.mxu0 %v444
  %771 = vmatpush.msra.mxu0 %v438
  %772 = vmatpush.msra.mxu0 %v432
  %773 = vmatmul.f32.gmra.mxu0 %v330
  %v774 = vpop.f32.mrf.mxu0
  %v775 = vadd.f32 %v755, %v774
  %776 = vdwg.mxu0
  %v777 = vmax.f32 %v575, 0.0
  %v778 = vmax.f32 %v615, 0.0
  %v779 = vmax.f32 %v655, 0.0
  %v780 = vmax.f32 %v695, 0.0
  %v781 = vmax.f32 %v735, 0.0
  %v782 = vmax.f32 %v775, 0.0
  %v783 = vld [vmem:[%s11] sm:$0xff]
  %v784 = vld [vmem:[%s11 + $0x8] sm:$0xff]
  %v785 = vld [vmem:[%s11 + $0x10] sm:$0xff]
  %v786 = vld [vmem:[%s11 + $0x18] sm:$0xff]
  %v787 = vld [vmem:[%s11 + $0x20] sm:$0xff]
  %v788 = vld [vmem:[%s11 + $0x28] sm:$0xff]
  %v789 = vld [vmem:[%s11 + $0x30] sm:$0xff]
  %v790 = vld [vmem:[%s11 + $0x38] sm:$0xff]
  %v791 = vld [vmem:[%s11 + $0x40] sm:$0xff]
  %v792 = vld [vmem:[%s11 + $0x48] sm:$0xff]
  %v793 = vld [vmem:[%s11 + $0x50] sm:$0xff]
  %v794 = vld [vmem:[%s11 + $0x58] sm:$0xff]
  %v795 = vld [vmem:[%s11 + $0x60] sm:$0xff]
  %v796 = vld [vmem:[%s11 + $0x68] sm:$0xff]
  %v797 = vld [vmem:[%s11 + $0x70] sm:$0xff]
  %v798 = vld [vmem:[%s11 + $0x78] sm:$0xff]
  %v799 = vld [vmem:[%s11 + $0x80] sm:$0xff]
  %v800 = vld [vmem:[%s11 + $0x88] sm:$0xff]
  %v801 = vld [vmem:[%s11 + $0x90] sm:$0xff]
  %v802 = vld [vmem:[%s11 + $0x98] sm:$0xff]
  %v803 = vld [vmem:[%s11 + $0xa0] sm:$0xff]
  %v804 = vld [vmem:[%s11 + $0xa8] sm:$0xff]
  %v805 = vld [vmem:[%s11 + $0xb0] sm:$0xff]
  %v806 = vld [vmem:[%s11 + $0xb8] sm:$0xff]
  %v807 = vld [vmem:[%s11 + $0xc0] sm:$0xff]
  %v808 = vld [vmem:[%s11 + $0xc8] sm:$0xff]
  %v809 = vld [vmem:[%s11 + $0xd0] sm:$0xff]
  %v810 = vld [vmem:[%s11 + $0xd8] sm:$0xff]
  %v811 = vld [vmem:[%s11 + $0xe0] sm:$0xff]
  %v812 = vld [vmem:[%s11 + $0xe8] sm:$0xff]
  %v813 = vld [vmem:[%s11 + $0xf0] sm:$0xff]
  %v814 = vld [vmem:[%s11 + $0xf8] sm:$0xff]
  %v815 = vld [vmem:[%s11 + $0x100] sm:$0xff]
  %v816 = vld [vmem:[%s11 + $0x108] sm:$0xff]
  %v817 = vld [vmem:[%s11 + $0x110] sm:$0xff]
  %v818 = vld [vmem:[%s11 + $0x118] sm:$0xff]
  %v819 = vld [vmem:[%s11 + $0x120] sm:$0xff]
  %v820 = vld [vmem:[%s11 + $0x128] sm:$0xff]
  %v821 = vld [vmem:[%s11 + $0x130] sm:$0xff]
  %v822 = vld [vmem:[%s11 + $0x138] sm:$0xff]
  %v823 = vld [vmem:[%s11 + $0x140] sm:$0xff]
  %v824 = vld [vmem:[%s11 + $0x148] sm:$0xff]
  %v825 = vld [vmem:[%s11 + $0x150] sm:$0xff]
  %v826 = vld [vmem:[%s11 + $0x158] sm:$0xff]
  %v827 = vld [vmem:[%s11 + $0x160] sm:$0xff]
  %v828 = vld [vmem:[%s11 + $0x168] sm:$0xff]
  %v829 = vld [vmem:[%s11 + $0x170] sm:$0xff]
  %v830 = vld [vmem:[%s11 + $0x178] sm:$0xff]
  %v831 = vld [vmem:[%s11 + $0x180] sm:$0xff]
  %v832 = vld [vmem:[%s11 + $0x188] sm:$0xff]
  %v833 = vld [vmem:[%s11 + $0x190] sm:$0xff]
  %v834 = vld [vmem:[%s11 + $0x198] sm:$0xff]
  %v835 = vld [vmem:[%s11 + $0x1a0] sm:$0xff]
  %v836 = vld [vmem:[%s11 + $0x1a8] sm:$0xff]
  %v837 = vld [vmem:[%s11 + $0x1b0] sm:$0xff]
  %v838 = vld [vmem:[%s11 + $0x1b8] sm:$0xff]
  %v839 = vld [vmem:[%s11 + $0x1c0] sm:$0xff]
  %v840 = vld [vmem:[%s11 + $0x1c8] sm:$0xff]
  %v841 = vld [vmem:[%s11 + $0x1d0] sm:$0xff]
  %v842 = vld [vmem:[%s11 + $0x1d8] sm:$0xff]
  %v843 = vld [vmem:[%s11 + $0x1e0] sm:$0xff]
  %v844 = vld [vmem:[%s11 + $0x1e8] sm:$0xff]
  %v845 = vld [vmem:[%s11 + $0x1f0] sm:$0xff]
  %v846 = vld [vmem:[%s11 + $0x1f8] sm:$0xff]
  %v847 = vld [vmem:[%s11 + $0x200] sm:$0xff]
  %v848 = vld [vmem:[%s11 + $0x208] sm:$0xff]
  %v849 = vld [vmem:[%s11 + $0x210] sm:$0xff]
  %v850 = vld [vmem:[%s11 + $0x218] sm:$0xff]
  %v851 = vld [vmem:[%s11 + $0x220] sm:$0xff]
  %v852 = vld [vmem:[%s11 + $0x228] sm:$0xff]
  %v853 = vld [vmem:[%s11 + $0x230] sm:$0xff]
  %v854 = vld [vmem:[%s11 + $0x238] sm:$0xff]
  %v855 = vld [vmem:[%s11 + $0x240] sm:$0xff]
  %v856 = vld [vmem:[%s11 + $0x248] sm:$0xff]
  %v857 = vld [vmem:[%s11 + $0x250] sm:$0xff]
  %v858 = vld [vmem:[%s11 + $0x258] sm:$0xff]
  %v859 = vld [vmem:[%s11 + $0x260] sm:$0xff]
  %v860 = vld [vmem:[%s11 + $0x268] sm:$0xff]
  %v861 = vld [vmem:[%s11 + $0x270] sm:$0xff]
  %v862 = vld [vmem:[%s11 + $0x278] sm:$0xff]
  %v863 = vld [vmem:[%s11 + $0x280] sm:$0xff]
  %v864 = vld [vmem:[%s11 + $0x288] sm:$0xff]
  %v865 = vld [vmem:[%s11 + $0x290] sm:$0xff]
  %v866 = vld [vmem:[%s11 + $0x298] sm:$0xff]
  %v867 = vld [vmem:[%s11 + $0x2a0] sm:$0xff]
  %v868 = vld [vmem:[%s11 + $0x2a8] sm:$0xff]
  %v869 = vld [vmem:[%s11 + $0x2b0] sm:$0xff]
  %v870 = vld [vmem:[%s11 + $0x2b8] sm:$0xff]
  %v871 = vld [vmem:[%s11 + $0x2c0] sm:$0xff]
  %v872 = vld [vmem:[%s11 + $0x2c8] sm:$0xff]
  %v873 = vld [vmem:[%s11 + $0x2d0] sm:$0xff]
  %v874 = vld [vmem:[%s11 + $0x2d8] sm:$0xff]
  %v875 = vld [vmem:[%s11 + $0x2e0] sm:$0xff]
  %v876 = vld [vmem:[%s11 + $0x2e8] sm:$0xff]
  %v877 = vld [vmem:[%s11 + $0x2f0] sm:$0xff]
  %v878 = vld [vmem:[%s11 + $0x2f8] sm:$0xff]
  %v879 = vld [vmem:[%s11 + $0x300] sm:$0xff]
  %v880 = vld [vmem:[%s11 + $0x308] sm:$0xff]
  %v881 = vld [vmem:[%s11 + $0x310] sm:$0xff]
  %v882 = vld [vmem:[%s11 + $0x318] sm:$0xff]
  %v883 = vld [vmem:[%s11 + $0x320] sm:$0xff]
  %v884 = vld [vmem:[%s11 + $0x328] sm:$0xff]
  %v885 = vld [vmem:[%s11 + $0x330] sm:$0xff]
  %v886 = vld [vmem:[%s11 + $0x338] sm:$0xff]
  %v887 = vld [vmem:[%s11 + $0x340] sm:$0xff]
  %v888 = vld [vmem:[%s11 + $0x348] sm:$0xff]
  %v889 = vld [vmem:[%s11 + $0x350] sm:$0xff]
  %v890 = vld [vmem:[%s11 + $0x358] sm:$0xff]
  %v891 = vld [vmem:[%s11 + $0x360] sm:$0xff]
  %v892 = vld [vmem:[%s11 + $0x368] sm:$0xff]
  %v893 = vld [vmem:[%s11 + $0x370] sm:$0xff]
  %v894 = vld [vmem:[%s11 + $0x378] sm:$0xff]
  %v895 = vld [vmem:[%s11 + $0x380] sm:$0xff]
  %v896 = vld [vmem:[%s11 + $0x388] sm:$0xff]
  %v897 = vld [vmem:[%s11 + $0x390] sm:$0xff]
  %v898 = vld [vmem:[%s11 + $0x398] sm:$0xff]
  %v899 = vld [vmem:[%s11 + $0x3a0] sm:$0xff]
  %v900 = vld [vmem:[%s11 + $0x3a8] sm:$0xff]
  %v901 = vld [vmem:[%s11 + $0x3b0] sm:$0xff]
  %v902 = vld [vmem:[%s11 + $0x3b8] sm:$0xff]
  %v903 = vld [vmem:[%s11 + $0x3c0] sm:$0xff]
  %v904 = vld [vmem:[%s11 + $0x3c8] sm:$0xff]
  %v905 = vld [vmem:[%s11 + $0x3d0] sm:$0xff]
  %v906 = vld [vmem:[%s11 + $0x3d8] sm:$0xff]
  %v907 = vld [vmem:[%s11 + $0x3e0] sm:$0xff]
  %v908 = vld [vmem:[%s11 + $0x3e8] sm:$0xff]
  %v909 = vld [vmem:[%s11 + $0x3f0] sm:$0xff]
  %v910 = vld [vmem:[%s11 + $0x3f8] sm:$0xff]
  %v911 = vld [vmem:[%s11 + $0x400] sm:$0xff]
  %v912 = vld [vmem:[%s11 + $0x408] sm:$0xff]
  %v913 = vld [vmem:[%s11 + $0x410] sm:$0xff]
  %v914 = vld [vmem:[%s11 + $0x418] sm:$0xff]
  %v915 = vld [vmem:[%s11 + $0x420] sm:$0xff]
  %v916 = vld [vmem:[%s11 + $0x428] sm:$0xff]
  %v917 = vld [vmem:[%s11 + $0x430] sm:$0xff]
  %v918 = vld [vmem:[%s11 + $0x438] sm:$0xff]
  %v919 = vld [vmem:[%s11 + $0x440] sm:$0xff]
  %v920 = vld [vmem:[%s11 + $0x448] sm:$0xff]
  %v921 = vld [vmem:[%s11 + $0x450] sm:$0xff]
  %v922 = vld [vmem:[%s11 + $0x458] sm:$0xff]
  %v923 = vld [vmem:[%s11 + $0x460] sm:$0xff]
  %v924 = vld [vmem:[%s11 + $0x468] sm:$0xff]
  %v925 = vld [vmem:[%s11 + $0x470] sm:$0xff]
  %v926 = vld [vmem:[%s11 + $0x478] sm:$0xff]
  %v927 = vld [vmem:[%s11 + $0x480] sm:$0xff]
  %v928 = vld [vmem:[%s11 + $0x488] sm:$0xff]
  %v929 = vld [vmem:[%s11 + $0x490] sm:$0xff]
  %v930 = vld [vmem:[%s11 + $0x498] sm:$0xff]
  %v931 = vld [vmem:[%s11 + $0x4a0] sm:$0xff]
  %v932 = vld [vmem:[%s11 + $0x4a8] sm:$0xff]
  %v933 = vld [vmem:[%s11 + $0x4b0] sm:$0xff]
  %v934 = vld [vmem:[%s11 + $0x4b8] sm:$0xff]
  %v935 = vld [vmem:[%s11 + $0x4c0] sm:$0xff]
  %v936 = vld [vmem:[%s11 + $0x4c8] sm:$0xff]
  %v937 = vld [vmem:[%s11 + $0x4d0] sm:$0xff]
  %v938 = vld [vmem:[%s11 + $0x4d8] sm:$0xff]
  %v939 = vld [vmem:[%s11 + $0x4e0] sm:$0xff]
  %v940 = vld [vmem:[%s11 + $0x4e8] sm:$0xff]
  %v941 = vld [vmem:[%s11 + $0x4f0] sm:$0xff]
  %v942 = vld [vmem:[%s11 + $0x4f8] sm:$0xff]
  %v943 = vld [vmem:[%s11 + $0x500] sm:$0xff]
  %v944 = vld [vmem:[%s11 + $0x508] sm:$0xff]
  %v945 = vld [vmem:[%s11 + $0x510] sm:$0xff]
  %v946 = vld [vmem:[%s11 + $0x518] sm:$0xff]
  %v947 = vld [vmem:[%s11 + $0x520] sm:$0xff]
  %v948 = vld [vmem:[%s11 + $0x528] sm:$0xff]
  %v949 = vld [vmem:[%s11 + $0x530] sm:$0xff]
  %v950 = vld [vmem:[%s11 + $0x538] sm:$0xff]
  %v951 = vld [vmem:[%s11 + $0x540] sm:$0xff]
  %v952 = vld [vmem:[%s11 + $0x548] sm:$0xff]
  %v953 = vld [vmem:[%s11 + $0x550] sm:$0xff]
  %v954 = vld [vmem:[%s11 + $0x558] sm:$0xff]
  %v955 = vld [vmem:[%s11 + $0x560] sm:$0xff]
  %v956 = vld [vmem:[%s11 + $0x568] sm:$0xff]
  %v957 = vld [vmem:[%s11 + $0x570] sm:$0xff]
  %v958 = vld [vmem:[%s11 + $0x578] sm:$0xff]
  %v959 = vld [vmem:[%s11 + $0x580] sm:$0xff]
  %v960 = vld [vmem:[%s11 + $0x588] sm:$0xff]
  %v961 = vld [vmem:[%s11 + $0x590] sm:$0xff]
  %v962 = vld [vmem:[%s11 + $0x598] sm:$0xff]
  %v963 = vld [vmem:[%s11 + $0x5a0] sm:$0xff]
  %v964 = vld [vmem:[%s11 + $0x5a8] sm:$0xff]
  %v965 = vld [vmem:[%s11 + $0x5b0] sm:$0xff]
  %v966 = vld [vmem:[%s11 + $0x5b8] sm:$0xff]
  %v967 = vld [vmem:[%s11 + $0x5c0] sm:$0xff]
  %v968 = vld [vmem:[%s11 + $0x5c8] sm:$0xff]
  %v969 = vld [vmem:[%s11 + $0x5d0] sm:$0xff]
  %v970 = vld [vmem:[%s11 + $0x5d8] sm:$0xff]
  %v971 = vld [vmem:[%s11 + $0x5e0] sm:$0xff]
  %v972 = vld [vmem:[%s11 + $0x5e8] sm:$0xff]
  %v973 = vld [vmem:[%s11 + $0x5f0] sm:$0xff]
  %v974 = vld [vmem:[%s11 + $0x5f8] sm:$0xff]
  %v975 = vld [vmem:[%s11 + $0x600] sm:$0xff]
  %v976 = vld [vmem:[%s11 + $0x608] sm:$0xff]
  %v977 = vld [vmem:[%s11 + $0x610] sm:$0xff]
  %v978 = vld [vmem:[%s11 + $0x618] sm:$0xff]
  %v979 = vld [vmem:[%s11 + $0x620] sm:$0xff]
  %v980 = vld [vmem:[%s11 + $0x628] sm:$0xff]
  %v981 = vld [vmem:[%s11 + $0x630] sm:$0xff]
  %v982 = vld [vmem:[%s11 + $0x638] sm:$0xff]
  %v983 = vld [vmem:[%s11 + $0x640] sm:$0xff]
  %v984 = vld [vmem:[%s11 + $0x648] sm:$0xff]
  %v985 = vld [vmem:[%s11 + $0x650] sm:$0xff]
  %v986 = vld [vmem:[%s11 + $0x658] sm:$0xff]
  %v987 = vld [vmem:[%s11 + $0x660] sm:$0xff]
  %v988 = vld [vmem:[%s11 + $0x668] sm:$0xff]
  %v989 = vld [vmem:[%s11 + $0x670] sm:$0xff]
  %v990 = vld [vmem:[%s11 + $0x678] sm:$0xff]
  %v991 = vld [vmem:[%s11 + $0x680] sm:$0xff]
  %v992 = vld [vmem:[%s11 + $0x688] sm:$0xff]
  %v993 = vld [vmem:[%s11 + $0x690] sm:$0xff]
  %v994 = vld [vmem:[%s11 + $0x698] sm:$0xff]
  %v995 = vld [vmem:[%s11 + $0x6a0] sm:$0xff]
  %v996 = vld [vmem:[%s11 + $0x6a8] sm:$0xff]
  %v997 = vld [vmem:[%s11 + $0x6b0] sm:$0xff]
  %v998 = vld [vmem:[%s11 + $0x6b8] sm:$0xff]
  %v999 = vld [vmem:[%s11 + $0x6c0] sm:$0xff]
  %v1000 = vld [vmem:[%s11 + $0x6c8] sm:$0xff]
  %v1001 = vld [vmem:[%s11 + $0x6d0] sm:$0xff]
  %v1002 = vld [vmem:[%s11 + $0x6d8] sm:$0xff]
  %v1003 = vld [vmem:[%s11 + $0x6e0] sm:$0xff]
  %v1004 = vld [vmem:[%s11 + $0x6e8] sm:$0xff]
  %v1005 = vld [vmem:[%s11 + $0x6f0] sm:$0xff]
  %v1006 = vld [vmem:[%s11 + $0x6f8] sm:$0xff]
  %v1007 = vld [vmem:[%s11 + $0x700] sm:$0xff]
  %v1008 = vld [vmem:[%s11 + $0x708] sm:$0xff]
  %v1009 = vld [vmem:[%s11 + $0x710] sm:$0xff]
  %v1010 = vld [vmem:[%s11 + $0x718] sm:$0xff]
  %v1011 = vld [vmem:[%s11 + $0x720] sm:$0xff]
  %v1012 = vld [vmem:[%s11 + $0x728] sm:$0xff]
  %v1013 = vld [vmem:[%s11 + $0x730] sm:$0xff]
  %v1014 = vld [vmem:[%s11 + $0x738] sm:$0xff]
  %v1015 = vld [vmem:[%s11 + $0x740] sm:$0xff]
  %v1016 = vld [vmem:[%s11 + $0x748] sm:$0xff]
  %v1017 = vld [vmem:[%s11 + $0x750] sm:$0xff]
  %v1018 = vld [vmem:[%s11 + $0x758] sm:$0xff]
  %v1019 = vld [vmem:[%s11 + $0x760] sm:$0xff]
  %v1020 = vld [vmem:[%s11 + $0x768] sm:$0xff]
  %v1021 = vld [vmem:[%s11 + $0x770] sm:$0xff]
  %v1022 = vld [vmem:[%s11 + $0x778] sm:$0xff]
  %v1023 = vld [vmem:[%s11 + $0x780] sm:$0xff]
  %v1024 = vld [vmem:[%s11 + $0x788] sm:$0xff]
  %v1025 = vld [vmem:[%s11 + $0x790] sm:$0xff]
  %v1026 = vld [vmem:[%s11 + $0x798] sm:$0xff]
  %v1027 = vld [vmem:[%s11 + $0x7a0] sm:$0xff]
  %v1028 = vld [vmem:[%s11 + $0x7a8] sm:$0xff]
  %v1029 = vld [vmem:[%s11 + $0x7b0] sm:$0xff]
  %v1030 = vld [vmem:[%s11 + $0x7b8] sm:$0xff]
  %v1031 = vld [vmem:[%s11 + $0x7c0] sm:$0xff]
  %v1032 = vld [vmem:[%s11 + $0x7c8] sm:$0xff]
  %v1033 = vld [vmem:[%s11 + $0x7d0] sm:$0xff]
  %v1034 = vld [vmem:[%s11 + $0x7d8] sm:$0xff]
  %v1035 = vld [vmem:[%s11 + $0x7e0] sm:$0xff]
  %v1036 = vld [vmem:[%s11 + $0x7e8] sm:$0xff]
  %v1037 = vld [vmem:[%s11 + $0x7f0] sm:$0xff]
  %v1038 = vld [vmem:[%s11 + $0x7f8] sm:$0xff]
  %v1039 = vld [vmem:[%s11 + $0x800] sm:$0xff]
  %v1040 = vld [vmem:[%s11 + $0x808] sm:$0xff]
  %v1041 = vld [vmem:[%s11 + $0x810] sm:$0xff]
  %v1042 = vld [vmem:[%s11 + $0x818] sm:$0xff]
  %v1043 = vld [vmem:[%s11 + $0x820] sm:$0xff]
  %v1044 = vld [vmem:[%s11 + $0x828] sm:$0xff]
  %v1045 = vld [vmem:[%s11 + $0x830] sm:$0xff]
  %v1046 = vld [vmem:[%s11 + $0x838] sm:$0xff]
  %v1047 = vld [vmem:[%s11 + $0x840] sm:$0xff]
  %v1048 = vld [vmem:[%s11 + $0x848] sm:$0xff]
  %v1049 = vld [vmem:[%s11 + $0x850] sm:$0xff]
  %v1050 = vld [vmem:[%s11 + $0x858] sm:$0xff]
  %v1051 = vld [vmem:[%s11 + $0x860] sm:$0xff]
  %v1052 = vld [vmem:[%s11 + $0x868] sm:$0xff]
  %v1053 = vld [vmem:[%s11 + $0x870] sm:$0xff]
  %v1054 = vld [vmem:[%s11 + $0x878] sm:$0xff]
  %v1055 = vld [vmem:[%s11 + $0x880] sm:$0xff]
  %v1056 = vld [vmem:[%s11 + $0x888] sm:$0xff]
  %v1057 = vld [vmem:[%s11 + $0x890] sm:$0xff]
  %v1058 = vld [vmem:[%s11 + $0x898] sm:$0xff]
  %v1059 = vld [vmem:[%s11 + $0x8a0] sm:$0xff]
  %v1060 = vld [vmem:[%s11 + $0x8a8] sm:$0xff]
  %v1061 = vld [vmem:[%s11 + $0x8b0] sm:$0xff]
  %v1062 = vld [vmem:[%s11 + $0x8b8] sm:$0xff]
  %v1063 = vld [vmem:[%s11 + $0x8c0] sm:$0xff]
  %v1064 = vld [vmem:[%s11 + $0x8c8] sm:$0xff]
  %v1065 = vld [vmem:[%s11 + $0x8d0] sm:$0xff]
  %v1066 = vld [vmem:[%s11 + $0x8d8] sm:$0xff]
  %v1067 = vld [vmem:[%s11 + $0x8e0] sm:$0xff]
  %v1068 = vld [vmem:[%s11 + $0x8e8] sm:$0xff]
  %v1069 = vld [vmem:[%s11 + $0x8f0] sm:$0xff]
  %v1070 = vld [vmem:[%s11 + $0x8f8] sm:$0xff]
  %v1071 = vld [vmem:[%s11 + $0x900] sm:$0xff]
  %v1072 = vld [vmem:[%s11 + $0x908] sm:$0xff]
  %v1073 = vld [vmem:[%s11 + $0x910] sm:$0xff]
  %v1074 = vld [vmem:[%s11 + $0x918] sm:$0xff]
  %v1075 = vld [vmem:[%s11 + $0x920] sm:$0xff]
  %v1076 = vld [vmem:[%s11 + $0x928] sm:$0xff]
  %v1077 = vld [vmem:[%s11 + $0x930] sm:$0xff]
  %v1078 = vld [vmem:[%s11 + $0x938] sm:$0xff]
  %v1079 = vld [vmem:[%s11 + $0x940] sm:$0xff]
  %v1080 = vld [vmem:[%s11 + $0x948] sm:$0xff]
  %v1081 = vld [vmem:[%s11 + $0x950] sm:$0xff]
  %v1082 = vld [vmem:[%s11 + $0x958] sm:$0xff]
  %v1083 = vld [vmem:[%s11 + $0x960] sm:$0xff]
  %v1084 = vld [vmem:[%s11 + $0x968] sm:$0xff]
  %v1085 = vld [vmem:[%s11 + $0x970] sm:$0xff]
  %v1086 = vld [vmem:[%s11 + $0x978] sm:$0xff]
  %v1087 = vld [vmem:[%s11 + $0x980] sm:$0xff]
  %v1088 = vld [vmem:[%s11 + $0x988] sm:$0xff]
  %v1089 = vld [vmem:[%s11 + $0x990] sm:$0xff]
  %v1090 = vld [vmem:[%s11 + $0x998] sm:$0xff]
  %v1091 = vld [vmem:[%s11 + $0x9a0] sm:$0xff]
  %v1092 = vld [vmem:[%s11 + $0x9a8] sm:$0xff]
  %v1093 = vld [vmem:[%s11 + $0x9b0] sm:$0xff]
  %v1094 = vld [vmem:[%s11 + $0x9b8] sm:$0xff]
  %v1095 = vld [vmem:[%s11 + $0x9c0] sm:$0xff]
  %v1096 = vld [vmem:[%s11 + $0x9c8] sm:$0xff]
  %v1097 = vld [vmem:[%s11 + $0x9d0] sm:$0xff]
  %v1098 = vld [vmem:[%s11 + $0x9d8] sm:$0xff]
  %v1099 = vld [vmem:[%s11 + $0x9e0] sm:$0xff]
  %v1100 = vld [vmem:[%s11 + $0x9e8] sm:$0xff]
  %v1101 = vld [vmem:[%s11 + $0x9f0] sm:$0xff]
  %v1102 = vld [vmem:[%s11 + $0x9f8] sm:$0xff]
  %v1103 = vld [vmem:[%s11 + $0xa00] sm:$0xff]
  %v1104 = vld [vmem:[%s11 + $0xa08] sm:$0xff]
  %v1105 = vld [vmem:[%s11 + $0xa10] sm:$0xff]
  %v1106 = vld [vmem:[%s11 + $0xa18] sm:$0xff]
  %v1107 = vld [vmem:[%s11 + $0xa20] sm:$0xff]
  %v1108 = vld [vmem:[%s11 + $0xa28] sm:$0xff]
  %v1109 = vld [vmem:[%s11 + $0xa30] sm:$0xff]
  %v1110 = vld [vmem:[%s11 + $0xa38] sm:$0xff]
  %v1111 = vld [vmem:[%s11 + $0xa40] sm:$0xff]
  %v1112 = vld [vmem:[%s11 + $0xa48] sm:$0xff]
  %v1113 = vld [vmem:[%s11 + $0xa50] sm:$0xff]
  %v1114 = vld [vmem:[%s11 + $0xa58] sm:$0xff]
  %v1115 = vld [vmem:[%s11 + $0xa60] sm:$0xff]
  %v1116 = vld [vmem:[%s11 + $0xa68] sm:$0xff]
  %v1117 = vld [vmem:[%s11 + $0xa70] sm:$0xff]
  %v1118 = vld [vmem:[%s11 + $0xa78] sm:$0xff]
  %v1119 = vld [vmem:[%s11 + $0xa80] sm:$0xff]
  %v1120 = vld [vmem:[%s11 + $0xa88] sm:$0xff]
  %v1121 = vld [vmem:[%s11 + $0xa90] sm:$0xff]
  %v1122 = vld [vmem:[%s11 + $0xa98] sm:$0xff]
  %v1123 = vld [vmem:[%s11 + $0xaa0] sm:$0xff]
  %v1124 = vld [vmem:[%s11 + $0xaa8] sm:$0xff]
  %v1125 = vld [vmem:[%s11 + $0xab0] sm:$0xff]
  %v1126 = vld [vmem:[%s11 + $0xab8] sm:$0xff]
  %v1127 = vld [vmem:[%s11 + $0xac0] sm:$0xff]
  %v1128 = vld [vmem:[%s11 + $0xac8] sm:$0xff]
  %v1129 = vld [vmem:[%s11 + $0xad0] sm:$0xff]
  %v1130 = vld [vmem:[%s11 + $0xad8] sm:$0xff]
  %v1131 = vld [vmem:[%s11 + $0xae0] sm:$0xff]
  %v1132 = vld [vmem:[%s11 + $0xae8] sm:$0xff]
  %v1133 = vld [vmem:[%s11 + $0xaf0] sm:$0xff]
  %v1134 = vld [vmem:[%s11 + $0xaf8] sm:$0xff]
  %v1135 = vld [vmem:[%s11 + $0xb00] sm:$0xff]
  %v1136 = vld [vmem:[%s11 + $0xb08] sm:$0xff]
  %v1137 = vld [vmem:[%s11 + $0xb10] sm:$0xff]
  %v1138 = vld [vmem:[%s11 + $0xb18] sm:$0xff]
  %v1139 = vld [vmem:[%s11 + $0xb20] sm:$0xff]
  %v1140 = vld [vmem:[%s11 + $0xb28] sm:$0xff]
  %v1141 = vld [vmem:[%s11 + $0xb30] sm:$0xff]
  %v1142 = vld [vmem:[%s11 + $0xb38] sm:$0xff]
  %v1143 = vld [vmem:[%s11 + $0xb40] sm:$0xff]
  %v1144 = vld [vmem:[%s11 + $0xb48] sm:$0xff]
  %v1145 = vld [vmem:[%s11 + $0xb50] sm:$0xff]
  %v1146 = vld [vmem:[%s11 + $0xb58] sm:$0xff]
  %v1147 = vld [vmem:[%s11 + $0xb60] sm:$0xff]
  %v1148 = vld [vmem:[%s11 + $0xb68] sm:$0xff]
  %v1149 = vld [vmem:[%s11 + $0xb70] sm:$0xff]
  %v1150 = vld [vmem:[%s11 + $0xb78] sm:$0xff]
  %v1151 = vld [vmem:[%s11 + $0xb80] sm:$0xff]
  %v1152 = vld [vmem:[%s11 + $0xb88] sm:$0xff]
  %v1153 = vld [vmem:[%s11 + $0xb90] sm:$0xff]
  %v1154 = vld [vmem:[%s11 + $0xb98] sm:$0xff]
  %v1155 = vld [vmem:[%s11 + $0xba0] sm:$0xff]
  %v1156 = vld [vmem:[%s11 + $0xba8] sm:$0xff]
  %v1157 = vld [vmem:[%s11 + $0xbb0] sm:$0xff]
  %v1158 = vld [vmem:[%s11 + $0xbb8] sm:$0xff]
  %v1159 = vld [vmem:[%s11 + $0xbc0] sm:$0xff]
  %v1160 = vld [vmem:[%s11 + $0xbc8] sm:$0xff]
  %v1161 = vld [vmem:[%s11 + $0xbd0] sm:$0xff]
  %v1162 = vld [vmem:[%s11 + $0xbd8] sm:$0xff]
  %v1163 = vld [vmem:[%s11 + $0xbe0] sm:$0xff]
  %v1164 = vld [vmem:[%s11 + $0xbe8] sm:$0xff]
  %v1165 = vld [vmem:[%s11 + $0xbf0] sm:$0xff]
  %v1166 = vld [vmem:[%s11 + $0xbf8] sm:$0xff]
  %v1167 = vld [vmem:[%s11 + $0xc00] sm:$0xff]
  %v1168 = vld [vmem:[%s11 + $0xc08] sm:$0xff]
  %v1169 = vld [vmem:[%s11 + $0xc10] sm:$0xff]
  %v1170 = vld [vmem:[%s11 + $0xc18] sm:$0xff]
  %v1171 = vld [vmem:[%s11 + $0xc20] sm:$0xff]
  %v1172 = vld [vmem:[%s11 + $0xc28] sm:$0xff]
  %v1173 = vld [vmem:[%s11 + $0xc30] sm:$0xff]
  %v1174 = vld [vmem:[%s11 + $0xc38] sm:$0xff]
  %v1175 = vld [vmem:[%s11 + $0xc40] sm:$0xff]
  %v1176 = vld [vmem:[%s11 + $0xc48] sm:$0xff]
  %v1177 = vld [vmem:[%s11 + $0xc50] sm:$0xff]
  %v1178 = vld [vmem:[%s11 + $0xc58] sm:$0xff]
  %v1179 = vld [vmem:[%s11 + $0xc60] sm:$0xff]
  %v1180 = vld [vmem:[%s11 + $0xc68] sm:$0xff]
  %v1181 = vld [vmem:[%s11 + $0xc70] sm:$0xff]
  %v1182 = vld [vmem:[%s11 + $0xc78] sm:$0xff]
  %v1183 = vld [vmem:[%s11 + $0xc80] sm:$0xff]
  %v1184 = vld [vmem:[%s11 + $0xc88] sm:$0xff]
  %v1185 = vld [vmem:[%s11 + $0xc90] sm:$0xff]
  %v1186 = vld [vmem:[%s11 + $0xc98] sm:$0xff]
  %v1187 = vld [vmem:[%s11 + $0xca0] sm:$0xff]
  %v1188 = vld [vmem:[%s11 + $0xca8] sm:$0xff]
  %v1189 = vld [vmem:[%s11 + $0xcb0] sm:$0xff]
  %v1190 = vld [vmem:[%s11 + $0xcb8] sm:$0xff]
  %v1191 = vld [vmem:[%s11 + $0xcc0] sm:$0xff]
  %v1192 = vld [vmem:[%s11 + $0xcc8] sm:$0xff]
  %v1193 = vld [vmem:[%s11 + $0xcd0] sm:$0xff]
  %v1194 = vld [vmem:[%s11 + $0xcd8] sm:$0xff]
  %v1195 = vld [vmem:[%s11 + $0xce0] sm:$0xff]
  %v1196 = vld [vmem:[%s11 + $0xce8] sm:$0xff]
  %v1197 = vld [vmem:[%s11 + $0xcf0] sm:$0xff]
  %v1198 = vld [vmem:[%s11 + $0xcf8] sm:$0xff]
  %v1199 = vld [vmem:[%s11 + $0xd00] sm:$0xff]
  %v1200 = vld [vmem:[%s11 + $0xd08] sm:$0xff]
  %v1201 = vld [vmem:[%s11 + $0xd10] sm:$0xff]
  %v1202 = vld [vmem:[%s11 + $0xd18] sm:$0xff]
  %v1203 = vld [vmem:[%s11 + $0xd20] sm:$0xff]
  %v1204 = vld [vmem:[%s11 + $0xd28] sm:$0xff]
  %v1205 = vld [vmem:[%s11 + $0xd30] sm:$0xff]
  %v1206 = vld [vmem:[%s11 + $0xd38] sm:$0xff]
  %v1207 = vld [vmem:[%s11 + $0xd40] sm:$0xff]
  %v1208 = vld [vmem:[%s11 + $0xd48] sm:$0xff]
  %v1209 = vld [vmem:[%s11 + $0xd50] sm:$0xff]
  %v1210 = vld [vmem:[%s11 + $0xd58] sm:$0xff]
  %v1211 = vld [vmem:[%s11 + $0xd60] sm:$0xff]
  %v1212 = vld [vmem:[%s11 + $0xd68] sm:$0xff]
  %v1213 = vld [vmem:[%s11 + $0xd70] sm:$0xff]
  %v1214 = vld [vmem:[%s11 + $0xd78] sm:$0xff]
  %v1215 = vld [vmem:[%s11 + $0xd80] sm:$0xff]
  %v1216 = vld [vmem:[%s11 + $0xd88] sm:$0xff]
  %v1217 = vld [vmem:[%s11 + $0xd90] sm:$0xff]
  %v1218 = vld [vmem:[%s11 + $0xd98] sm:$0xff]
  %v1219 = vld [vmem:[%s11 + $0xda0] sm:$0xff]
  %v1220 = vld [vmem:[%s11 + $0xda8] sm:$0xff]
  %v1221 = vld [vmem:[%s11 + $0xdb0] sm:$0xff]
  %v1222 = vld [vmem:[%s11 + $0xdb8] sm:$0xff]
  %v1223 = vld [vmem:[%s11 + $0xdc0] sm:$0xff]
  %v1224 = vld [vmem:[%s11 + $0xdc8] sm:$0xff]
  %v1225 = vld [vmem:[%s11 + $0xdd0] sm:$0xff]
  %v1226 = vld [vmem:[%s11 + $0xdd8] sm:$0xff]
  %v1227 = vld [vmem:[%s11 + $0xde0] sm:$0xff]
  %v1228 = vld [vmem:[%s11 + $0xde8] sm:$0xff]
  %v1229 = vld [vmem:[%s11 + $0xdf0] sm:$0xff]
  %v1230 = vld [vmem:[%s11 + $0xdf8] sm:$0xff]
  %v1231 = vld [vmem:[%s11 + $0xe00] sm:$0xff]
  %v1232 = vld [vmem:[%s11 + $0xe08] sm:$0xff]
  %v1233 = vld [vmem:[%s11 + $0xe10] sm:$0xff]
  %v1234 = vld [vmem:[%s11 + $0xe18] sm:$0xff]
  %v1235 = vld [vmem:[%s11 + $0xe20] sm:$0xff]
  %v1236 = vld [vmem:[%s11 + $0xe28] sm:$0xff]
  %v1237 = vld [vmem:[%s11 + $0xe30] sm:$0xff]
  %v1238 = vld [vmem:[%s11 + $0xe38] sm:$0xff]
  %v1239 = vld [vmem:[%s11 + $0xe40] sm:$0xff]
  %v1240 = vld [vmem:[%s11 + $0xe48] sm:$0xff]
  %v1241 = vld [vmem:[%s11 + $0xe50] sm:$0xff]
  %v1242 = vld [vmem:[%s11 + $0xe58] sm:$0xff]
  %v1243 = vld [vmem:[%s11 + $0xe60] sm:$0xff]
  %v1244 = vld [vmem:[%s11 + $0xe68] sm:$0xff]
  %v1245 = vld [vmem:[%s11 + $0xe70] sm:$0xff]
  %v1246 = vld [vmem:[%s11 + $0xe78] sm:$0xff]
  %v1247 = vld [vmem:[%s11 + $0xe80] sm:$0xff]
  %v1248 = vld [vmem:[%s11 + $0xe88] sm:$0xff]
  %v1249 = vld [vmem:[%s11 + $0xe90] sm:$0xff]
  %v1250 = vld [vmem:[%s11 + $0xe98] sm:$0xff]
  %v1251 = vld [vmem:[%s11 + $0xea0] sm:$0xff]
  %v1252 = vld [vmem:[%s11 + $0xea8] sm:$0xff]
  %v1253 = vld [vmem:[%s11 + $0xeb0] sm:$0xff]
  %v1254 = vld [vmem:[%s11 + $0xeb8] sm:$0xff]
  %v1255 = vld [vmem:[%s11 + $0xec0] sm:$0xff]
  %v1256 = vld [vmem:[%s11 + $0xec8] sm:$0xff]
  %v1257 = vld [vmem:[%s11 + $0xed0] sm:$0xff]
  %v1258 = vld [vmem:[%s11 + $0xed8] sm:$0xff]
  %v1259 = vld [vmem:[%s11 + $0xee0] sm:$0xff]
  %v1260 = vld [vmem:[%s11 + $0xee8] sm:$0xff]
  %v1261 = vld [vmem:[%s11 + $0xef0] sm:$0xff]
  %v1262 = vld [vmem:[%s11 + $0xef8] sm:$0xff]
  %v1263 = vld [vmem:[%s11 + $0xf00] sm:$0xff]
  %v1264 = vld [vmem:[%s11 + $0xf08] sm:$0xff]
  %v1265 = vld [vmem:[%s11 + $0xf10] sm:$0xff]
  %v1266 = vld [vmem:[%s11 + $0xf18] sm:$0xff]
  %v1267 = vld [vmem:[%s11 + $0xf20] sm:$0xff]
  %v1268 = vld [vmem:[%s11 + $0xf28] sm:$0xff]
  %v1269 = vld [vmem:[%s11 + $0xf30] sm:$0xff]
  %v1270 = vld [vmem:[%s11 + $0xf38] sm:$0xff]
  %v1271 = vld [vmem:[%s11 + $0xf40] sm:$0xff]
  %v1272 = vld [vmem:[%s11 + $0xf48] sm:$0xff]
  %v1273 = vld [vmem:[%s11 + $0xf50] sm:$0xff]
  %v1274 = vld [vmem:[%s11 + $0xf58] sm:$0xff]
  %v1275 = vld [vmem:[%s11 + $0xf60] sm:$0xff]
  %v1276 = vld [vmem:[%s11 + $0xf68] sm:$0xff]
  %v1277 = vld [vmem:[%s11 + $0xf70] sm:$0xff]
  %v1278 = vld [vmem:[%s11 + $0xf78] sm:$0xff]
  %v1279 = vld [vmem:[%s11 + $0xf80] sm:$0xff]
  %v1280 = vld [vmem:[%s11 + $0xf88] sm:$0xff]
  %v1281 = vld [vmem:[%s11 + $0xf90] sm:$0xff]
  %v1282 = vld [vmem:[%s11 + $0xf98] sm:$0xff]
  %v1283 = vld [vmem:[%s11 + $0xfa0] sm:$0xff]
  %v1284 = vld [vmem:[%s11 + $0xfa8] sm:$0xff]
  %v1285 = vld [vmem:[%s11 + $0xfb0] sm:$0xff]
  %v1286 = vld [vmem:[%s11 + $0xfb8] sm:$0xff]
  %v1287 = vld [vmem:[%s11 + $0xfc0] sm:$0xff]
  %v1288 = vld [vmem:[%s11 + $0xfc8] sm:$0xff]
  %v1289 = vld [vmem:[%s11 + $0xfd0] sm:$0xff]
  %v1290 = vld [vmem:[%s11 + $0xfd8] sm:$0xff]
  %v1291 = vld [vmem:[%s11 + $0xfe0] sm:$0xff]
  %v1292 = vld [vmem:[%s11 + $0xfe8] sm:$0xff]
  %v1293 = vld [vmem:[%s11 + $0xff0] sm:$0xff]
  %v1294 = vld [vmem:[%s11 + $0xff8] sm:$0xff]
  %v1295 = vld [vmem:[%s11 + $0x1000] sm:$0xff]
  %v1296 = vld [vmem:[%s11 + $0x1008] sm:$0xff]
  %v1297 = vld [vmem:[%s11 + $0x1010] sm:$0xff]
  %v1298 = vld [vmem:[%s11 + $0x1018] sm:$0xff]
  %v1299 = vld [vmem:[%s11 + $0x1020] sm:$0xff]
  %v1300 = vld [vmem:[%s11 + $0x1028] sm:$0xff]
  %v1301 = vld [vmem:[%s11 + $0x1030] sm:$0xff]
  %v1302 = vld [vmem:[%s11 + $0x1038] sm:$0xff]
  %v1303 = vld [vmem:[%s11 + $0x1040] sm:$0xff]
  %v1304 = vld [vmem:[%s11 + $0x1048] sm:$0xff]
  %v1305 = vld [vmem:[%s11 + $0x1050] sm:$0xff]
  %v1306 = vld [vmem:[%s11 + $0x1058] sm:$0xff]
  %v1307 = vld [vmem:[%s11 + $0x1060] sm:$0xff]
  %v1308 = vld [vmem:[%s11 + $0x1068] sm:$0xff]
  %v1309 = vld [vmem:[%s11 + $0x1070] sm:$0xff]
  %v1310 = vld [vmem:[%s11 + $0x1078] sm:$0xff]
  %v1311 = vld [vmem:[%s11 + $0x1080] sm:$0xff]
  %v1312 = vld [vmem:[%s11 + $0x1088] sm:$0xff]
  %v1313 = vld [vmem:[%s11 + $0x1090] sm:$0xff]
  %v1314 = vld [vmem:[%s11 + $0x1098] sm:$0xff]
  %v1315 = vld [vmem:[%s11 + $0x10a0] sm:$0xff]
  %v1316 = vld [vmem:[%s11 + $0x10a8] sm:$0xff]
  %v1317 = vld [vmem:[%s11 + $0x10b0] sm:$0xff]
  %v1318 = vld [vmem:[%s11 + $0x10b8] sm:$0xff]
  %v1319 = vld [vmem:[%s11 + $0x10c0] sm:$0xff]
  %v1320 = vld [vmem:[%s11 + $0x10c8] sm:$0xff]
  %v1321 = vld [vmem:[%s11 + $0x10d0] sm:$0xff]
  %v1322 = vld [vmem:[%s11 + $0x10d8] sm:$0xff]
  %v1323 = vld [vmem:[%s11 + $0x10e0] sm:$0xff]
  %v1324 = vld [vmem:[%s11 + $0x10e8] sm:$0xff]
  %v1325 = vld [vmem:[%s11 + $0x10f0] sm:$0xff]
  %v1326 = vld [vmem:[%s11 + $0x10f8] sm:$0xff]
  %v1327 = vld [vmem:[%s11 + $0x1100] sm:$0xff]
  %v1328 = vld [vmem:[%s11 + $0x1108] sm:$0xff]
  %v1329 = vld [vmem:[%s11 + $0x1110] sm:$0xff]
  %v1330 = vld [vmem:[%s11 + $0x1118] sm:$0xff]
  %v1331 = vld [vmem:[%s11 + $0x1120] sm:$0xff]
  %v1332 = vld [vmem:[%s11 + $0x1128] sm:$0xff]
  %v1333 = vld [vmem:[%s11 + $0x1130] sm:$0xff]
  %v1334 = vld [vmem:[%s11 + $0x1138] sm:$0xff]
  %v1335 = vld [vmem:[%s11 + $0x1140] sm:$0xff]
  %v1336 = vld [vmem:[%s11 + $0x1148] sm:$0xff]
  %v1337 = vld [vmem:[%s11 + $0x1150] sm:$0xff]
  %v1338 = vld [vmem:[%s11 + $0x1158] sm:$0xff]
  %v1339 = vld [vmem:[%s11 + $0x1160] sm:$0xff]
  %v1340 = vld [vmem:[%s11 + $0x1168] sm:$0xff]
  %v1341 = vld [vmem:[%s11 + $0x1170] sm:$0xff]
  %v1342 = vld [vmem:[%s11 + $0x1178] sm:$0xff]
  %v1343 = vld [vmem:[%s11 + $0x1180] sm:$0xff]
  %v1344 = vld [vmem:[%s11 + $0x1188] sm:$0xff]
  %v1345 = vld [vmem:[%s11 + $0x1190] sm:$0xff]
  %v1346 = vld [vmem:[%s11 + $0x1198] sm:$0xff]
  %v1347 = vld [vmem:[%s11 + $0x11a0] sm:$0xff]
  %v1348 = vld [vmem:[%s11 + $0x11a8] sm:$0xff]
  %v1349 = vld [vmem:[%s11 + $0x11b0] sm:$0xff]
  %v1350 = vld [vmem:[%s11 + $0x11b8] sm:$0xff]
  %v1351 = vld [vmem:[%s11 + $0x11c0] sm:$0xff]
  %v1352 = vld [vmem:[%s11 + $0x11c8] sm:$0xff]
  %v1353 = vld [vmem:[%s11 + $0x11d0] sm:$0xff]
  %v1354 = vld [vmem:[%s11 + $0x11d8] sm:$0xff]
  %v1355 = vld [vmem:[%s11 + $0x11e0] sm:$0xff]
  %v1356 = vld [vmem:[%s11 + $0x11e8] sm:$0xff]
  %v1357 = vld [vmem:[%s11 + $0x11f0] sm:$0xff]
  %v1358 = vld [vmem:[%s11 + $0x11f8] sm:$0xff]
  %v1359 = vld [vmem:[%s11 + $0x1200] sm:$0xff]
  %v1360 = vld [vmem:[%s11 + $0x1208] sm:$0xff]
  %v1361 = vld [vmem:[%s11 + $0x1210] sm:$0xff]
  %v1362 = vld [vmem:[%s11 + $0x1218] sm:$0xff]
  %v1363 = vld [vmem:[%s11 + $0x1220] sm:$0xff]
  %v1364 = vld [vmem:[%s11 + $0x1228] sm:$0xff]
  %v1365 = vld [vmem:[%s11 + $0x1230] sm:$0xff]
  %v1366 = vld [vmem:[%s11 + $0x1238] sm:$0xff]
  %v1367 = vld [vmem:[%s11 + $0x1240] sm:$0xff]
  %v1368 = vld [vmem:[%s11 + $0x1248] sm:$0xff]
  %v1369 = vld [vmem:[%s11 + $0x1250] sm:$0xff]
  %v1370 = vld [vmem:[%s11 + $0x1258] sm:$0xff]
  %v1371 = vld [vmem:[%s11 + $0x1260] sm:$0x7]
  %v1372 = vld [vmem:[%s11 + $0x1268] sm:$0x7]
  %v1373 = vld [vmem:[%s11 + $0x1270] sm:$0x7]
  %v1374 = vld [vmem:[%s11 + $0x1278] sm:$0x7]
  %v1375 = vld [vmem:[%s11 + $0x1280] sm:$0x7]
  %v1376 = vld [vmem:[%s11 + $0x1288] sm:$0x7]
  %v1377 = vld [vmem:[%s11 + $0x1290] sm:$0x7]
  %v1378 = vld [vmem:[%s12] sm:$0x7f]
  %v1380 = vperm.slane %v1378, 0
  %v1381 = vperm.slane %v1378, 1
  %v1382 = vperm.slane %v1378, 2
  %v1383 = vperm.slane %v1378, 3
  %v1384 = vperm.slane %v1378, 4
  %v1385 = vperm.slane %v1378, 5
  %v1386 = vperm.slane %v1378, 6
  %vm1394 = vcmask 285696
  %v1396 = vsel %vm1394, %v782, 0
  %vm1398 = vcmask 1042432
  %v1400 = vsel %vm1398, %v1371, 0
  %v1403 = vsel %vm1398, %v1372, 0
  %v1406 = vsel %vm1398, %v1373, 0
  %v1409 = vsel %vm1398, %v1374, 0
  %v1412 = vsel %vm1398, %v1375, 0
  %v1415 = vsel %vm1398, %v1376, 0
  %v1418 = vsel %vm1398, %v1377, 0
  %1420 = vmatpush.msra.mxu0 %v888
  %1421 = vmatpush.msra.mxu0 %v881
  %1422 = vmatpush.msra.mxu0 %v874
  %1423 = vmatpush.msra.mxu0 %v867
  %1424 = vmatpush.msra.mxu0 %v860
  %1425 = vmatpush.msra.mxu0 %v853
  %1426 = vmatpush.msra.mxu0 %v846
  %1427 = vmatpush.msra.mxu0 %v839
  %1428 = vmatpush.msra.mxu0 %v832
  %1429 = vmatpush.msra.mxu0 %v825
  %1430 = vmatpush.msra.mxu0 %v818
  %1431 = vmatpush.msra.mxu0 %v811
  %1432 = vmatpush.msra.mxu0 %v804
  %1433 = vmatpush.msra.mxu0 %v797
  %1434 = vmatpush.msra.mxu0 %v790
  %1435 = vmatpush.msra.mxu0 %v783
  %1436 = vmatmul.f32.gmra.mxu0 %v777
  %v1437 = vpop.f32.mrf.mxu0
  %v1438 = vadd.f32 %v1380, %v1437
  %1439 = vdwg.mxu0
  %1440 = vmatpush.msra.mxu0 %v1000
  %1441 = vmatpush.msra.mxu0 %v993
  %1442 = vmatpush.msra.mxu0 %v986
  %1443 = vmatpush.msra.mxu0 %v979
  %1444 = vmatpush.msra.mxu0 %v972
  %1445 = vmatpush.msra.mxu0 %v965
  %1446 = vmatpush.msra.mxu0 %v958
  %1447 = vmatpush.msra.mxu0 %v951
  %1448 = vmatpush.msra.mxu0 %v944
  %1449 = vmatpush.msra.mxu0 %v937
  %1450 = vmatpush.msra.mxu0 %v930
  %1451 = vmatpush.msra.mxu0 %v923
  %1452 = vmatpush.msra.mxu0 %v916
  %1453 = vmatpush.msra.mxu0 %v909
  %1454 = vmatpush.msra.mxu0 %v902
  %1455 = vmatpush.msra.mxu0 %v895
  %1456 = vmatmul.f32.gmra.mxu0 %v778
  %v1457 = vpop.f32.mrf.mxu0
  %v1458 = vadd.f32 %v1438, %v1457
  %1459 = vdwg.mxu0
  %1460 = vmatpush.msra.mxu0 %v1112
  %1461 = vmatpush.msra.mxu0 %v1105
  %1462 = vmatpush.msra.mxu0 %v1098
  %1463 = vmatpush.msra.mxu0 %v1091
  %1464 = vmatpush.msra.mxu0 %v1084
  %1465 = vmatpush.msra.mxu0 %v1077
  %1466 = vmatpush.msra.mxu0 %v1070
  %1467 = vmatpush.msra.mxu0 %v1063
  %1468 = vmatpush.msra.mxu0 %v1056
  %1469 = vmatpush.msra.mxu0 %v1049
  %1470 = vmatpush.msra.mxu0 %v1042
  %1471 = vmatpush.msra.mxu0 %v1035
  %1472 = vmatpush.msra.mxu0 %v1028
  %1473 = vmatpush.msra.mxu0 %v1021
  %1474 = vmatpush.msra.mxu0 %v1014
  %1475 = vmatpush.msra.mxu0 %v1007
  %1476 = vmatmul.f32.gmra.mxu0 %v779
  %v1477 = vpop.f32.mrf.mxu0
  %v1478 = vadd.f32 %v1458, %v1477
  %1479 = vdwg.mxu0
  %1480 = vmatpush.msra.mxu0 %v1224
  %1481 = vmatpush.msra.mxu0 %v1217
  %1482 = vmatpush.msra.mxu0 %v1210
  %1483 = vmatpush.msra.mxu0 %v1203
  %1484 = vmatpush.msra.mxu0 %v1196
  %1485 = vmatpush.msra.mxu0 %v1189
  %1486 = vmatpush.msra.mxu0 %v1182
  %1487 = vmatpush.msra.mxu0 %v1175
  %1488 = vmatpush.msra.mxu0 %v1168
  %1489 = vmatpush.msra.mxu0 %v1161
  %1490 = vmatpush.msra.mxu0 %v1154
  %1491 = vmatpush.msra.mxu0 %v1147
  %1492 = vmatpush.msra.mxu0 %v1140
  %1493 = vmatpush.msra.mxu0 %v1133
  %1494 = vmatpush.msra.mxu0 %v1126
  %1495 = vmatpush.msra.mxu0 %v1119
  %1496 = vmatmul.f32.gmra.mxu0 %v780
  %v1497 = vpop.f32.mrf.mxu0
  %v1498 = vadd.f32 %v1478, %v1497
  %1499 = vdwg.mxu0
  %1500 = vmatpush.msra.mxu0 %v1336
  %1501 = vmatpush.msra.mxu0 %v1329
  %1502 = vmatpush.msra.mxu0 %v1322
  %1503 = vmatpush.msra.mxu0 %v1315
  %1504 = vmatpush.msra.mxu0 %v1308
  %1505 = vmatpush.msra.mxu0 %v1301
  %1506 = vmatpush.msra.mxu0 %v1294
  %1507 = vmatpush.msra.mxu0 %v1287
  %1508 = vmatpush.msra.mxu0 %v1280
  %1509 = vmatpush.msra.mxu0 %v1273
  %1510 = vmatpush.msra.mxu0 %v1266
  %1511 = vmatpush.msra.mxu0 %v1259
  %1512 = vmatpush.msra.mxu0 %v1252
  %1513 = vmatpush.msra.mxu0 %v1245
  %1514 = vmatpush.msra.mxu0 %v1238
  %1515 = vmatpush.msra.mxu0 %v1231
  %1516 = vmatmul.f32.gmra.mxu0 %v781
  %v1517 = vpop.f32.mrf.mxu0
  %v1518 = vadd.f32 %v1498, %v1517
  %1519 = vdwg.mxu0
  %1520 = vmatpush.msra.mxu0 0.0
  %1521 = vmatpush.msra.mxu0 0.0
  %1522 = vmatpush.msra.mxu0 0.0
  %1523 = vmatpush.msra.mxu0 0.0
  %1524 = vmatpush.msra.mxu0 0.0
  %1525 = vmatpush.msra.mxu0 0.0
  %1526 = vmatpush.msra.mxu0 0.0
  %1527 = vmatpush.msra.mxu0 0.0
  %1528 = vmatpush.msra.mxu0 0.0
  %1529 = vmatpush.msra.mxu0 0.0
  %1530 = vmatpush.msra.mxu0 0.0
  %1531 = vmatpush.msra.mxu0 %v1400
  %1532 = vmatpush.msra.mxu0 %v1364
  %1533 = vmatpush.msra.mxu0 %v1357
  %1534 = vmatpush.msra.mxu0 %v1350
  %1535 = vmatpush.msra.mxu0 %v1343
  %1536 = vmatmul.f32.gmra.mxu0 %v1396
  %v1537 = vpop.f32.mrf.mxu0
  %v1538 = vadd.f32 %v1518, %v1537
  %1539 = vdwg.mxu0
  %1540 = vmatpush.msra.mxu0 %v889
  %1541 = vmatpush.msra.mxu0 %v882
  %1542 = vmatpush.msra.mxu0 %v875
  %1543 = vmatpush.msra.mxu0 %v868
  %1544 = vmatpush.msra.mxu0 %v861
  %1545 = vmatpush.msra.mxu0 %v854
  %1546 = vmatpush.msra.mxu0 %v847
  %1547 = vmatpush.msra.mxu0 %v840
  %1548 = vmatpush.msra.mxu0 %v833
  %1549 = vmatpush.msra.mxu0 %v826
  %1550 = vmatpush.msra.mxu0 %v819
  %1551 = vmatpush.msra.mxu0 %v812
  %1552 = vmatpush.msra.mxu0 %v805
  %1553 = vmatpush.msra.mxu0 %v798
  %1554 = vmatpush.msra.mxu0 %v791
  %1555 = vmatpush.msra.mxu0 %v784
  %1556 = vmatmul.f32.gmra.mxu0 %v777
  %v1557 = vpop.f32.mrf.mxu0
  %v1558 = vadd.f32 %v1381, %v1557
  %1559 = vdwg.mxu0
  %1560 = vmatpush.msra.mxu0 %v1001
  %1561 = vmatpush.msra.mxu0 %v994
  %1562 = vmatpush.msra.mxu0 %v987
  %1563 = vmatpush.msra.mxu0 %v980
  %1564 = vmatpush.msra.mxu0 %v973
  %1565 = vmatpush.msra.mxu0 %v966
  %1566 = vmatpush.msra.mxu0 %v959
  %1567 = vmatpush.msra.mxu0 %v952
  %1568 = vmatpush.msra.mxu0 %v945
  %1569 = vmatpush.msra.mxu0 %v938
  %1570 = vmatpush.msra.mxu0 %v931
  %1571 = vmatpush.msra.mxu0 %v924
  %1572 = vmatpush.msra.mxu0 %v917
  %1573 = vmatpush.msra.mxu0 %v910
  %1574 = vmatpush.msra.mxu0 %v903
  %1575 = vmatpush.msra.mxu0 %v896
  %1576 = vmatmul.f32.gmra.mxu0 %v778
  %v1577 = vpop.f32.mrf.mxu0
  %v1578 = vadd.f32 %v1558, %v1577
  %1579 = vdwg.mxu0
  %1580 = vmatpush.msra.mxu0 %v1113
  %1581 = vmatpush.msra.mxu0 %v1106
  %1582 = vmatpush.msra.mxu0 %v1099
  %1583 = vmatpush.msra.mxu0 %v1092
  %1584 = vmatpush.msra.mxu0 %v1085
  %1585 = vmatpush.msra.mxu0 %v1078
  %1586 = vmatpush.msra.mxu0 %v1071
  %1587 = vmatpush.msra.mxu0 %v1064
  %1588 = vmatpush.msra.mxu0 %v1057
  %1589 = vmatpush.msra.mxu0 %v1050
  %1590 = vmatpush.msra.mxu0 %v1043
  %1591 = vmatpush.msra.mxu0 %v1036
  %1592 = vmatpush.msra.mxu0 %v1029
  %1593 = vmatpush.msra.mxu0 %v1022
  %1594 = vmatpush.msra.mxu0 %v1015
  %1595 = vmatpush.msra.mxu0 %v1008
  %1596 = vmatmul.f32.gmra.mxu0 %v779
  %v1597 = vpop.f32.mrf.mxu0
  %v1598 = vadd.f32 %v1578, %v1597
  %1599 = vdwg.mxu0
  %1600 = vmatpush.msra.mxu0 %v1225
  %1601 = vmatpush.msra.mxu0 %v1218
  %1602 = vmatpush.msra.mxu0 %v1211
  %1603 = vmatpush.msra.mxu0 %v1204
  %1604 = vmatpush.msra.mxu0 %v1197
  %1605 = vmatpush.msra.mxu0 %v1190
  %1606 = vmatpush.msra.mxu0 %v1183
  %1607 = vmatpush.msra.mxu0 %v1176
  %1608 = vmatpush.msra.mxu0 %v1169
  %1609 = vmatpush.msra.mxu0 %v1162
  %1610 = vmatpush.msra.mxu0 %v1155
  %1611 = vmatpush.msra.mxu0 %v1148
  %1612 = vmatpush.msra.mxu0 %v1141
  %1613 = vmatpush.msra.mxu0 %v1134
  %1614 = vmatpush.msra.mxu0 %v1127
  %1615 = vmatpush.msra.mxu0 %v1120
  %1616 = vmatmul.f32.gmra.mxu0 %v780
  %v1617 = vpop.f32.mrf.mxu0
  %v1618 = vadd.f32 %v1598, %v1617
  %1619 = vdwg.mxu0
  %1620 = vmatpush.msra.mxu0 %v1337
  %1621 = vmatpush.msra.mxu0 %v1330
  %1622 = vmatpush.msra.mxu0 %v1323
  %1623 = vmatpush.msra.mxu0 %v1316
  %1624 = vmatpush.msra.mxu0 %v1309
  %1625 = vmatpush.msra.mxu0 %v1302
  %1626 = vmatpush.msra.mxu0 %v1295
  %1627 = vmatpush.msra.mxu0 %v1288
  %1628 = vmatpush.msra.mxu0 %v1281
  %1629 = vmatpush.msra.mxu0 %v1274
  %1630 = vmatpush.msra.mxu0 %v1267
  %1631 = vmatpush.msra.mxu0 %v1260
  %1632 = vmatpush.msra.mxu0 %v1253
  %1633 = vmatpush.msra.mxu0 %v1246
  %1634 = vmatpush.msra.mxu0 %v1239
  %1635 = vmatpush.msra.mxu0 %v1232
  %1636 = vmatmul.f32.gmra.mxu0 %v781
  %v1637 = vpop.f32.mrf.mxu0
  %v1638 = vadd.f32 %v1618, %v1637
  %1639 = vdwg.mxu0
  %1640 = vmatpush.msra.mxu0 0.0
  %1641 = vmatpush.msra.mxu0 0.0
  %1642 = vmatpush.msra.mxu0 0.0
  %1643 = vmatpush.msra.mxu0 0.0
  %1644 = vmatpush.msra.mxu0 0.0
  %1645 = vmatpush.msra.mxu0 0.0
  %1646 = vmatpush.msra.mxu0 0.0
  %1647 = vmatpush.msra.mxu0 0.0
  %1648 = vmatpush.msra.mxu0 0.0
  %1649 = vmatpush.msra.mxu0 0.0
  %1650 = vmatpush.msra.mxu0 0.0
  %1651 = vmatpush.msra.mxu0 %v1403
  %1652 = vmatpush.msra.mxu0 %v1365
  %1653 = vmatpush.msra.mxu0 %v1358
  %1654 = vmatpush.msra.mxu0 %v1351
  %1655 = vmatpush.msra.mxu0 %v1344
  %1656 = vmatmul.f32.gmra.mxu0 %v1396
  %v1657 = vpop.f32.mrf.mxu0
  %v1658 = vadd.f32 %v1638, %v1657
  %1659 = vdwg.mxu0
  %1660 = vmatpush.msra.mxu0 %v890
  %1661 = vmatpush.msra.mxu0 %v883
  %1662 = vmatpush.msra.mxu0 %v876
  %1663 = vmatpush.msra.mxu0 %v869
  %1664 = vmatpush.msra.mxu0 %v862
  %1665 = vmatpush.msra.mxu0 %v855
  %1666 = vmatpush.msra.mxu0 %v848
  %1667 = vmatpush.msra.mxu0 %v841
  %1668 = vmatpush.msra.mxu0 %v834
  %1669 = vmatpush.msra.mxu0 %v827
  %1670 = vmatpush.msra.mxu0 %v820
  %1671 = vmatpush.msra.mxu0 %v813
  %1672 = vmatpush.msra.mxu0 %v806
  %1673 = vmatpush.msra.mxu0 %v799
  %1674 = vmatpush.msra.mxu0 %v792
  %1675 = vmatpush.msra.mxu0 %v785
  %1676 = vmatmul.f32.gmra.mxu0 %v777
  %v1677 = vpop.f32.mrf.mxu0
  %v1678 = vadd.f32 %v1382, %v1677
  %1679 = vdwg.mxu0
  %1680 = vmatpush.msra.mxu0 %v1002
  %1681 = vmatpush.msra.mxu0 %v995
  %1682 = vmatpush.msra.mxu0 %v988
  %1683 = vmatpush.msra.mxu0 %v981
  %1684 = vmatpush.msra.mxu0 %v974
  %1685 = vmatpush.msra.mxu0 %v967
  %1686 = vmatpush.msra.mxu0 %v960
  %1687 = vmatpush.msra.mxu0 %v953
  %1688 = vmatpush.msra.mxu0 %v946
  %1689 = vmatpush.msra.mxu0 %v939
  %1690 = vmatpush.msra.mxu0 %v932
  %1691 = vmatpush.msra.mxu0 %v925
  %1692 = vmatpush.msra.mxu0 %v918
  %1693 = vmatpush.msra.mxu0 %v911
  %1694 = vmatpush.msra.mxu0 %v904
  %1695 = vmatpush.msra.mxu0 %v897
  %1696 = vmatmul.f32.gmra.mxu0 %v778
  %v1697 = vpop.f32.mrf.mxu0
  %v1698 = vadd.f32 %v1678, %v1697
  %1699 = vdwg.mxu0
  %1700 = vmatpush.msra.mxu0 %v1114
  %1701 = vmatpush.msra.mxu0 %v1107
  %1702 = vmatpush.msra.mxu0 %v1100
  %1703 = vmatpush.msra.mxu0 %v1093
  %1704 = vmatpush.msra.mxu0 %v1086
  %1705 = vmatpush.msra.mxu0 %v1079
  %1706 = vmatpush.msra.mxu0 %v1072
  %1707 = vmatpush.msra.mxu0 %v1065
  %1708 = vmatpush.msra.mxu0 %v1058
  %1709 = vmatpush.msra.mxu0 %v1051
  %1710 = vmatpush.msra.mxu0 %v1044
  %1711 = vmatpush.msra.mxu0 %v1037
  %1712 = vmatpush.msra.mxu0 %v1030
  %1713 = vmatpush.msra.mxu0 %v1023
  %1714 = vmatpush.msra.mxu0 %v1016
  %1715 = vmatpush.msra.mxu0 %v1009
  %1716 = vmatmul.f32.gmra.mxu0 %v779
  %v1717 = vpop.f32.mrf.mxu0
  %v1718 = vadd.f32 %v1698, %v1717
  %1719 = vdwg.mxu0
  %1720 = vmatpush.msra.mxu0 %v1226
  %1721 = vmatpush.msra.mxu0 %v1219
  %1722 = vmatpush.msra.mxu0 %v1212
  %1723 = vmatpush.msra.mxu0 %v1205
  %1724 = vmatpush.msra.mxu0 %v1198
  %1725 = vmatpush.msra.mxu0 %v1191
  %1726 = vmatpush.msra.mxu0 %v1184
  %1727 = vmatpush.msra.mxu0 %v1177
  %1728 = vmatpush.msra.mxu0 %v1170
  %1729 = vmatpush.msra.mxu0 %v1163
  %1730 = vmatpush.msra.mxu0 %v1156
  %1731 = vmatpush.msra.mxu0 %v1149
  %1732 = vmatpush.msra.mxu0 %v1142
  %1733 = vmatpush.msra.mxu0 %v1135
  %1734 = vmatpush.msra.mxu0 %v1128
  %1735 = vmatpush.msra.mxu0 %v1121
  %1736 = vmatmul.f32.gmra.mxu0 %v780
  %v1737 = vpop.f32.mrf.mxu0
  %v1738 = vadd.f32 %v1718, %v1737
  %1739 = vdwg.mxu0
  %1740 = vmatpush.msra.mxu0 %v1338
  %1741 = vmatpush.msra.mxu0 %v1331
  %1742 = vmatpush.msra.mxu0 %v1324
  %1743 = vmatpush.msra.mxu0 %v1317
  %1744 = vmatpush.msra.mxu0 %v1310
  %1745 = vmatpush.msra.mxu0 %v1303
  %1746 = vmatpush.msra.mxu0 %v1296
  %1747 = vmatpush.msra.mxu0 %v1289
  %1748 = vmatpush.msra.mxu0 %v1282
  %1749 = vmatpush.msra.mxu0 %v1275
  %1750 = vmatpush.msra.mxu0 %v1268
  %1751 = vmatpush.msra.mxu0 %v1261
  %1752 = vmatpush.msra.mxu0 %v1254
  %1753 = vmatpush.msra.mxu0 %v1247
  %1754 = vmatpush.msra.mxu0 %v1240
  %1755 = vmatpush.msra.mxu0 %v1233
  %1756 = vmatmul.f32.gmra.mxu0 %v781
  %v1757 = vpop.f32.mrf.mxu0
  %v1758 = vadd.f32 %v1738, %v1757
  %1759 = vdwg.mxu0
  %1760 = vmatpush.msra.mxu0 0.0
  %1761 = vmatpush.msra.mxu0 0.0
  %1762 = vmatpush.msra.mxu0 0.0
  %1763 = vmatpush.msra.mxu0 0.0
  %1764 = vmatpush.msra.mxu0 0.0
  %1765 = vmatpush.msra.mxu0 0.0
  %1766 = vmatpush.msra.mxu0 0.0
  %1767 = vmatpush.msra.mxu0 0.0
  %1768 = vmatpush.msra.mxu0 0.0
  %1769 = vmatpush.msra.mxu0 0.0
  %1770 = vmatpush.msra.mxu0 0.0
  %1771 = vmatpush.msra.mxu0 %v1406
  %1772 = vmatpush.msra.mxu0 %v1366
  %1773 = vmatpush.msra.mxu0 %v1359
  %1774 = vmatpush.msra.mxu0 %v1352
  %1775 = vmatpush.msra.mxu0 %v1345
  %1776 = vmatmul.f32.gmra.mxu0 %v1396
  %v1777 = vpop.f32.mrf.mxu0
  %v1778 = vadd.f32 %v1758, %v1777
  %1779 = vdwg.mxu0
  %1780 = vmatpush.msra.mxu0 %v891
  %1781 = vmatpush.msra.mxu0 %v884
  %1782 = vmatpush.msra.mxu0 %v877
  %1783 = vmatpush.msra.mxu0 %v870
  %1784 = vmatpush.msra.mxu0 %v863
  %1785 = vmatpush.msra.mxu0 %v856
  %1786 = vmatpush.msra.mxu0 %v849
  %1787 = vmatpush.msra.mxu0 %v842
  %1788 = vmatpush.msra.mxu0 %v835
  %1789 = vmatpush.msra.mxu0 %v828
  %1790 = vmatpush.msra.mxu0 %v821
  %1791 = vmatpush.msra.mxu0 %v814
  %1792 = vmatpush.msra.mxu0 %v807
  %1793 = vmatpush.msra.mxu0 %v800
  %1794 = vmatpush.msra.mxu0 %v793
  %1795 = vmatpush.msra.mxu0 %v786
  %1796 = vmatmul.f32.gmra.mxu0 %v777
  %v1797 = vpop.f32.mrf.mxu0
  %v1798 = vadd.f32 %v1383, %v1797
  %1799 = vdwg.mxu0
  %1800 = vmatpush.msra.mxu0 %v1003
  %1801 = vmatpush.msra.mxu0 %v996
  %1802 = vmatpush.msra.mxu0 %v989
  %1803 = vmatpush.msra.mxu0 %v982
  %1804 = vmatpush.msra.mxu0 %v975
  %1805 = vmatpush.msra.mxu0 %v968
  %1806 = vmatpush.msra.mxu0 %v961
  %1807 = vmatpush.msra.mxu0 %v954
  %1808 = vmatpush.msra.mxu0 %v947
  %1809 = vmatpush.msra.mxu0 %v940
  %1810 = vmatpush.msra.mxu0 %v933
  %1811 = vmatpush.msra.mxu0 %v926
  %1812 = vmatpush.msra.mxu0 %v919
  %1813 = vmatpush.msra.mxu0 %v912
  %1814 = vmatpush.msra.mxu0 %v905
  %1815 = vmatpush.msra.mxu0 %v898
  %1816 = vmatmul.f32.gmra.mxu0 %v778
  %v1817 = vpop.f32.mrf.mxu0
  %v1818 = vadd.f32 %v1798, %v1817
  %1819 = vdwg.mxu0
  %1820 = vmatpush.msra.mxu0 %v1115
  %1821 = vmatpush.msra.mxu0 %v1108
  %1822 = vmatpush.msra.mxu0 %v1101
  %1823 = vmatpush.msra.mxu0 %v1094
  %1824 = vmatpush.msra.mxu0 %v1087
  %1825 = vmatpush.msra.mxu0 %v1080
  %1826 = vmatpush.msra.mxu0 %v1073
  %1827 = vmatpush.msra.mxu0 %v1066
  %1828 = vmatpush.msra.mxu0 %v1059
  %1829 = vmatpush.msra.mxu0 %v1052
  %1830 = vmatpush.msra.mxu0 %v1045
  %1831 = vmatpush.msra.mxu0 %v1038
  %1832 = vmatpush.msra.mxu0 %v1031
  %1833 = vmatpush.msra.mxu0 %v1024
  %1834 = vmatpush.msra.mxu0 %v1017
  %1835 = vmatpush.msra.mxu0 %v1010
  %1836 = vmatmul.f32.gmra.mxu0 %v779
  %v1837 = vpop.f32.mrf.mxu0
  %v1838 = vadd.f32 %v1818, %v1837
  %1839 = vdwg.mxu0
  %1840 = vmatpush.msra.mxu0 %v1227
  %1841 = vmatpush.msra.mxu0 %v1220
  %1842 = vmatpush.msra.mxu0 %v1213
  %1843 = vmatpush.msra.mxu0 %v1206
  %1844 = vmatpush.msra.mxu0 %v1199
  %1845 = vmatpush.msra.mxu0 %v1192
  %1846 = vmatpush.msra.mxu0 %v1185
  %1847 = vmatpush.msra.mxu0 %v1178
  %1848 = vmatpush.msra.mxu0 %v1171
  %1849 = vmatpush.msra.mxu0 %v1164
  %1850 = vmatpush.msra.mxu0 %v1157
  %1851 = vmatpush.msra.mxu0 %v1150
  %1852 = vmatpush.msra.mxu0 %v1143
  %1853 = vmatpush.msra.mxu0 %v1136
  %1854 = vmatpush.msra.mxu0 %v1129
  %1855 = vmatpush.msra.mxu0 %v1122
  %1856 = vmatmul.f32.gmra.mxu0 %v780
  %v1857 = vpop.f32.mrf.mxu0
  %v1858 = vadd.f32 %v1838, %v1857
  %1859 = vdwg.mxu0
  %1860 = vmatpush.msra.mxu0 %v1339
  %1861 = vmatpush.msra.mxu0 %v1332
  %1862 = vmatpush.msra.mxu0 %v1325
  %1863 = vmatpush.msra.mxu0 %v1318
  %1864 = vmatpush.msra.mxu0 %v1311
  %1865 = vmatpush.msra.mxu0 %v1304
  %1866 = vmatpush.msra.mxu0 %v1297
  %1867 = vmatpush.msra.mxu0 %v1290
  %1868 = vmatpush.msra.mxu0 %v1283
  %1869 = vmatpush.msra.mxu0 %v1276
  %1870 = vmatpush.msra.mxu0 %v1269
  %1871 = vmatpush.msra.mxu0 %v1262
  %1872 = vmatpush.msra.mxu0 %v1255
  %1873 = vmatpush.msra.mxu0 %v1248
  %1874 = vmatpush.msra.mxu0 %v1241
  %1875 = vmatpush.msra.mxu0 %v1234
  %1876 = vmatmul.f32.gmra.mxu0 %v781
  %v1877 = vpop.f32.mrf.mxu0
  %v1878 = vadd.f32 %v1858, %v1877
  %1879 = vdwg.mxu0
  %1880 = vmatpush.msra.mxu0 0.0
  %1881 = vmatpush.msra.mxu0 0.0
  %1882 = vmatpush.msra.mxu0 0.0
  %1883 = vmatpush.msra.mxu0 0.0
  %1884 = vmatpush.msra.mxu0 0.0
  %1885 = vmatpush.msra.mxu0 0.0
  %1886 = vmatpush.msra.mxu0 0.0
  %1887 = vmatpush.msra.mxu0 0.0
  %1888 = vmatpush.msra.mxu0 0.0
  %1889 = vmatpush.msra.mxu0 0.0
  %1890 = vmatpush.msra.mxu0 0.0
  %1891 = vmatpush.msra.mxu0 %v1409
  %1892 = vmatpush.msra.mxu0 %v1367
  %1893 = vmatpush.msra.mxu0 %v1360
  %1894 = vmatpush.msra.mxu0 %v1353
  %1895 = vmatpush.msra.mxu0 %v1346
  %1896 = vmatmul.f32.gmra.mxu0 %v1396
  %v1897 = vpop.f32.mrf.mxu0
  %v1898 = vadd.f32 %v1878, %v1897
  %1899 = vdwg.mxu0
  %1900 = vmatpush.msra.mxu0 %v892
  %1901 = vmatpush.msra.mxu0 %v885
  %1902 = vmatpush.msra.mxu0 %v878
  %1903 = vmatpush.msra.mxu0 %v871
  %1904 = vmatpush.msra.mxu0 %v864
  %1905 = vmatpush.msra.mxu0 %v857
  %1906 = vmatpush.msra.mxu0 %v850
  %1907 = vmatpush.msra.mxu0 %v843
  %1908 = vmatpush.msra.mxu0 %v836
  %1909 = vmatpush.msra.mxu0 %v829
  %1910 = vmatpush.msra.mxu0 %v822
  %1911 = vmatpush.msra.mxu0 %v815
  %1912 = vmatpush.msra.mxu0 %v808
  %1913 = vmatpush.msra.mxu0 %v801
  %1914 = vmatpush.msra.mxu0 %v794
  %1915 = vmatpush.msra.mxu0 %v787
  %1916 = vmatmul.f32.gmra.mxu0 %v777
  %v1917 = vpop.f32.mrf.mxu0
  %v1918 = vadd.f32 %v1384, %v1917
  %1919 = vdwg.mxu0
  %1920 = vmatpush.msra.mxu0 %v1004
  %1921 = vmatpush.msra.mxu0 %v997
  %1922 = vmatpush.msra.mxu0 %v990
  %1923 = vmatpush.msra.mxu0 %v983
  %1924 = vmatpush.msra.mxu0 %v976
  %1925 = vmatpush.msra.mxu0 %v969
  %1926 = vmatpush.msra.mxu0 %v962
  %1927 = vmatpush.msra.mxu0 %v955
  %1928 = vmatpush.msra.mxu0 %v948
  %1929 = vmatpush.msra.mxu0 %v941
  %1930 = vmatpush.msra.mxu0 %v934
  %1931 = vmatpush.msra.mxu0 %v927
  %1932 = vmatpush.msra.mxu0 %v920
  %1933 = vmatpush.msra.mxu0 %v913
  %1934 = vmatpush.msra.mxu0 %v906
  %1935 = vmatpush.msra.mxu0 %v899
  %1936 = vmatmul.f32.gmra.mxu0 %v778
  %v1937 = vpop.f32.mrf.mxu0
  %v1938 = vadd.f32 %v1918, %v1937
  %1939 = vdwg.mxu0
  %1940 = vmatpush.msra.mxu0 %v1116
  %1941 = vmatpush.msra.mxu0 %v1109
  %1942 = vmatpush.msra.mxu0 %v1102
  %1943 = vmatpush.msra.mxu0 %v1095
  %1944 = vmatpush.msra.mxu0 %v1088
  %1945 = vmatpush.msra.mxu0 %v1081
  %1946 = vmatpush.msra.mxu0 %v1074
  %1947 = vmatpush.msra.mxu0 %v1067
  %1948 = vmatpush.msra.mxu0 %v1060
  %1949 = vmatpush.msra.mxu0 %v1053
  %1950 = vmatpush.msra.mxu0 %v1046
  %1951 = vmatpush.msra.mxu0 %v1039
  %1952 = vmatpush.msra.mxu0 %v1032
  %1953 = vmatpush.msra.mxu0 %v1025
  %1954 = vmatpush.msra.mxu0 %v1018
  %1955 = vmatpush.msra.mxu0 %v1011
  %1956 = vmatmul.f32.gmra.mxu0 %v779
  %v1957 = vpop.f32.mrf.mxu0
  %v1958 = vadd.f32 %v1938, %v1957
  %1959 = vdwg.mxu0
  %1960 = vmatpush.msra.mxu0 %v1228
  %1961 = vmatpush.msra.mxu0 %v1221
  %1962 = vmatpush.msra.mxu0 %v1214
  %1963 = vmatpush.msra.mxu0 %v1207
  %1964 = vmatpush.msra.mxu0 %v1200
  %1965 = vmatpush.msra.mxu0 %v1193
  %1966 = vmatpush.msra.mxu0 %v1186
  %1967 = vmatpush.msra.mxu0 %v1179
  %1968 = vmatpush.msra.mxu0 %v1172
  %1969 = vmatpush.msra.mxu0 %v1165
  %1970 = vmatpush.msra.mxu0 %v1158
  %1971 = vmatpush.msra.mxu0 %v1151
  %1972 = vmatpush.msra.mxu0 %v1144
  %1973 = vmatpush.msra.mxu0 %v1137
  %1974 = vmatpush.msra.mxu0 %v1130
  %1975 = vmatpush.msra.mxu0 %v1123
  %1976 = vmatmul.f32.gmra.mxu0 %v780
  %v1977 = vpop.f32.mrf.mxu0
  %v1978 = vadd.f32 %v1958, %v1977
  %1979 = vdwg.mxu0
  %1980 = vmatpush.msra.mxu0 %v1340
  %1981 = vmatpush.msra.mxu0 %v1333
  %1982 = vmatpush.msra.mxu0 %v1326
  %1983 = vmatpush.msra.mxu0 %v1319
  %1984 = vmatpush.msra.mxu0 %v1312
  %1985 = vmatpush.msra.mxu0 %v1305
  %1986 = vmatpush.msra.mxu0 %v1298
  %1987 = vmatpush.msra.mxu0 %v1291
  %1988 = vmatpush.msra.mxu0 %v1284
  %1989 = vmatpush.msra.mxu0 %v1277
  %1990 = vmatpush.msra.mxu0 %v1270
  %1991 = vmatpush.msra.mxu0 %v1263
  %1992 = vmatpush.msra.mxu0 %v1256
  %1993 = vmatpush.msra.mxu0 %v1249
  %1994 = vmatpush.msra.mxu0 %v1242
  %1995 = vmatpush.msra.mxu0 %v1235
  %1996 = vmatmul.f32.gmra.mxu0 %v781
  %v1997 = vpop.f32.mrf.mxu0
  %v1998 = vadd.f32 %v1978, %v1997
  %1999 = vdwg.mxu0
  %2000 = vmatpush.msra.mxu0 0.0
  %2001 = vmatpush.msra.mxu0 0.0
  %2002 = vmatpush.msra.mxu0 0.0
  %2003 = vmatpush.msra.mxu0 0.0
  %2004 = vmatpush.msra.mxu0 0.0
  %2005 = vmatpush.msra.mxu0 0.0
  %2006 = vmatpush.msra.mxu0 0.0
  %2007 = vmatpush.msra.mxu0 0.0
  %2008 = vmatpush.msra.mxu0 0.0
  %2009 = vmatpush.msra.mxu0 0.0
  %2010 = vmatpush.msra.mxu0 0.0
  %2011 = vmatpush.msra.mxu0 %v1412
  %2012 = vmatpush.msra.mxu0 %v1368
  %2013 = vmatpush.msra.mxu0 %v1361
  %2014 = vmatpush.msra.mxu0 %v1354
  %2015 = vmatpush.msra.mxu0 %v1347
  %2016 = vmatmul.f32.gmra.mxu0 %v1396
  %v2017 = vpop.f32.mrf.mxu0
  %v2018 = vadd.f32 %v1998, %v2017
  %2019 = vdwg.mxu0
  %2020 = vmatpush.msra.mxu0 %v893
  %2021 = vmatpush.msra.mxu0 %v886
  %2022 = vmatpush.msra.mxu0 %v879
  %2023 = vmatpush.msra.mxu0 %v872
  %2024 = vmatpush.msra.mxu0 %v865
  %2025 = vmatpush.msra.mxu0 %v858
  %2026 = vmatpush.msra.mxu0 %v851
  %2027 = vmatpush.msra.mxu0 %v844
  %2028 = vmatpush.msra.mxu0 %v837
  %2029 = vmatpush.msra.mxu0 %v830
  %2030 = vmatpush.msra.mxu0 %v823
  %2031 = vmatpush.msra.mxu0 %v816
  %2032 = vmatpush.msra.mxu0 %v809
  %2033 = vmatpush.msra.mxu0 %v802
  %2034 = vmatpush.msra.mxu0 %v795
  %2035 = vmatpush.msra.mxu0 %v788
  %2036 = vmatmul.f32.gmra.mxu0 %v777
  %v2037 = vpop.f32.mrf.mxu0
  %v2038 = vadd.f32 %v1385, %v2037
  %2039 = vdwg.mxu0
  %2040 = vmatpush.msra.mxu0 %v1005
  %2041 = vmatpush.msra.mxu0 %v998
  %2042 = vmatpush.msra.mxu0 %v991
  %2043 = vmatpush.msra.mxu0 %v984
  %2044 = vmatpush.msra.mxu0 %v977
  %2045 = vmatpush.msra.mxu0 %v970
  %2046 = vmatpush.msra.mxu0 %v963
  %2047 = vmatpush.msra.mxu0 %v956
  %2048 = vmatpush.msra.mxu0 %v949
  %2049 = vmatpush.msra.mxu0 %v942
  %2050 = vmatpush.msra.mxu0 %v935
  %2051 = vmatpush.msra.mxu0 %v928
  %2052 = vmatpush.msra.mxu0 %v921
  %2053 = vmatpush.msra.mxu0 %v914
  %2054 = vmatpush.msra.mxu0 %v907
  %2055 = vmatpush.msra.mxu0 %v900
  %2056 = vmatmul.f32.gmra.mxu0 %v778
  %v2057 = vpop.f32.mrf.mxu0
  %v2058 = vadd.f32 %v2038, %v2057
  %2059 = vdwg.mxu0
  %2060 = vmatpush.msra.mxu0 %v1117
  %2061 = vmatpush.msra.mxu0 %v1110
  %2062 = vmatpush.msra.mxu0 %v1103
  %2063 = vmatpush.msra.mxu0 %v1096
  %2064 = vmatpush.msra.mxu0 %v1089
  %2065 = vmatpush.msra.mxu0 %v1082
  %2066 = vmatpush.msra.mxu0 %v1075
  %2067 = vmatpush.msra.mxu0 %v1068
  %2068 = vmatpush.msra.mxu0 %v1061
  %2069 = vmatpush.msra.mxu0 %v1054
  %2070 = vmatpush.msra.mxu0 %v1047
  %2071 = vmatpush.msra.mxu0 %v1040
  %2072 = vmatpush.msra.mxu0 %v1033
  %2073 = vmatpush.msra.mxu0 %v1026
  %2074 = vmatpush.msra.mxu0 %v1019
  %2075 = vmatpush.msra.mxu0 %v1012
  %2076 = vmatmul.f32.gmra.mxu0 %v779
  %v2077 = vpop.f32.mrf.mxu0
  %v2078 = vadd.f32 %v2058, %v2077
  %2079 = vdwg.mxu0
  %2080 = vmatpush.msra.mxu0 %v1229
  %2081 = vmatpush.msra.mxu0 %v1222
  %2082 = vmatpush.msra.mxu0 %v1215
  %2083 = vmatpush.msra.mxu0 %v1208
  %2084 = vmatpush.msra.mxu0 %v1201
  %2085 = vmatpush.msra.mxu0 %v1194
  %2086 = vmatpush.msra.mxu0 %v1187
  %2087 = vmatpush.msra.mxu0 %v1180
  %2088 = vmatpush.msra.mxu0 %v1173
  %2089 = vmatpush.msra.mxu0 %v1166
  %2090 = vmatpush.msra.mxu0 %v1159
  %2091 = vmatpush.msra.mxu0 %v1152
  %2092 = vmatpush.msra.mxu0 %v1145
  %2093 = vmatpush.msra.mxu0 %v1138
  %2094 = vmatpush.msra.mxu0 %v1131
  %2095 = vmatpush.msra.mxu0 %v1124
  %2096 = vmatmul.f32.gmra.mxu0 %v780
  %v2097 = vpop.f32.mrf.mxu0
  %v2098 = vadd.f32 %v2078, %v2097
  %2099 = vdwg.mxu0
  %2100 = vmatpush.msra.mxu0 %v1341
  %2101 = vmatpush.msra.mxu0 %v1334
  %2102 = vmatpush.msra.mxu0 %v1327
  %2103 = vmatpush.msra.mxu0 %v1320
  %2104 = vmatpush.msra.mxu0 %v1313
  %2105 = vmatpush.msra.mxu0 %v1306
  %2106 = vmatpush.msra.mxu0 %v1299
  %2107 = vmatpush.msra.mxu0 %v1292
  %2108 = vmatpush.msra.mxu0 %v1285
  %2109 = vmatpush.msra.mxu0 %v1278
  %2110 = vmatpush.msra.mxu0 %v1271
  %2111 = vmatpush.msra.mxu0 %v1264
  %2112 = vmatpush.msra.mxu0 %v1257
  %2113 = vmatpush.msra.mxu0 %v1250
  %2114 = vmatpush.msra.mxu0 %v1243
  %2115 = vmatpush.msra.mxu0 %v1236
  %2116 = vmatmul.f32.gmra.mxu0 %v781
  %v2117 = vpop.f32.mrf.mxu0
  %v2118 = vadd.f32 %v2098, %v2117
  %2119 = vdwg.mxu0
  %2120 = vmatpush.msra.mxu0 0.0
  %2121 = vmatpush.msra.mxu0 0.0
  %2122 = vmatpush.msra.mxu0 0.0
  %2123 = vmatpush.msra.mxu0 0.0
  %2124 = vmatpush.msra.mxu0 0.0
  %2125 = vmatpush.msra.mxu0 0.0
  %2126 = vmatpush.msra.mxu0 0.0
  %2127 = vmatpush.msra.mxu0 0.0
  %2128 = vmatpush.msra.mxu0 0.0
  %2129 = vmatpush.msra.mxu0 0.0
  %2130 = vmatpush.msra.mxu0 0.0
  %2131 = vmatpush.msra.mxu0 %v1415
  %2132 = vmatpush.msra.mxu0 %v1369
  %2133 = vmatpush.msra.mxu0 %v1362
  %2134 = vmatpush.msra.mxu0 %v1355
  %2135 = vmatpush.msra.mxu0 %v1348
  %2136 = vmatmul.f32.gmra.mxu0 %v1396
  %v2137 = vpop.f32.mrf.mxu0
  %v2138 = vadd.f32 %v2118, %v2137
  %2139 = vdwg.mxu0
  %2140 = vmatpush.msra.mxu0 %v894
  %2141 = vmatpush.msra.mxu0 %v887
  %2142 = vmatpush.msra.mxu0 %v880
  %2143 = vmatpush.msra.mxu0 %v873
  %2144 = vmatpush.msra.mxu0 %v866
  %2145 = vmatpush.msra.mxu0 %v859
  %2146 = vmatpush.msra.mxu0 %v852
  %2147 = vmatpush.msra.mxu0 %v845
  %2148 = vmatpush.msra.mxu0 %v838
  %2149 = vmatpush.msra.mxu0 %v831
  %2150 = vmatpush.msra.mxu0 %v824
  %2151 = vmatpush.msra.mxu0 %v817
  %2152 = vmatpush.msra.mxu0 %v810
  %2153 = vmatpush.msra.mxu0 %v803
  %2154 = vmatpush.msra.mxu0 %v796
  %2155 = vmatpush.msra.mxu0 %v789
  %2156 = vmatmul.f32.gmra.mxu0 %v777
  %v2157 = vpop.f32.mrf.mxu0
  %v2158 = vadd.f32 %v1386, %v2157
  %2159 = vdwg.mxu0
  %2160 = vmatpush.msra.mxu0 %v1006
  %2161 = vmatpush.msra.mxu0 %v999
  %2162 = vmatpush.msra.mxu0 %v992
  %2163 = vmatpush.msra.mxu0 %v985
  %2164 = vmatpush.msra.mxu0 %v978
  %2165 = vmatpush.msra.mxu0 %v971
  %2166 = vmatpush.msra.mxu0 %v964
  %2167 = vmatpush.msra.mxu0 %v957
  %2168 = vmatpush.msra.mxu0 %v950
  %2169 = vmatpush.msra.mxu0 %v943
  %2170 = vmatpush.msra.mxu0 %v936
  %2171 = vmatpush.msra.mxu0 %v929
  %2172 = vmatpush.msra.mxu0 %v922
  %2173 = vmatpush.msra.mxu0 %v915
  %2174 = vmatpush.msra.mxu0 %v908
  %2175 = vmatpush.msra.mxu0 %v901
  %2176 = vmatmul.f32.gmra.mxu0 %v778
  %v2177 = vpop.f32.mrf.mxu0
  %v2178 = vadd.f32 %v2158, %v2177
  %2179 = vdwg.mxu0
  %2180 = vmatpush.msra.mxu0 %v1118
  %2181 = vmatpush.msra.mxu0 %v1111
  %2182 = vmatpush.msra.mxu0 %v1104
  %2183 = vmatpush.msra.mxu0 %v1097
  %2184 = vmatpush.msra.mxu0 %v1090
  %2185 = vmatpush.msra.mxu0 %v1083
  %2186 = vmatpush.msra.mxu0 %v1076
  %2187 = vmatpush.msra.mxu0 %v1069
  %2188 = vmatpush.msra.mxu0 %v1062
  %2189 = vmatpush.msra.mxu0 %v1055
  %2190 = vmatpush.msra.mxu0 %v1048
  %2191 = vmatpush.msra.mxu0 %v1041
  %2192 = vmatpush.msra.mxu0 %v1034
  %2193 = vmatpush.msra.mxu0 %v1027
  %2194 = vmatpush.msra.mxu0 %v1020
  %2195 = vmatpush.msra.mxu0 %v1013
  %2196 = vmatmul.f32.gmra.mxu0 %v779
  %v2197 = vpop.f32.mrf.mxu0
  %v2198 = vadd.f32 %v2178, %v2197
  %2199 = vdwg.mxu0
  %2200 = vmatpush.msra.mxu0 %v1230
  %2201 = vmatpush.msra.mxu0 %v1223
  %2202 = vmatpush.msra.mxu0 %v1216
  %2203 = vmatpush.msra.mxu0 %v1209
  %2204 = vmatpush.msra.mxu0 %v1202
  %2205 = vmatpush.msra.mxu0 %v1195
  %2206 = vmatpush.msra.mxu0 %v1188
  %2207 = vmatpush.msra.mxu0 %v1181
  %2208 = vmatpush.msra.mxu0 %v1174
  %2209 = vmatpush.msra.mxu0 %v1167
  %2210 = vmatpush.msra.mxu0 %v1160
  %2211 = vmatpush.msra.mxu0 %v1153
  %2212 = vmatpush.msra.mxu0 %v1146
  %2213 = vmatpush.msra.mxu0 %v1139
  %2214 = vmatpush.msra.mxu0 %v1132
  %2215 = vmatpush.msra.mxu0 %v1125
  %2216 = vmatmul.f32.gmra.mxu0 %v780
  %v2217 = vpop.f32.mrf.mxu0
  %v2218 = vadd.f32 %v2198, %v2217
  %2219 = vdwg.mxu0
  %2220 = vmatpush.msra.mxu0 %v1342
  %2221 = vmatpush.msra.mxu0 %v1335
  %2222 = vmatpush.msra.mxu0 %v1328
  %2223 = vmatpush.msra.mxu0 %v1321
  %2224 = vmatpush.msra.mxu0 %v1314
  %2225 = vmatpush.msra.mxu0 %v1307
  %2226 = vmatpush.msra.mxu0 %v1300
  %2227 = vmatpush.msra.mxu0 %v1293
  %2228 = vmatpush.msra.mxu0 %v1286
  %2229 = vmatpush.msra.mxu0 %v1279
  %2230 = vmatpush.msra.mxu0 %v1272
  %2231 = vmatpush.msra.mxu0 %v1265
  %2232 = vmatpush.msra.mxu0 %v1258
  %2233 = vmatpush.msra.mxu0 %v1251
  %2234 = vmatpush.msra.mxu0 %v1244
  %2235 = vmatpush.msra.mxu0 %v1237
  %2236 = vmatmul.f32.gmra.mxu0 %v781
  %v2237 = vpop.f32.mrf.mxu0
  %v2238 = vadd.f32 %v2218, %v2237
  %2239 = vdwg.mxu0
  %2240 = vmatpush.msra.mxu0 0.0
  %2241 = vmatpush.msra.mxu0 0.0
  %2242 = vmatpush.msra.mxu0 0.0
  %2243 = vmatpush.msra.mxu0 0.0
  %2244 = vmatpush.msra.mxu0 0.0
  %2245 = vmatpush.msra.mxu0 0.0
  %2246 = vmatpush.msra.mxu0 0.0
  %2247 = vmatpush.msra.mxu0 0.0
  %2248 = vmatpush.msra.mxu0 0.0
  %2249 = vmatpush.msra.mxu0 0.0
  %2250 = vmatpush.msra.mxu0 0.0
  %2251 = vmatpush.msra.mxu0 %v1418
  %2252 = vmatpush.msra.mxu0 %v1370
  %2253 = vmatpush.msra.mxu0 %v1363
  %2254 = vmatpush.msra.mxu0 %v1356
  %2255 = vmatpush.msra.mxu0 %v1349
  %2256 = vmatmul.f32.gmra.mxu0 %v1396
  %v2257 = vpop.f32.mrf.mxu0
  %v2258 = vadd.f32 %v2238, %v2257
  %2259 = vdwg.mxu0
  %v2260 = vmax.f32 %v1538, 0.0
  %v2261 = vmax.f32 %v1658, 0.0
  %v2262 = vmax.f32 %v1778, 0.0
  %v2263 = vmax.f32 %v1898, 0.0
  %v2264 = vmax.f32 %v2018, 0.0
  %v2265 = vmax.f32 %v2138, 0.0
  %v2266 = vmax.f32 %v2258, 0.0
  %v2267 = vld [vmem:[%s13] sm:$0xff]
  %v2268 = vld [vmem:[%s13 + $0x8] sm:$0xff]
  %v2269 = vld [vmem:[%s13 + $0x10] sm:$0xff]
  %v2270 = vld [vmem:[%s13 + $0x18] sm:$0xff]
  %v2271 = vld [vmem:[%s13 + $0x20] sm:$0xff]
  %v2272 = vld [vmem:[%s13 + $0x28] sm:$0xff]
  %v2273 = vld [vmem:[%s13 + $0x30] sm:$0xff]
  %v2274 = vld [vmem:[%s13 + $0x38] sm:$0xff]
  %v2275 = vld [vmem:[%s13 + $0x40] sm:$0xff]
  %v2276 = vld [vmem:[%s13 + $0x48] sm:$0xff]
  %v2277 = vld [vmem:[%s13 + $0x50] sm:$0xff]
  %v2278 = vld [vmem:[%s13 + $0x58] sm:$0xff]
  %v2279 = vld [vmem:[%s13 + $0x60] sm:$0xff]
  %v2280 = vld [vmem:[%s13 + $0x68] sm:$0xff]
  %v2281 = vld [vmem:[%s13 + $0x70] sm:$0xff]
  %v2282 = vld [vmem:[%s13 + $0x78] sm:$0xff]
  %v2283 = vld [vmem:[%s13 + $0x80] sm:$0xff]
  %v2284 = vld [vmem:[%s13 + $0x88] sm:$0xff]
  %v2285 = vld [vmem:[%s13 + $0x90] sm:$0xff]
  %v2286 = vld [vmem:[%s13 + $0x98] sm:$0xff]
  %v2287 = vld [vmem:[%s13 + $0xa0] sm:$0xff]
  %v2288 = vld [vmem:[%s13 + $0xa8] sm:$0xff]
  %v2289 = vld [vmem:[%s13 + $0xb0] sm:$0xff]
  %v2290 = vld [vmem:[%s13 + $0xb8] sm:$0xff]
  %v2291 = vld [vmem:[%s13 + $0xc0] sm:$0xff]
  %v2292 = vld [vmem:[%s13 + $0xc8] sm:$0xff]
  %v2293 = vld [vmem:[%s13 + $0xd0] sm:$0xff]
  %v2294 = vld [vmem:[%s13 + $0xd8] sm:$0xff]
  %v2295 = vld [vmem:[%s13 + $0xe0] sm:$0xff]
  %v2296 = vld [vmem:[%s13 + $0xe8] sm:$0xff]
  %v2297 = vld [vmem:[%s13 + $0xf0] sm:$0xff]
  %v2298 = vld [vmem:[%s13 + $0xf8] sm:$0xff]
  %v2299 = vld [vmem:[%s13 + $0x100] sm:$0xff]
  %v2300 = vld [vmem:[%s13 + $0x108] sm:$0xff]
  %v2301 = vld [vmem:[%s13 + $0x110] sm:$0xff]
  %v2302 = vld [vmem:[%s13 + $0x118] sm:$0xff]
  %v2303 = vld [vmem:[%s13 + $0x120] sm:$0xff]
  %v2304 = vld [vmem:[%s13 + $0x128] sm:$0xff]
  %v2305 = vld [vmem:[%s13 + $0x130] sm:$0xff]
  %v2306 = vld [vmem:[%s13 + $0x138] sm:$0xff]
  %v2307 = vld [vmem:[%s13 + $0x140] sm:$0xff]
  %v2308 = vld [vmem:[%s13 + $0x148] sm:$0xff]
  %v2309 = vld [vmem:[%s13 + $0x150] sm:$0xff]
  %v2310 = vld [vmem:[%s13 + $0x158] sm:$0xff]
  %v2311 = vld [vmem:[%s13 + $0x160] sm:$0xff]
  %v2312 = vld [vmem:[%s13 + $0x168] sm:$0xff]
  %v2313 = vld [vmem:[%s13 + $0x170] sm:$0xff]
  %v2314 = vld [vmem:[%s13 + $0x178] sm:$0xff]
  %v2315 = vld [vmem:[%s13 + $0x180] sm:$0xff]
  %v2316 = vld [vmem:[%s13 + $0x188] sm:$0xff]
  %v2317 = vld [vmem:[%s13 + $0x190] sm:$0xff]
  %v2318 = vld [vmem:[%s13 + $0x198] sm:$0xff]
  %v2319 = vld [vmem:[%s13 + $0x1a0] sm:$0xff]
  %v2320 = vld [vmem:[%s13 + $0x1a8] sm:$0xff]
  %v2321 = vld [vmem:[%s13 + $0x1b0] sm:$0xff]
  %v2322 = vld [vmem:[%s13 + $0x1b8] sm:$0xff]
  %v2323 = vld [vmem:[%s13 + $0x1c0] sm:$0xff]
  %v2324 = vld [vmem:[%s13 + $0x1c8] sm:$0xff]
  %v2325 = vld [vmem:[%s13 + $0x1d0] sm:$0xff]
  %v2326 = vld [vmem:[%s13 + $0x1d8] sm:$0xff]
  %v2327 = vld [vmem:[%s13 + $0x1e0] sm:$0xff]
  %v2328 = vld [vmem:[%s13 + $0x1e8] sm:$0xff]
  %v2329 = vld [vmem:[%s13 + $0x1f0] sm:$0xff]
  %v2330 = vld [vmem:[%s13 + $0x1f8] sm:$0xff]
  %v2331 = vld [vmem:[%s13 + $0x200] sm:$0xff]
  %v2332 = vld [vmem:[%s13 + $0x208] sm:$0xff]
  %v2333 = vld [vmem:[%s13 + $0x210] sm:$0xff]
  %v2334 = vld [vmem:[%s13 + $0x218] sm:$0xff]
  %v2335 = vld [vmem:[%s13 + $0x220] sm:$0xff]
  %v2336 = vld [vmem:[%s13 + $0x228] sm:$0xff]
  %v2337 = vld [vmem:[%s13 + $0x230] sm:$0xff]
  %v2338 = vld [vmem:[%s13 + $0x238] sm:$0xff]
  %v2339 = vld [vmem:[%s13 + $0x240] sm:$0xff]
  %v2340 = vld [vmem:[%s13 + $0x248] sm:$0xff]
  %v2341 = vld [vmem:[%s13 + $0x250] sm:$0xff]
  %v2342 = vld [vmem:[%s13 + $0x258] sm:$0xff]
  %v2343 = vld [vmem:[%s13 + $0x260] sm:$0xff]
  %v2344 = vld [vmem:[%s13 + $0x268] sm:$0xff]
  %v2345 = vld [vmem:[%s13 + $0x270] sm:$0xff]
  %v2346 = vld [vmem:[%s13 + $0x278] sm:$0xff]
  %v2347 = vld [vmem:[%s13 + $0x280] sm:$0xff]
  %v2348 = vld [vmem:[%s13 + $0x288] sm:$0xff]
  %v2349 = vld [vmem:[%s13 + $0x290] sm:$0xff]
  %v2350 = vld [vmem:[%s13 + $0x298] sm:$0xff]
  %v2351 = vld [vmem:[%s13 + $0x2a0] sm:$0xff]
  %v2352 = vld [vmem:[%s13 + $0x2a8] sm:$0xff]
  %v2353 = vld [vmem:[%s13 + $0x2b0] sm:$0xff]
  %v2354 = vld [vmem:[%s13 + $0x2b8] sm:$0xff]
  %v2355 = vld [vmem:[%s13 + $0x2c0] sm:$0xff]
  %v2356 = vld [vmem:[%s13 + $0x2c8] sm:$0xff]
  %v2357 = vld [vmem:[%s13 + $0x2d0] sm:$0xff]
  %v2358 = vld [vmem:[%s13 + $0x2d8] sm:$0xff]
  %v2359 = vld [vmem:[%s13 + $0x2e0] sm:$0xff]
  %v2360 = vld [vmem:[%s13 + $0x2e8] sm:$0xff]
  %v2361 = vld [vmem:[%s13 + $0x2f0] sm:$0xff]
  %v2362 = vld [vmem:[%s13 + $0x2f8] sm:$0xff]
  %v2363 = vld [vmem:[%s13 + $0x300] sm:$0xff]
  %v2364 = vld [vmem:[%s13 + $0x308] sm:$0xff]
  %v2365 = vld [vmem:[%s13 + $0x310] sm:$0xff]
  %v2366 = vld [vmem:[%s13 + $0x318] sm:$0xff]
  %v2367 = vld [vmem:[%s13 + $0x320] sm:$0xff]
  %v2368 = vld [vmem:[%s13 + $0x328] sm:$0xff]
  %v2369 = vld [vmem:[%s13 + $0x330] sm:$0xff]
  %v2370 = vld [vmem:[%s13 + $0x338] sm:$0xff]
  %v2371 = vld [vmem:[%s13 + $0x340] sm:$0xff]
  %v2372 = vld [vmem:[%s13 + $0x348] sm:$0xff]
  %v2373 = vld [vmem:[%s13 + $0x350] sm:$0xff]
  %v2374 = vld [vmem:[%s13 + $0x358] sm:$0xff]
  %v2375 = vld [vmem:[%s13 + $0x360] sm:$0xff]
  %v2376 = vld [vmem:[%s13 + $0x368] sm:$0xff]
  %v2377 = vld [vmem:[%s13 + $0x370] sm:$0xff]
  %v2378 = vld [vmem:[%s13 + $0x378] sm:$0xff]
  %v2379 = vld [vmem:[%s13 + $0x380] sm:$0xff]
  %v2380 = vld [vmem:[%s13 + $0x388] sm:$0xff]
  %v2381 = vld [vmem:[%s13 + $0x390] sm:$0xff]
  %v2382 = vld [vmem:[%s13 + $0x398] sm:$0xff]
  %v2383 = vld [vmem:[%s13 + $0x3a0] sm:$0xff]
  %v2384 = vld [vmem:[%s13 + $0x3a8] sm:$0xff]
  %v2385 = vld [vmem:[%s13 + $0x3b0] sm:$0xff]
  %v2386 = vld [vmem:[%s13 + $0x3b8] sm:$0xff]
  %v2387 = vld [vmem:[%s13 + $0x3c0] sm:$0xff]
  %v2388 = vld [vmem:[%s13 + $0x3c8] sm:$0xff]
  %v2389 = vld [vmem:[%s13 + $0x3d0] sm:$0xff]
  %v2390 = vld [vmem:[%s13 + $0x3d8] sm:$0xff]
  %v2391 = vld [vmem:[%s13 + $0x3e0] sm:$0xff]
  %v2392 = vld [vmem:[%s13 + $0x3e8] sm:$0xff]
  %v2393 = vld [vmem:[%s13 + $0x3f0] sm:$0xff]
  %v2394 = vld [vmem:[%s13 + $0x3f8] sm:$0xff]
  %v2395 = vld [vmem:[%s13 + $0x400] sm:$0xff]
  %v2396 = vld [vmem:[%s13 + $0x408] sm:$0xff]
  %v2397 = vld [vmem:[%s13 + $0x410] sm:$0xff]
  %v2398 = vld [vmem:[%s13 + $0x418] sm:$0xff]
  %v2399 = vld [vmem:[%s13 + $0x420] sm:$0xff]
  %v2400 = vld [vmem:[%s13 + $0x428] sm:$0xff]
  %v2401 = vld [vmem:[%s13 + $0x430] sm:$0xff]
  %v2402 = vld [vmem:[%s13 + $0x438] sm:$0xff]
  %v2403 = vld [vmem:[%s13 + $0x440] sm:$0xff]
  %v2404 = vld [vmem:[%s13 + $0x448] sm:$0xff]
  %v2405 = vld [vmem:[%s13 + $0x450] sm:$0xff]
  %v2406 = vld [vmem:[%s13 + $0x458] sm:$0xff]
  %v2407 = vld [vmem:[%s13 + $0x460] sm:$0xff]
  %v2408 = vld [vmem:[%s13 + $0x468] sm:$0xff]
  %v2409 = vld [vmem:[%s13 + $0x470] sm:$0xff]
  %v2410 = vld [vmem:[%s13 + $0x478] sm:$0xff]
  %v2411 = vld [vmem:[%s13 + $0x480] sm:$0xff]
  %v2412 = vld [vmem:[%s13 + $0x488] sm:$0xff]
  %v2413 = vld [vmem:[%s13 + $0x490] sm:$0xff]
  %v2414 = vld [vmem:[%s13 + $0x498] sm:$0xff]
  %v2415 = vld [vmem:[%s13 + $0x4a0] sm:$0xff]
  %v2416 = vld [vmem:[%s13 + $0x4a8] sm:$0xff]
  %v2417 = vld [vmem:[%s13 + $0x4b0] sm:$0xff]
  %v2418 = vld [vmem:[%s13 + $0x4b8] sm:$0xff]
  %v2419 = vld [vmem:[%s13 + $0x4c0] sm:$0xff]
  %v2420 = vld [vmem:[%s13 + $0x4c8] sm:$0xff]
  %v2421 = vld [vmem:[%s13 + $0x4d0] sm:$0xff]
  %v2422 = vld [vmem:[%s13 + $0x4d8] sm:$0xff]
  %v2423 = vld [vmem:[%s13 + $0x4e0] sm:$0xff]
  %v2424 = vld [vmem:[%s13 + $0x4e8] sm:$0xff]
  %v2425 = vld [vmem:[%s13 + $0x4f0] sm:$0xff]
  %v2426 = vld [vmem:[%s13 + $0x4f8] sm:$0xff]
  %v2427 = vld [vmem:[%s13 + $0x500] sm:$0xff]
  %v2428 = vld [vmem:[%s13 + $0x508] sm:$0xff]
  %v2429 = vld [vmem:[%s13 + $0x510] sm:$0xff]
  %v2430 = vld [vmem:[%s13 + $0x518] sm:$0xff]
  %v2431 = vld [vmem:[%s13 + $0x520] sm:$0xff]
  %v2432 = vld [vmem:[%s13 + $0x528] sm:$0xff]
  %v2433 = vld [vmem:[%s13 + $0x530] sm:$0xff]
  %v2434 = vld [vmem:[%s13 + $0x538] sm:$0xff]
  %v2435 = vld [vmem:[%s13 + $0x540] sm:$0xff]
  %v2436 = vld [vmem:[%s13 + $0x548] sm:$0xff]
  %v2437 = vld [vmem:[%s13 + $0x550] sm:$0xff]
  %v2438 = vld [vmem:[%s13 + $0x558] sm:$0xff]
  %v2439 = vld [vmem:[%s13 + $0x560] sm:$0xff]
  %v2440 = vld [vmem:[%s13 + $0x568] sm:$0xff]
  %v2441 = vld [vmem:[%s13 + $0x570] sm:$0xff]
  %v2442 = vld [vmem:[%s13 + $0x578] sm:$0xff]
  %v2443 = vld [vmem:[%s13 + $0x580] sm:$0xff]
  %v2444 = vld [vmem:[%s13 + $0x588] sm:$0xff]
  %v2445 = vld [vmem:[%s13 + $0x590] sm:$0xff]
  %v2446 = vld [vmem:[%s13 + $0x598] sm:$0xff]
  %v2447 = vld [vmem:[%s13 + $0x5a0] sm:$0xff]
  %v2448 = vld [vmem:[%s13 + $0x5a8] sm:$0xff]
  %v2449 = vld [vmem:[%s13 + $0x5b0] sm:$0xff]
  %v2450 = vld [vmem:[%s13 + $0x5b8] sm:$0xff]
  %v2451 = vld [vmem:[%s13 + $0x5c0] sm:$0xff]
  %v2452 = vld [vmem:[%s13 + $0x5c8] sm:$0xff]
  %v2453 = vld [vmem:[%s13 + $0x5d0] sm:$0xff]
  %v2454 = vld [vmem:[%s13 + $0x5d8] sm:$0xff]
  %v2455 = vld [vmem:[%s13 + $0x5e0] sm:$0xff]
  %v2456 = vld [vmem:[%s13 + $0x5e8] sm:$0xff]
  %v2457 = vld [vmem:[%s13 + $0x5f0] sm:$0xff]
  %v2458 = vld [vmem:[%s13 + $0x5f8] sm:$0xff]
  %v2459 = vld [vmem:[%s13 + $0x600] sm:$0xff]
  %v2460 = vld [vmem:[%s13 + $0x608] sm:$0xff]
  %v2461 = vld [vmem:[%s13 + $0x610] sm:$0xff]
  %v2462 = vld [vmem:[%s13 + $0x618] sm:$0xff]
  %v2463 = vld [vmem:[%s13 + $0x620] sm:$0xff]
  %v2464 = vld [vmem:[%s13 + $0x628] sm:$0xff]
  %v2465 = vld [vmem:[%s13 + $0x630] sm:$0xff]
  %v2466 = vld [vmem:[%s13 + $0x638] sm:$0xff]
  %v2467 = vld [vmem:[%s13 + $0x640] sm:$0xff]
  %v2468 = vld [vmem:[%s13 + $0x648] sm:$0xff]
  %v2469 = vld [vmem:[%s13 + $0x650] sm:$0xff]
  %v2470 = vld [vmem:[%s13 + $0x658] sm:$0xff]
  %v2471 = vld [vmem:[%s13 + $0x660] sm:$0xff]
  %v2472 = vld [vmem:[%s13 + $0x668] sm:$0xff]
  %v2473 = vld [vmem:[%s13 + $0x670] sm:$0xff]
  %v2474 = vld [vmem:[%s13 + $0x678] sm:$0xff]
  %v2475 = vld [vmem:[%s13 + $0x680] sm:$0xff]
  %v2476 = vld [vmem:[%s13 + $0x688] sm:$0xff]
  %v2477 = vld [vmem:[%s13 + $0x690] sm:$0xff]
  %v2478 = vld [vmem:[%s13 + $0x698] sm:$0xff]
  %v2479 = vld [vmem:[%s13 + $0x6a0] sm:$0xff]
  %v2480 = vld [vmem:[%s13 + $0x6a8] sm:$0xff]
  %v2481 = vld [vmem:[%s13 + $0x6b0] sm:$0xff]
  %v2482 = vld [vmem:[%s13 + $0x6b8] sm:$0xff]
  %v2483 = vld [vmem:[%s13 + $0x6c0] sm:$0xff]
  %v2484 = vld [vmem:[%s13 + $0x6c8] sm:$0xff]
  %v2485 = vld [vmem:[%s13 + $0x6d0] sm:$0xff]
  %v2486 = vld [vmem:[%s13 + $0x6d8] sm:$0xff]
  %v2487 = vld [vmem:[%s13 + $0x6e0] sm:$0xff]
  %v2488 = vld [vmem:[%s13 + $0x6e8] sm:$0xff]
  %v2489 = vld [vmem:[%s13 + $0x6f0] sm:$0xff]
  %v2490 = vld [vmem:[%s13 + $0x6f8] sm:$0xff]
  %v2491 = vld [vmem:[%s13 + $0x700] sm:$0xff]
  %v2492 = vld [vmem:[%s13 + $0x708] sm:$0xff]
  %v2493 = vld [vmem:[%s13 + $0x710] sm:$0xff]
  %v2494 = vld [vmem:[%s13 + $0x718] sm:$0xff]
  %v2495 = vld [vmem:[%s13 + $0x720] sm:$0xff]
  %v2496 = vld [vmem:[%s13 + $0x728] sm:$0xff]
  %v2497 = vld [vmem:[%s13 + $0x730] sm:$0xff]
  %v2498 = vld [vmem:[%s13 + $0x738] sm:$0xff]
  %v2499 = vld [vmem:[%s13 + $0x740] sm:$0xff]
  %v2500 = vld [vmem:[%s13 + $0x748] sm:$0xff]
  %v2501 = vld [vmem:[%s13 + $0x750] sm:$0xff]
  %v2502 = vld [vmem:[%s13 + $0x758] sm:$0xff]
  %v2503 = vld [vmem:[%s13 + $0x760] sm:$0xff]
  %v2504 = vld [vmem:[%s13 + $0x768] sm:$0xff]
  %v2505 = vld [vmem:[%s13 + $0x770] sm:$0xff]
  %v2506 = vld [vmem:[%s13 + $0x778] sm:$0xff]
  %v2507 = vld [vmem:[%s13 + $0x780] sm:$0xff]
  %v2508 = vld [vmem:[%s13 + $0x788] sm:$0xff]
  %v2509 = vld [vmem:[%s13 + $0x790] sm:$0xff]
  %v2510 = vld [vmem:[%s13 + $0x798] sm:$0xff]
  %v2511 = vld [vmem:[%s13 + $0x7a0] sm:$0xff]
  %v2512 = vld [vmem:[%s13 + $0x7a8] sm:$0xff]
  %v2513 = vld [vmem:[%s13 + $0x7b0] sm:$0xff]
  %v2514 = vld [vmem:[%s13 + $0x7b8] sm:$0xff]
  %v2515 = vld [vmem:[%s13 + $0x7c0] sm:$0xff]
  %v2516 = vld [vmem:[%s13 + $0x7c8] sm:$0xff]
  %v2517 = vld [vmem:[%s13 + $0x7d0] sm:$0xff]
  %v2518 = vld [vmem:[%s13 + $0x7d8] sm:$0xff]
  %v2519 = vld [vmem:[%s13 + $0x7e0] sm:$0xff]
  %v2520 = vld [vmem:[%s13 + $0x7e8] sm:$0xff]
  %v2521 = vld [vmem:[%s13 + $0x7f0] sm:$0xff]
  %v2522 = vld [vmem:[%s13 + $0x7f8] sm:$0xff]
  %v2523 = vld [vmem:[%s13 + $0x800] sm:$0xff]
  %v2524 = vld [vmem:[%s13 + $0x808] sm:$0xff]
  %v2525 = vld [vmem:[%s13 + $0x810] sm:$0xff]
  %v2526 = vld [vmem:[%s13 + $0x818] sm:$0xff]
  %v2527 = vld [vmem:[%s13 + $0x820] sm:$0xff]
  %v2528 = vld [vmem:[%s13 + $0x828] sm:$0xff]
  %v2529 = vld [vmem:[%s13 + $0x830] sm:$0xff]
  %v2530 = vld [vmem:[%s13 + $0x838] sm:$0xff]
  %v2531 = vld [vmem:[%s13 + $0x840] sm:$0xff]
  %v2532 = vld [vmem:[%s13 + $0x848] sm:$0xff]
  %v2533 = vld [vmem:[%s13 + $0x850] sm:$0xff]
  %v2534 = vld [vmem:[%s13 + $0x858] sm:$0xff]
  %v2535 = vld [vmem:[%s13 + $0x860] sm:$0xff]
  %v2536 = vld [vmem:[%s13 + $0x868] sm:$0xff]
  %v2537 = vld [vmem:[%s13 + $0x870] sm:$0xff]
  %v2538 = vld [vmem:[%s13 + $0x878] sm:$0xff]
  %v2539 = vld [vmem:[%s13 + $0x880] sm:$0xff]
  %v2540 = vld [vmem:[%s13 + $0x888] sm:$0xff]
  %v2541 = vld [vmem:[%s13 + $0x890] sm:$0xff]
  %v2542 = vld [vmem:[%s13 + $0x898] sm:$0xff]
  %v2543 = vld [vmem:[%s13 + $0x8a0] sm:$0xff]
  %v2544 = vld [vmem:[%s13 + $0x8a8] sm:$0xff]
  %v2545 = vld [vmem:[%s13 + $0x8b0] sm:$0xff]
  %v2546 = vld [vmem:[%s13 + $0x8b8] sm:$0xff]
  %v2547 = vld [vmem:[%s13 + $0x8c0] sm:$0xff]
  %v2548 = vld [vmem:[%s13 + $0x8c8] sm:$0xff]
  %v2549 = vld [vmem:[%s13 + $0x8d0] sm:$0xff]
  %v2550 = vld [vmem:[%s13 + $0x8d8] sm:$0xff]
  %v2551 = vld [vmem:[%s13 + $0x8e0] sm:$0xff]
  %v2552 = vld [vmem:[%s13 + $0x8e8] sm:$0xff]
  %v2553 = vld [vmem:[%s13 + $0x8f0] sm:$0xff]
  %v2554 = vld [vmem:[%s13 + $0x8f8] sm:$0xff]
  %v2555 = vld [vmem:[%s13 + $0x900] sm:$0xff]
  %v2556 = vld [vmem:[%s13 + $0x908] sm:$0xff]
  %v2557 = vld [vmem:[%s13 + $0x910] sm:$0xff]
  %v2558 = vld [vmem:[%s13 + $0x918] sm:$0xff]
  %v2559 = vld [vmem:[%s13 + $0x920] sm:$0xff]
  %v2560 = vld [vmem:[%s13 + $0x928] sm:$0xff]
  %v2561 = vld [vmem:[%s14] sm:$0x7]
  %v2563 = vperm.slane %v2561, 0
  %v2564 = vperm.slane %v2561, 1
  %v2565 = vperm.slane %v2561, 2
  %v2570 = vsel %vm106, %v2266, 0
  %2572 = vmatpush.msra.mxu0 %v2312
  %2573 = vmatpush.msra.mxu0 %v2309
  %2574 = vmatpush.msra.mxu0 %v2306
  %2575 = vmatpush.msra.mxu0 %v2303
  %2576 = vmatpush.msra.mxu0 %v2300
  %2577 = vmatpush.msra.mxu0 %v2297
  %2578 = vmatpush.msra.mxu0 %v2294
  %2579 = vmatpush.msra.mxu0 %v2291
  %2580 = vmatpush.msra.mxu0 %v2288
  %2581 = vmatpush.msra.mxu0 %v2285
  %2582 = vmatpush.msra.mxu0 %v2282
  %2583 = vmatpush.msra.mxu0 %v2279
  %2584 = vmatpush.msra.mxu0 %v2276
  %2585 = vmatpush.msra.mxu0 %v2273
  %2586 = vmatpush.msra.mxu0 %v2270
  %2587 = vmatpush.msra.mxu0 %v2267
  %2588 = vmatmul.f32.gmra.mxu0 %v2260
  %v2589 = vpop.f32.mrf.mxu0
  %v2590 = vadd.f32 %v2563, %v2589
  %2591 = vdwg.mxu0
  %2592 = vmatpush.msra.mxu0 %v2360
  %2593 = vmatpush.msra.mxu0 %v2357
  %2594 = vmatpush.msra.mxu0 %v2354
  %2595 = vmatpush.msra.mxu0 %v2351
  %2596 = vmatpush.msra.mxu0 %v2348
  %2597 = vmatpush.msra.mxu0 %v2345
  %2598 = vmatpush.msra.mxu0 %v2342
  %2599 = vmatpush.msra.mxu0 %v2339
  %2600 = vmatpush.msra.mxu0 %v2336
  %2601 = vmatpush.msra.mxu0 %v2333
  %2602 = vmatpush.msra.mxu0 %v2330
  %2603 = vmatpush.msra.mxu0 %v2327
  %2604 = vmatpush.msra.mxu0 %v2324
  %2605 = vmatpush.msra.mxu0 %v2321
  %2606 = vmatpush.msra.mxu0 %v2318
  %2607 = vmatpush.msra.mxu0 %v2315
  %2608 = vmatmul.f32.gmra.mxu0 %v2261
  %v2609 = vpop.f32.mrf.mxu0
  %v2610 = vadd.f32 %v2590, %v2609
  %2611 = vdwg.mxu0
  %2612 = vmatpush.msra.mxu0 %v2408
  %2613 = vmatpush.msra.mxu0 %v2405
  %2614 = vmatpush.msra.mxu0 %v2402
  %2615 = vmatpush.msra.mxu0 %v2399
  %2616 = vmatpush.msra.mxu0 %v2396
  %2617 = vmatpush.msra.mxu0 %v2393
  %2618 = vmatpush.msra.mxu0 %v2390
  %2619 = vmatpush.msra.mxu0 %v2387
  %2620 = vmatpush.msra.mxu0 %v2384
  %2621 = vmatpush.msra.mxu0 %v2381
  %2622 = vmatpush.msra.mxu0 %v2378
  %2623 = vmatpush.msra.mxu0 %v2375
  %2624 = vmatpush.msra.mxu0 %v2372
  %2625 = vmatpush.msra.mxu0 %v2369
  %2626 = vmatpush.msra.mxu0 %v2366
  %2627 = vmatpush.msra.mxu0 %v2363
  %2628 = vmatmul.f32.gmra.mxu0 %v2262
  %v2629 = vpop.f32.mrf.mxu0
  %v2630 = vadd.f32 %v2610, %v2629
  %2631 = vdwg.mxu0
  %2632 = vmatpush.msra.mxu0 %v2456
  %2633 = vmatpush.msra.mxu0 %v2453
  %2634 = vmatpush.msra.mxu0 %v2450
  %2635 = vmatpush.msra.mxu0 %v2447
  %2636 = vmatpush.msra.mxu0 %v2444
  %2637 = vmatpush.msra.mxu0 %v2441
  %2638 = vmatpush.msra.mxu0 %v2438
  %2639 = vmatpush.msra.mxu0 %v2435
  %2640 = vmatpush.msra.mxu0 %v2432
  %2641 = vmatpush.msra.mxu0 %v2429
  %2642 = vmatpush.msra.mxu0 %v2426
  %2643 = vmatpush.msra.mxu0 %v2423
  %2644 = vmatpush.msra.mxu0 %v2420
  %2645 = vmatpush.msra.mxu0 %v2417
  %2646 = vmatpush.msra.mxu0 %v2414
  %2647 = vmatpush.msra.mxu0 %v2411
  %2648 = vmatmul.f32.gmra.mxu0 %v2263
  %v2649 = vpop.f32.mrf.mxu0
  %v2650 = vadd.f32 %v2630, %v2649
  %2651 = vdwg.mxu0
  %2652 = vmatpush.msra.mxu0 %v2504
  %2653 = vmatpush.msra.mxu0 %v2501
  %2654 = vmatpush.msra.mxu0 %v2498
  %2655 = vmatpush.msra.mxu0 %v2495
  %2656 = vmatpush.msra.mxu0 %v2492
  %2657 = vmatpush.msra.mxu0 %v2489
  %2658 = vmatpush.msra.mxu0 %v2486
  %2659 = vmatpush.msra.mxu0 %v2483
  %2660 = vmatpush.msra.mxu0 %v2480
  %2661 = vmatpush.msra.mxu0 %v2477
  %2662 = vmatpush.msra.mxu0 %v2474
  %2663 = vmatpush.msra.mxu0 %v2471
  %2664 = vmatpush.msra.mxu0 %v2468
  %2665 = vmatpush.msra.mxu0 %v2465
  %2666 = vmatpush.msra.mxu0 %v2462
  %2667 = vmatpush.msra.mxu0 %v2459
  %2668 = vmatmul.f32.gmra.mxu0 %v2264
  %v2669 = vpop.f32.mrf.mxu0
  %v2670 = vadd.f32 %v2650, %v2669
  %2671 = vdwg.mxu0
  %2672 = vmatpush.msra.mxu0 %v2552
  %2673 = vmatpush.msra.mxu0 %v2549
  %2674 = vmatpush.msra.mxu0 %v2546
  %2675 = vmatpush.msra.mxu0 %v2543
  %2676 = vmatpush.msra.mxu0 %v2540
  %2677 = vmatpush.msra.mxu0 %v2537
  %2678 = vmatpush.msra.mxu0 %v2534
  %2679 = vmatpush.msra.mxu0 %v2531
  %2680 = vmatpush.msra.mxu0 %v2528
  %2681 = vmatpush.msra.mxu0 %v2525
  %2682 = vmatpush.msra.mxu0 %v2522
  %2683 = vmatpush.msra.mxu0 %v2519
  %2684 = vmatpush.msra.mxu0 %v2516
  %2685 = vmatpush.msra.mxu0 %v2513
  %2686 = vmatpush.msra.mxu0 %v2510
  %2687 = vmatpush.msra.mxu0 %v2507
  %2688 = vmatmul.f32.gmra.mxu0 %v2265
  %v2689 = vpop.f32.mrf.mxu0
  %v2690 = vadd.f32 %v2670, %v2689
  %2691 = vdwg.mxu0
  %2692 = vmatpush.msra.mxu0 0.0
  %2693 = vmatpush.msra.mxu0 0.0
  %2694 = vmatpush.msra.mxu0 0.0
  %2695 = vmatpush.msra.mxu0 0.0
  %2696 = vmatpush.msra.mxu0 0.0
  %2697 = vmatpush.msra.mxu0 0.0
  %2698 = vmatpush.msra.mxu0 0.0
  %2699 = vmatpush.msra.mxu0 0.0
  %2700 = vmatpush.msra.mxu0 0.0
  %2701 = vmatpush.msra.mxu0 0.0
  %2702 = vmatpush.msra.mxu0 0.0
  %2703 = vmatpush.msra.mxu0 0.0
  %2704 = vmatpush.msra.mxu0 0.0
  %2705 = vmatpush.msra.mxu0 0.0
  %2706 = vmatpush.msra.mxu0 %v2558
  %2707 = vmatpush.msra.mxu0 %v2555
  %2708 = vmatmul.f32.gmra.mxu0 %v2570
  %v2709 = vpop.f32.mrf.mxu0
  %v2710 = vadd.f32 %v2690, %v2709
  %2711 = vdwg.mxu0
  %2712 = vmatpush.msra.mxu0 %v2313
  %2713 = vmatpush.msra.mxu0 %v2310
  %2714 = vmatpush.msra.mxu0 %v2307
  %2715 = vmatpush.msra.mxu0 %v2304
  %2716 = vmatpush.msra.mxu0 %v2301
  %2717 = vmatpush.msra.mxu0 %v2298
  %2718 = vmatpush.msra.mxu0 %v2295
  %2719 = vmatpush.msra.mxu0 %v2292
  %2720 = vmatpush.msra.mxu0 %v2289
  %2721 = vmatpush.msra.mxu0 %v2286
  %2722 = vmatpush.msra.mxu0 %v2283
  %2723 = vmatpush.msra.mxu0 %v2280
  %2724 = vmatpush.msra.mxu0 %v2277
  %2725 = vmatpush.msra.mxu0 %v2274
  %2726 = vmatpush.msra.mxu0 %v2271
  %2727 = vmatpush.msra.mxu0 %v2268
  %2728 = vmatmul.f32.gmra.mxu0 %v2260
  %v2729 = vpop.f32.mrf.mxu0
  %v2730 = vadd.f32 %v2564, %v2729
  %2731 = vdwg.mxu0
  %2732 = vmatpush.msra.mxu0 %v2361
  %2733 = vmatpush.msra.mxu0 %v2358
  %2734 = vmatpush.msra.mxu0 %v2355
  %2735 = vmatpush.msra.mxu0 %v2352
  %2736 = vmatpush.msra.mxu0 %v2349
  %2737 = vmatpush.msra.mxu0 %v2346
  %2738 = vmatpush.msra.mxu0 %v2343
  %2739 = vmatpush.msra.mxu0 %v2340
  %2740 = vmatpush.msra.mxu0 %v2337
  %2741 = vmatpush.msra.mxu0 %v2334
  %2742 = vmatpush.msra.mxu0 %v2331
  %2743 = vmatpush.msra.mxu0 %v2328
  %2744 = vmatpush.msra.mxu0 %v2325
  %2745 = vmatpush.msra.mxu0 %v2322
  %2746 = vmatpush.msra.mxu0 %v2319
  %2747 = vmatpush.msra.mxu0 %v2316
  %2748 = vmatmul.f32.gmra.mxu0 %v2261
  %v2749 = vpop.f32.mrf.mxu0
  %v2750 = vadd.f32 %v2730, %v2749
  %2751 = vdwg.mxu0
  %2752 = vmatpush.msra.mxu0 %v2409
  %2753 = vmatpush.msra.mxu0 %v2406
  %2754 = vmatpush.msra.mxu0 %v2403
  %2755 = vmatpush.msra.mxu0 %v2400
  %2756 = vmatpush.msra.mxu0 %v2397
  %2757 = vmatpush.msra.mxu0 %v2394
  %2758 = vmatpush.msra.mxu0 %v2391
  %2759 = vmatpush.msra.mxu0 %v2388
  %2760 = vmatpush.msra.mxu0 %v2385
  %2761 = vmatpush.msra.mxu0 %v2382
  %2762 = vmatpush.msra.mxu0 %v2379
  %2763 = vmatpush.msra.mxu0 %v2376
  %2764 = vmatpush.msra.mxu0 %v2373
  %2765 = vmatpush.msra.mxu0 %v2370
  %2766 = vmatpush.msra.mxu0 %v2367
  %2767 = vmatpush.msra.mxu0 %v2364
  %2768 = vmatmul.f32.gmra.mxu0 %v2262
  %v2769 = vpop.f32.mrf.mxu0
  %v2770 = vadd.f32 %v2750, %v2769
  %2771 = vdwg.mxu0
  %2772 = vmatpush.msra.mxu0 %v2457
  %2773 = vmatpush.msra.mxu0 %v2454
  %2774 = vmatpush.msra.mxu0 %v2451
  %2775 = vmatpush.msra.mxu0 %v2448
  %2776 = vmatpush.msra.mxu0 %v2445
  %2777 = vmatpush.msra.mxu0 %v2442
  %2778 = vmatpush.msra.mxu0 %v2439
  %2779 = vmatpush.msra.mxu0 %v2436
  %2780 = vmatpush.msra.mxu0 %v2433
  %2781 = vmatpush.msra.mxu0 %v2430
  %2782 = vmatpush.msra.mxu0 %v2427
  %2783 = vmatpush.msra.mxu0 %v2424
  %2784 = vmatpush.msra.mxu0 %v2421
  %2785 = vmatpush.msra.mxu0 %v2418
  %2786 = vmatpush.msra.mxu0 %v2415
  %2787 = vmatpush.msra.mxu0 %v2412
  %2788 = vmatmul.f32.gmra.mxu0 %v2263
  %v2789 = vpop.f32.mrf.mxu0
  %v2790 = vadd.f32 %v2770, %v2789
  %2791 = vdwg.mxu0
  %2792 = vmatpush.msra.mxu0 %v2505
  %2793 = vmatpush.msra.mxu0 %v2502
  %2794 = vmatpush.msra.mxu0 %v2499
  %2795 = vmatpush.msra.mxu0 %v2496
  %2796 = vmatpush.msra.mxu0 %v2493
  %2797 = vmatpush.msra.mxu0 %v2490
  %2798 = vmatpush.msra.mxu0 %v2487
  %2799 = vmatpush.msra.mxu0 %v2484
  %2800 = vmatpush.msra.mxu0 %v2481
  %2801 = vmatpush.msra.mxu0 %v2478
  %2802 = vmatpush.msra.mxu0 %v2475
  %2803 = vmatpush.msra.mxu0 %v2472
  %2804 = vmatpush.msra.mxu0 %v2469
  %2805 = vmatpush.msra.mxu0 %v2466
  %2806 = vmatpush.msra.mxu0 %v2463
  %2807 = vmatpush.msra.mxu0 %v2460
  %2808 = vmatmul.f32.gmra.mxu0 %v2264
  %v2809 = vpop.f32.mrf.mxu0
  %v2810 = vadd.f32 %v2790, %v2809
  %2811 = vdwg.mxu0
  %2812 = vmatpush.msra.mxu0 %v2553
  %2813 = vmatpush.msra.mxu0 %v2550
  %2814 = vmatpush.msra.mxu0 %v2547
  %2815 = vmatpush.msra.mxu0 %v2544
  %2816 = vmatpush.msra.mxu0 %v2541
  %2817 = vmatpush.msra.mxu0 %v2538
  %2818 = vmatpush.msra.mxu0 %v2535
  %2819 = vmatpush.msra.mxu0 %v2532
  %2820 = vmatpush.msra.mxu0 %v2529
  %2821 = vmatpush.msra.mxu0 %v2526
  %2822 = vmatpush.msra.mxu0 %v2523
  %2823 = vmatpush.msra.mxu0 %v2520
  %2824 = vmatpush.msra.mxu0 %v2517
  %2825 = vmatpush.msra.mxu0 %v2514
  %2826 = vmatpush.msra.mxu0 %v2511
  %2827 = vmatpush.msra.mxu0 %v2508
  %2828 = vmatmul.f32.gmra.mxu0 %v2265
  %v2829 = vpop.f32.mrf.mxu0
  %v2830 = vadd.f32 %v2810, %v2829
  %2831 = vdwg.mxu0
  %2832 = vmatpush.msra.mxu0 0.0
  %2833 = vmatpush.msra.mxu0 0.0
  %2834 = vmatpush.msra.mxu0 0.0
  %2835 = vmatpush.msra.mxu0 0.0
  %2836 = vmatpush.msra.mxu0 0.0
  %2837 = vmatpush.msra.mxu0 0.0
  %2838 = vmatpush.msra.mxu0 0.0
  %2839 = vmatpush.msra.mxu0 0.0
  %2840 = vmatpush.msra.mxu0 0.0
  %2841 = vmatpush.msra.mxu0 0.0
  %2842 = vmatpush.msra.mxu0 0.0
  %2843 = vmatpush.msra.mxu0 0.0
  %2844 = vmatpush.msra.mxu0 0.0
  %2845 = vmatpush.msra.mxu0 0.0
  %2846 = vmatpush.msra.mxu0 %v2559
  %2847 = vmatpush.msra.mxu0 %v2556
  %2848 = vmatmul.f32.gmra.mxu0 %v2570
  %v2849 = vpop.f32.mrf.mxu0
  %v2850 = vadd.f32 %v2830, %v2849
  %2851 = vdwg.mxu0
  %2852 = vmatpush.msra.mxu0 %v2314
  %2853 = vmatpush.msra.mxu0 %v2311
  %2854 = vmatpush.msra.mxu0 %v2308
  %2855 = vmatpush.msra.mxu0 %v2305
  %2856 = vmatpush.msra.mxu0 %v2302
  %2857 = vmatpush.msra.mxu0 %v2299
  %2858 = vmatpush.msra.mxu0 %v2296
  %2859 = vmatpush.msra.mxu0 %v2293
  %2860 = vmatpush.msra.mxu0 %v2290
  %2861 = vmatpush.msra.mxu0 %v2287
  %2862 = vmatpush.msra.mxu0 %v2284
  %2863 = vmatpush.msra.mxu0 %v2281
  %2864 = vmatpush.msra.mxu0 %v2278
  %2865 = vmatpush.msra.mxu0 %v2275
  %2866 = vmatpush.msra.mxu0 %v2272
  %2867 = vmatpush.msra.mxu0 %v2269
  %2868 = vmatmul.f32.gmra.mxu0 %v2260
  %v2869 = vpop.f32.mrf.mxu0
  %v2870 = vadd.f32 %v2565, %v2869
  %2871 = vdwg.mxu0
  %2872 = vmatpush.msra.mxu0 %v2362
  %2873 = vmatpush.msra.mxu0 %v2359
  %2874 = vmatpush.msra.mxu0 %v2356
  %2875 = vmatpush.msra.mxu0 %v2353
  %2876 = vmatpush.msra.mxu0 %v2350
  %2877 = vmatpush.msra.mxu0 %v2347
  %2878 = vmatpush.msra.mxu0 %v2344
  %2879 = vmatpush.msra.mxu0 %v2341
  %2880 = vmatpush.msra.mxu0 %v2338
  %2881 = vmatpush.msra.mxu0 %v2335
  %2882 = vmatpush.msra.mxu0 %v2332
  %2883 = vmatpush.msra.mxu0 %v2329
  %2884 = vmatpush.msra.mxu0 %v2326
  %2885 = vmatpush.msra.mxu0 %v2323
  %2886 = vmatpush.msra.mxu0 %v2320
  %2887 = vmatpush.msra.mxu0 %v2317
  %2888 = vmatmul.f32.gmra.mxu0 %v2261
  %v2889 = vpop.f32.mrf.mxu0
  %v2890 = vadd.f32 %v2870, %v2889
  %2891 = vdwg.mxu0
  %2892 = vmatpush.msra.mxu0 %v2410
  %2893 = vmatpush.msra.mxu0 %v2407
  %2894 = vmatpush.msra.mxu0 %v2404
  %2895 = vmatpush.msra.mxu0 %v2401
  %2896 = vmatpush.msra.mxu0 %v2398
  %2897 = vmatpush.msra.mxu0 %v2395
  %2898 = vmatpush.msra.mxu0 %v2392
  %2899 = vmatpush.msra.mxu0 %v2389
  %2900 = vmatpush.msra.mxu0 %v2386
  %2901 = vmatpush.msra.mxu0 %v2383
  %2902 = vmatpush.msra.mxu0 %v2380
  %2903 = vmatpush.msra.mxu0 %v2377
  %2904 = vmatpush.msra.mxu0 %v2374
  %2905 = vmatpush.msra.mxu0 %v2371
  %2906 = vmatpush.msra.mxu0 %v2368
  %2907 = vmatpush.msra.mxu0 %v2365
  %2908 = vmatmul.f32.gmra.mxu0 %v2262
  %v2909 = vpop.f32.mrf.mxu0
  %v2910 = vadd.f32 %v2890, %v2909
  %2911 = vdwg.mxu0
  %2912 = vmatpush.msra.mxu0 %v2458
  %2913 = vmatpush.msra.mxu0 %v2455
  %2914 = vmatpush.msra.mxu0 %v2452
  %2915 = vmatpush.msra.mxu0 %v2449
  %2916 = vmatpush.msra.mxu0 %v2446
  %2917 = vmatpush.msra.mxu0 %v2443
  %2918 = vmatpush.msra.mxu0 %v2440
  %2919 = vmatpush.msra.mxu0 %v2437
  %2920 = vmatpush.msra.mxu0 %v2434
  %2921 = vmatpush.msra.mxu0 %v2431
  %2922 = vmatpush.msra.mxu0 %v2428
  %2923 = vmatpush.msra.mxu0 %v2425
  %2924 = vmatpush.msra.mxu0 %v2422
  %2925 = vmatpush.msra.mxu0 %v2419
  %2926 = vmatpush.msra.mxu0 %v2416
  %2927 = vmatpush.msra.mxu0 %v2413
  %2928 = vmatmul.f32.gmra.mxu0 %v2263
  %v2929 = vpop.f32.mrf.mxu0
  %v2930 = vadd.f32 %v2910, %v2929
  %2931 = vdwg.mxu0
  %2932 = vmatpush.msra.mxu0 %v2506
  %2933 = vmatpush.msra.mxu0 %v2503
  %2934 = vmatpush.msra.mxu0 %v2500
  %2935 = vmatpush.msra.mxu0 %v2497
  %2936 = vmatpush.msra.mxu0 %v2494
  %2937 = vmatpush.msra.mxu0 %v2491
  %2938 = vmatpush.msra.mxu0 %v2488
  %2939 = vmatpush.msra.mxu0 %v2485
  %2940 = vmatpush.msra.mxu0 %v2482
  %2941 = vmatpush.msra.mxu0 %v2479
  %2942 = vmatpush.msra.mxu0 %v2476
  %2943 = vmatpush.msra.mxu0 %v2473
  %2944 = vmatpush.msra.mxu0 %v2470
  %2945 = vmatpush.msra.mxu0 %v2467
  %2946 = vmatpush.msra.mxu0 %v2464
  %2947 = vmatpush.msra.mxu0 %v2461
  %2948 = vmatmul.f32.gmra.mxu0 %v2264
  %v2949 = vpop.f32.mrf.mxu0
  %v2950 = vadd.f32 %v2930, %v2949
  %2951 = vdwg.mxu0
  %2952 = vmatpush.msra.mxu0 %v2554
  %2953 = vmatpush.msra.mxu0 %v2551
  %2954 = vmatpush.msra.mxu0 %v2548
  %2955 = vmatpush.msra.mxu0 %v2545
  %2956 = vmatpush.msra.mxu0 %v2542
  %2957 = vmatpush.msra.mxu0 %v2539
  %2958 = vmatpush.msra.mxu0 %v2536
  %2959 = vmatpush.msra.mxu0 %v2533
  %2960 = vmatpush.msra.mxu0 %v2530
  %2961 = vmatpush.msra.mxu0 %v2527
  %2962 = vmatpush.msra.mxu0 %v2524
  %2963 = vmatpush.msra.mxu0 %v2521
  %2964 = vmatpush.msra.mxu0 %v2518
  %2965 = vmatpush.msra.mxu0 %v2515
  %2966 = vmatpush.msra.mxu0 %v2512
  %2967 = vmatpush.msra.mxu0 %v2509
  %2968 = vmatmul.f32.gmra.mxu0 %v2265
  %v2969 = vpop.f32.mrf.mxu0
  %v2970 = vadd.f32 %v2950, %v2969
  %2971 = vdwg.mxu0
  %2972 = vmatpush.msra.mxu0 0.0
  %2973 = vmatpush.msra.mxu0 0.0
  %2974 = vmatpush.msra.mxu0 0.0
  %2975 = vmatpush.msra.mxu0 0.0
  %2976 = vmatpush.msra.mxu0 0.0
  %2977 = vmatpush.msra.mxu0 0.0
  %2978 = vmatpush.msra.mxu0 0.0
  %2979 = vmatpush.msra.mxu0 0.0
  %2980 = vmatpush.msra.mxu0 0.0
  %2981 = vmatpush.msra.mxu0 0.0
  %2982 = vmatpush.msra.mxu0 0.0
  %2983 = vmatpush.msra.mxu0 0.0
  %2984 = vmatpush.msra.mxu0 0.0
  %2985 = vmatpush.msra.mxu0 0.0
  %2986 = vmatpush.msra.mxu0 %v2560
  %2987 = vmatpush.msra.mxu0 %v2557
  %2988 = vmatmul.f32.gmra.mxu0 %v2570
  %v2989 = vpop.f32.mrf.mxu0
  %v2990 = vadd.f32 %v2970, %v2989
  %2991 = vdwg.mxu0
  %v2992 = vmax.f32 %v2710, 0.0
  %v2993 = vmax.f32 %v2850, 0.0
  %v2994 = vmax.f32 %v2990, 0.0
  %v2995 = vld [vmem:[%s15] sm:$0xff]
  %v2996 = vld [vmem:[%s15 + $0x8] sm:$0xff]
  %v2997 = vld [vmem:[%s15 + $0x10] sm:$0xff]
  %v2998 = vld [vmem:[%s15 + $0x18] sm:$0xff]
  %v2999 = vld [vmem:[%s16] sm:$0xff]
  %v3000 = vld [vmem:[%s16 + $0x8] sm:$0xff]
  %v3001 = vld [vmem:[%s16 + $0x10] sm:$0xff]
  %v3002 = vld [vmem:[%s16 + $0x18] sm:$0xff]
  %v3003 = vld [vmem:[%s16 + $0x20] sm:$0xff]
  %v3004 = vld [vmem:[%s16 + $0x28] sm:$0xff]
  %v3005 = vld [vmem:[%s16 + $0x30] sm:$0xff]
  %v3006 = vld [vmem:[%s16 + $0x38] sm:$0xff]
  %v3007 = vld [vmem:[%s16 + $0x40] sm:$0xff]
  %v3008 = vld [vmem:[%s16 + $0x48] sm:$0xff]
  %v3009 = vld [vmem:[%s16 + $0x50] sm:$0xff]
  %v3010 = vld [vmem:[%s16 + $0x58] sm:$0xff]
  %v3011 = vld [vmem:[%s16 + $0x60] sm:$0xff]
  %v3012 = vld [vmem:[%s16 + $0x68] sm:$0xff]
  %v3013 = vld [vmem:[%s16 + $0x70] sm:$0xff]
  %v3014 = vld [vmem:[%s16 + $0x78] sm:$0xff]
  %v3015 = vld [vmem:[%s16 + $0x80] sm:$0xff]
  %v3016 = vld [vmem:[%s16 + $0x88] sm:$0xff]
  %v3017 = vld [vmem:[%s16 + $0x90] sm:$0xff]
  %v3018 = vld [vmem:[%s16 + $0x98] sm:$0xff]
  %v3019 = vld [vmem:[%s16 + $0xa0] sm:$0xff]
  %v3020 = vld [vmem:[%s16 + $0xa8] sm:$0xff]
  %v3021 = vld [vmem:[%s16 + $0xb0] sm:$0xff]
  %v3022 = vld [vmem:[%s16 + $0xb8] sm:$0xff]
  %v3023 = vld [vmem:[%s16 + $0xc0] sm:$0xff]
  %v3024 = vld [vmem:[%s16 + $0xc8] sm:$0xff]
  %v3025 = vld [vmem:[%s16 + $0xd0] sm:$0xff]
  %v3026 = vld [vmem:[%s16 + $0xd8] sm:$0xff]
  %v3027 = vld [vmem:[%s16 + $0xe0] sm:$0xff]
  %v3028 = vld [vmem:[%s16 + $0xe8] sm:$0xff]
  %v3029 = vld [vmem:[%s16 + $0xf0] sm:$0xff]
  %v3030 = vld [vmem:[%s16 + $0xf8] sm:$0xff]
  %v3031 = vld [vmem:[%s16 + $0x100] sm:$0xff]
  %v3032 = vld [vmem:[%s16 + $0x108] sm:$0xff]
  %v3033 = vld [vmem:[%s16 + $0x110] sm:$0xff]
  %v3034 = vld [vmem:[%s16 + $0x118] sm:$0xff]
  %v3035 = vld [vmem:[%s16 + $0x120] sm:$0xff]
  %v3036 = vld [vmem:[%s16 + $0x128] sm:$0xff]
  %v3037 = vld [vmem:[%s16 + $0x130] sm:$0xff]
  %v3038 = vld [vmem:[%s16 + $0x138] sm:$0xff]
  %v3039 = vld [vmem:[%s16 + $0x140] sm:$0xff]
  %v3040 = vld [vmem:[%s16 + $0x148] sm:$0xff]
  %v3041 = vld [vmem:[%s16 + $0x150] sm:$0x3]
  %vm3042 = vcmask 670720
  %v3044 = vsel %vm3042, %v2994, 0
  %vm3046 = vcmask 1041408
  %v3048 = vsel %vm3046, %v3041, 0
  %3050 = vmatpush.msra.mxu0 %v3014
  %3051 = vmatpush.msra.mxu0 %v3013
  %3052 = vmatpush.msra.mxu0 %v3012
  %3053 = vmatpush.msra.mxu0 %v3011
  %3054 = vmatpush.msra.mxu0 %v3010
  %3055 = vmatpush.msra.mxu0 %v3009
  %3056 = vmatpush.msra.mxu0 %v3008
  %3057 = vmatpush.msra.mxu0 %v3007
  %3058 = vmatpush.msra.mxu0 %v3006
  %3059 = vmatpush.msra.mxu0 %v3005
  %3060 = vmatpush.msra.mxu0 %v3004
  %3061 = vmatpush.msra.mxu0 %v3003
  %3062 = vmatpush.msra.mxu0 %v3002
  %3063 = vmatpush.msra.mxu0 %v3001
  %3064 = vmatpush.msra.mxu0 %v3000
  %3065 = vmatpush.msra.mxu0 %v2999
  %3066 = vmatmul.f32.gmra.mxu0 %v2992
  %v3067 = vpop.f32.mrf.mxu0
  %v3068 = vadd.f32 0.0, %v3067
  %3069 = vdwg.mxu0
  %3070 = vmatpush.msra.mxu0 %v3030
  %3071 = vmatpush.msra.mxu0 %v3029
  %3072 = vmatpush.msra.mxu0 %v3028
  %3073 = vmatpush.msra.mxu0 %v3027
  %3074 = vmatpush.msra.mxu0 %v3026
  %3075 = vmatpush.msra.mxu0 %v3025
  %3076 = vmatpush.msra.mxu0 %v3024
  %3077 = vmatpush.msra.mxu0 %v3023
  %3078 = vmatpush.msra.mxu0 %v3022
  %3079 = vmatpush.msra.mxu0 %v3021
  %3080 = vmatpush.msra.mxu0 %v3020
  %3081 = vmatpush.msra.mxu0 %v3019
  %3082 = vmatpush.msra.mxu0 %v3018
  %3083 = vmatpush.msra.mxu0 %v3017
  %3084 = vmatpush.msra.mxu0 %v3016
  %3085 = vmatpush.msra.mxu0 %v3015
  %3086 = vmatmul.f32.gmra.mxu0 %v2993
  %v3087 = vpop.f32.mrf.mxu0
  %v3088 = vadd.f32 %v3068, %v3087
  %3089 = vdwg.mxu0
  %3090 = vmatpush.msra.mxu0 0.0
  %3091 = vmatpush.msra.mxu0 0.0
  %3092 = vmatpush.msra.mxu0 0.0
  %3093 = vmatpush.msra.mxu0 0.0
  %3094 = vmatpush.msra.mxu0 0.0
  %3095 = vmatpush.msra.mxu0 %v3048
  %3096 = vmatpush.msra.mxu0 %v3040
  %3097 = vmatpush.msra.mxu0 %v3039
  %3098 = vmatpush.msra.mxu0 %v3038
  %3099 = vmatpush.msra.mxu0 %v3037
  %3100 = vmatpush.msra.mxu0 %v3036
  %3101 = vmatpush.msra.mxu0 %v3035
  %3102 = vmatpush.msra.mxu0 %v3034
  %3103 = vmatpush.msra.mxu0 %v3033
  %3104 = vmatpush.msra.mxu0 %v3032
  %3105 = vmatpush.msra.mxu0 %v3031
  %3106 = vmatmul.f32.gmra.mxu0 %v3044
  %v3107 = vpop.f32.mrf.mxu0
  %v3108 = vadd.f32 %v3088, %v3107
  %3109 = vdwg.mxu0
  %v3111 = vsel %vm76, %v225, 0
  %3113 = vmatpush.msra.mxu0 0.0
  %3114 = vmatpush.msra.mxu0 0.0
  %3115 = vmatpush.msra.mxu0 0.0
  %3116 = vmatpush.msra.mxu0 0.0
  %3117 = vmatpush.msra.mxu0 0.0
  %3118 = vmatpush.msra.mxu0 0.0
  %3119 = vmatpush.msra.mxu0 0.0
  %3120 = vmatpush.msra.mxu0 0.0
  %3121 = vmatpush.msra.mxu0 0.0
  %3122 = vmatpush.msra.mxu0 0.0
  %3123 = vmatpush.msra.mxu0 0.0
  %3124 = vmatpush.msra.mxu0 0.0
  %3125 = vmatpush.msra.mxu0 %v2998
  %3126 = vmatpush.msra.mxu0 %v2997
  %3127 = vmatpush.msra.mxu0 %v2996
  %3128 = vmatpush.msra.mxu0 %v2995
  %3129 = vmatmul.f32.gmra.mxu0 %v3111
  %v3130 = vpop.f32.mrf.mxu0
  %v3131 = vadd.f32 %v3108, %v3130
  %3132 = vdwg.mxu0
  %v3133 = vld [vmem:[%s17] sm:$0x1]
  %v3135 = vperm.slane %v3133, 0
  %v3137 = vadd.f32 %v3131, %v3135
  %v3138 = vmax.f32 %v3137, 0.0
  %v3139 = vld [vmem:[%s18] sm:$0xff]
  %v3140 = vld [vmem:[%s18 + $0x8] sm:$0xff]
  %v3141 = vld [vmem:[%s18 + $0x10] sm:$0xff]
  %v3142 = vld [vmem:[%s18 + $0x18] sm:$0xff]
  %v3143 = vld [vmem:[%s18 + $0x20] sm:$0xff]
  %v3144 = vld [vmem:[%s18 + $0x28] sm:$0xff]
  %v3145 = vld [vmem:[%s18 + $0x30] sm:$0xff]
  %v3146 = vld [vmem:[%s18 + $0x38] sm:$0xff]
  %v3147 = vld [vmem:[#allocation2] sm:$0x1]
  %v3149 = vperm.slane %v3147, 0
  %vm3151 = vcmask 523264
  %v3153 = vsel %vm3151, %v3138, 0
  %3155 = vmatpush.msra.mxu0 0.0
  %3156 = vmatpush.msra.mxu0 0.0
  %3157 = vmatpush.msra.mxu0 0.0
  %3158 = vmatpush.msra.mxu0 0.0
  %3159 = vmatpush.msra.mxu0 0.0
  %3160 = vmatpush.msra.mxu0 0.0
  %3161 = vmatpush.msra.mxu0 0.0
  %3162 = vmatpush.msra.mxu0 0.0
  %3163 = vmatpush.msra.mxu0 %v3146
  %3164 = vmatpush.msra.mxu0 %v3145
  %3165 = vmatpush.msra.mxu0 %v3144
  %3166 = vmatpush.msra.mxu0 %v3143
  %3167 = vmatpush.msra.mxu0 %v3142
  %3168 = vmatpush.msra.mxu0 %v3141
  %3169 = vmatpush.msra.mxu0 %v3140
  %3170 = vmatpush.msra.mxu0 %v3139
  %3171 = vmatmul.f32.gmra.mxu0 %v3153
  %v3172 = vpop.f32.mrf.mxu0
  %v3173 = vadd.f32 %v3149, %v3172
  %3174 = vdwg.mxu0
  %vm3175 = vcmask 1024
  %3176 = vst.msk [vmem:[%s20] sm:$0x3] %vm3175, %v3173
  // Predicated region
  $region82: #{tpu_custom_call.1} parent=0 // pred_check
    _
  $region83: #{tpu_custom_call.1} parent=0 // pred_check_branch
    %3178 = sbr.rel (0) target = $region85
  $region84: #{tpu_custom_call.1} parent=0 // pred_region
    _
  $region85: #{tpu_custom_call.1} parent=0 // pred_fallthru
    _
  // Predicated region
  $region86: #{tpu_custom_call.1} parent=0 // pred_check
    _
  $region87: #{tpu_custom_call.1} parent=0 // pred_check_branch
    %3180 = sbr.rel (0) target = $region89
  $region88: #{tpu_custom_call.1} parent=0 // pred_region
    _
  $region89: #{tpu_custom_call.1} parent=0 // pred_fallthru
    _

</llo_original>
